<compile_context>
chip_gen: v5e
topology: v5e:2x2
jax: 0.10.0
libtpu: 0.0.40
codegen_flags: <defaults>
</compile_context>

<pallas_src>
import functools

import jax
import jax.numpy as jnp
from jax.experimental import pallas as pl
from jax.experimental.pallas import tpu as pltpu

_MB = 1024 * 1024


def _hw_config():
    """Pick scoped-VMEM limit and tile targets per TPU generation."""
    kind = ""
    try:
        kind = jax.devices()[0].device_kind.lower()
    except Exception:
        pass
    if any(t in kind for t in ("v4", "v5", "v6")):
        # 128-MiB VMEM parts: big tiles, generous scoped limit.
        return dict(vmem_limit=100 * _MB, tm=1024, tn=1024, tj=1024)
    # v7x (64 MiB VMEM / TensorCore) or unknown: conservative budget with headroom.
    return dict(vmem_limit=56 * _MB, tm=512, tn=512, tj=256)


_CFG = _hw_config()


def _cparams(*sem):
    return pltpu.CompilerParams(dimension_semantics=sem,
                                vmem_limit_bytes=_CFG['vmem_limit'])


def _pick_tile(dim, target, align):
    """Largest multiple of `align` <= target that divides `dim`, else the full dim."""
    if dim <= target:
        return dim
    t = (target // align) * align
    while t >= align:
        if dim % t == 0:
            return t
        t -= align
    return dim


def _erf(x):
    # Abramowitz-Stegun 7.1.26 polynomial, max abs error ~1.5e-7 (effectively exact in f32).
    a1, a2, a3, a4, a5 = 0.254829592, -0.284496736, 1.421413741, -1.453152027, 1.061405429
    p = 0.3275911
    sgn = jnp.where(x >= 0.0, 1.0, -1.0)
    ax = jnp.abs(x)
    t = 1.0 / (1.0 + p * ax)
    poly = ((((a5 * t + a4) * t + a3) * t + a2) * t + a1) * t
    return sgn * (1.0 - poly * jnp.exp(-ax * ax))


def _gelu_exact(x):
    return 0.5 * x * (1.0 + _erf(x * 0.7071067811865476))


# ----------------------------------------------------------------------------
# Pallas kernels
# ----------------------------------------------------------------------------

def _rmsnorm_kernel(x_ref, w_ref, o_ref, *, eps):
    x = x_ref[...].astype(jnp.float32)
    var = jnp.mean(x * x, axis=-1, keepdims=True)
    o_ref[...] = (x * jax.lax.rsqrt(var + eps)
                  * (1.0 + w_ref[...].astype(jnp.float32))).astype(o_ref.dtype)


def _matmul_kernel(x_ref, w_ref, o_ref):
    o_ref[...] = jnp.dot(x_ref[...], w_ref[...],
                         preferred_element_type=jnp.float32).astype(o_ref.dtype)


def _matmul_norm_res_kernel(a_ref, w_ref, nw_ref, r_ref, o_ref, *, eps):
    # Full-K matmul (no K tiling), then post_attention_layernorm + residual add.
    acc = jnp.dot(a_ref[...], w_ref[...], preferred_element_type=jnp.float32)
    var = jnp.mean(acc * acc, axis=-1, keepdims=True)
    nrm = acc * jax.lax.rsqrt(var + eps) * (1.0 + nw_ref[...].astype(jnp.float32))
    o_ref[...] = (r_ref[...].astype(jnp.float32) + nrm).astype(o_ref.dtype)


def _mlp_kernel(x_ref, nw1_ref, wg_ref, wu_ref, wd_ref, nw2_ref, o_ref,
                xn_ref, acc_ref, *, eps):
    j = pl.program_id(1)

    @pl.when(j == 0)
    def _():
        x = x_ref[...].astype(jnp.float32)
        var = jnp.mean(x * x, axis=-1, keepdims=True)
        xn = x * jax.lax.rsqrt(var + eps) * (1.0 + nw1_ref[...].astype(jnp.float32))
        xn_ref[...] = xn.astype(xn_ref.dtype)
        acc_ref[...] = jnp.zeros_like(acc_ref)

    xn = xn_ref[...]
    g = jnp.dot(xn, wg_ref[...], preferred_element_type=jnp.float32)
    u = jnp.dot(xn, wu_ref[...], preferred_element_type=jnp.float32)
    h = (_gelu_exact(g) * u).astype(wd_ref.dtype)
    acc_ref[...] += jnp.dot(h, wd_ref[...], preferred_element_type=jnp.float32)

    @pl.when(j == pl.num_programs(1) - 1)
    def _():
        acc = acc_ref[...]
        var = jnp.mean(acc * acc, axis=-1, keepdims=True)
        nrm = acc * jax.lax.rsqrt(var + eps) * (1.0 + nw2_ref[...].astype(jnp.float32))
        o_ref[...] = (x_ref[...].astype(jnp.float32) + nrm).astype(o_ref.dtype)


def _attn_kernel(q_ref, k_ref, v_ref, cos_ref, sin_ref, pad_ref, flag_ref,
                 o_ref, bias_ref, *, n_rep, head_dim, scaling, softcap, sliding_window):
    d = head_dim
    half = d // 2
    s_len = q_ref.shape[1]

    cos = cos_ref[0].astype(jnp.float32)          # (S, d/2) half table (both halves identical)
    sin = sin_ref[0].astype(jnp.float32)
    pad = pad_ref[0].astype(jnp.float32)          # (1, S) padding row of this batch element

    # Additive mask (prepare_causal_mask semantics) built on-chip; the sliding-window term
    # is gated with pl.when on the per-layer SMEM flag so global layers skip the compare.
    row = jax.lax.broadcasted_iota(jnp.int32, (s_len, s_len), 0)
    col = jax.lax.broadcasted_iota(jnp.int32, (s_len, s_len), 1)
    neg = jnp.finfo(jnp.float32).min
    masked = jnp.logical_or(col > row, pad == 0.0)
    bias_ref[...] = jnp.where(masked, neg, 0.0)

    @pl.when(flag_ref[0] != 0)
    def _():
        bias_ref[...] = jnp.where((row - col) >= sliding_window, neg, bias_ref[...])

    bias = bias_ref[...]

    def rope(ref, col0):
        # RoPE in half-split form, then concatenated to full width so QK^T is a single
        # K=head_dim contraction (fills the 256-deep MXU on v6e/v7x).
        x1 = ref[0, :, col0:col0 + half].astype(jnp.float32)
        x2 = ref[0, :, col0 + half:col0 + d].astype(jnp.float32)
        return jnp.concatenate([x1 * cos - x2 * sin, x2 * cos + x1 * sin],
                               axis=-1).astype(jnp.bfloat16)

    k_rot = rope(k_ref, 0)                        # (S, d) shared K of this kv group
    v_h = v_ref[0]                                # (S, d)
    dims = (((1,), (1,)), ((), ()))               # contract last dims (same form as flash ref)
    for r in range(n_rep):                        # small unroll: heads sharing this K/V
        q_rot = rope(q_ref, r * d)
        s = jax.lax.dot_general(q_rot, k_rot, dims, preferred_element_type=jnp.float32)
        s = s * scaling
        s = softcap * jnp.tanh(s * (1.0 / softcap))
        s = s + bias
        m = jnp.max(s, axis=-1, keepdims=True)
        p = jnp.exp(s - m)
        p = p * pl.reciprocal(jnp.sum(p, axis=-1, keepdims=True), approx=True)
        o = jnp.dot(p.astype(v_h.dtype), v_h, preferred_element_type=jnp.float32)
        o_ref[0, :, r * d:(r + 1) * d] = o.astype(o_ref.dtype)


# ----------------------------------------------------------------------------
# Pallas wrappers
# ----------------------------------------------------------------------------

def rmsnorm(x, w, eps, out_dtype=None):
    m, hdim = x.shape
    out_dtype = x.dtype if out_dtype is None else out_dtype
    tm = _pick_tile(m, _CFG['tm'], 8)
    return pl.pallas_call(
        functools.partial(_rmsnorm_kernel, eps=eps),
        grid=(m // tm,),
        in_specs=[pl.BlockSpec((tm, hdim), lambda i: (i, 0)),
                  pl.BlockSpec((1, hdim), lambda i: (0, 0))],
        out_specs=pl.BlockSpec((tm, hdim), lambda i: (i, 0)),
        out_shape=jax.ShapeDtypeStruct((m, hdim), out_dtype),
        compiler_params=_cparams("parallel"),
    )(x, w.reshape(1, hdim))


def matmul(x, w, out_dtype=jnp.bfloat16):
    """Plain x @ w with both grid axes parallel (x is already normalized bf16)."""
    m, k = x.shape
    _, n = w.shape
    tm = _pick_tile(m, _CFG['tm'], 8)
    tn = _pick_tile(n, _CFG['tn'], 128)
    return pl.pallas_call(
        _matmul_kernel,
        grid=(m // tm, n // tn),
        in_specs=[pl.BlockSpec((tm, k), lambda i, j: (i, 0)),
                  pl.BlockSpec((k, tn), lambda i, j: (0, j))],
        out_specs=pl.BlockSpec((tm, tn), lambda i, j: (i, j)),
        out_shape=jax.ShapeDtypeStruct((m, n), out_dtype),
        compiler_params=_cparams("parallel", "parallel"),
    )(x, w)


def matmul_norm_res(a, w, norm_w, residual, eps):
    """residual + RMSNorm(a @ w); single full-K pass, f32 output (residual stream)."""
    m, k = a.shape
    _, hdim = w.shape
    tm = _pick_tile(m, _CFG['tm'], 8)
    return pl.pallas_call(
        functools.partial(_matmul_norm_res_kernel, eps=eps),
        grid=(m // tm,),
        in_specs=[pl.BlockSpec((tm, k), lambda i: (i, 0)),
                  pl.BlockSpec((k, hdim), lambda i: (0, 0)),
                  pl.BlockSpec((1, hdim), lambda i: (0, 0)),
                  pl.BlockSpec((tm, hdim), lambda i: (i, 0))],
        out_specs=pl.BlockSpec((tm, hdim), lambda i: (i, 0)),
        out_shape=jax.ShapeDtypeStruct((m, hdim), residual.dtype),
        compiler_params=_cparams("parallel"),
    )(a, w, norm_w.reshape(1, hdim), residual)


def mlp_block(x, norm_w1, wg, wu, wd, norm_w2, eps):
    """x + post_ff_ln(down(GELU(gate(pre_ff_ln(x))) * up(pre_ff_ln(x)))); f32 output."""
    m, hdim = x.shape
    inter = wg.shape[1]
    tm = _pick_tile(m, _CFG['tm'], 8)
    tj = _pick_tile(inter, _CFG['tj'], 128)
    return pl.pallas_call(
        functools.partial(_mlp_kernel, eps=eps),
        grid=(m // tm, inter // tj),
        in_specs=[pl.BlockSpec((tm, hdim), lambda i, j: (i, 0)),
                  pl.BlockSpec((1, hdim), lambda i, j: (0, 0)),
                  pl.BlockSpec((hdim, tj), lambda i, j: (0, j)),
                  pl.BlockSpec((hdim, tj), lambda i, j: (0, j)),
                  pl.BlockSpec((tj, hdim), lambda i, j: (j, 0)),
                  pl.BlockSpec((1, hdim), lambda i, j: (0, 0))],
        out_specs=pl.BlockSpec((tm, hdim), lambda i, j: (i, 0)),
        out_shape=jax.ShapeDtypeStruct((m, hdim), x.dtype),
        scratch_shapes=[pltpu.VMEM((tm, hdim), jnp.bfloat16),
                        pltpu.VMEM((tm, hdim), jnp.float32)],
        compiler_params=_cparams("parallel", "arbitrary"),
    )(x, norm_w1.reshape(1, hdim), wg, wu, wd, norm_w2.reshape(1, hdim))


def attention(qkv, cos, sin, pad, flag, *, num_heads, num_kv_heads, head_dim,
              scaling, softcap, sliding_window):
    b, s, _ = qkv.shape
    d = head_dim
    half = d // 2
    n_rep = num_heads // num_kv_heads
    out_d = num_heads * d
    # Lane-dim block constraint (Gemma2 head_dims are 128/256, so this always holds).
    assert d % 128 == 0 and (n_rep * d) % 128 == 0, "head_dim blocks must be 128-aligned"
    kernel = functools.partial(
        _attn_kernel, n_rep=n_rep, head_dim=d, scaling=scaling, softcap=softcap,
        sliding_window=sliding_window)
    # Q/K/V column blocks of the fused QKV array selected purely via block-index math.
    return pl.pallas_call(
        kernel,
        grid=(b, num_kv_heads),
        in_specs=[pl.BlockSpec((1, s, n_rep * d), lambda i, g: (i, 0, g)),
                  pl.BlockSpec((1, s, d), lambda i, g: (i, 0, num_heads + g)),
                  pl.BlockSpec((1, s, d), lambda i, g: (i, 0, num_heads + num_kv_heads + g)),
                  pl.BlockSpec((1, s, half), lambda i, g: (i, 0, 0)),
                  pl.BlockSpec((1, s, half), lambda i, g: (i, 0, 0)),
                  pl.BlockSpec((1, 1, s), lambda i, g: (i, 0, 0)),
                  pl.BlockSpec(memory_space=pltpu.MemorySpace.SMEM)],
        out_specs=pl.BlockSpec((1, s, n_rep * d), lambda i, g: (i, 0, g)),
        out_shape=jax.ShapeDtypeStruct((b, s, out_d), jnp.bfloat16),
        scratch_shapes=[pltpu.VMEM((s, s), jnp.float32)],
        compiler_params=_cparams("parallel", "parallel"),
    )(qkv, qkv, qkv, cos, sin, pad, flag)


# ----------------------------------------------------------------------------
# Parameters (bf16 matmul weights, stacked per layer for lax.scan)
# ----------------------------------------------------------------------------

def init_params(key, cfg):
    h = cfg['hidden_size']
    d = cfg['head_dim']
    nh = cfg['num_attention_heads']
    nkv = cfg['num_key_value_heads']
    inter = cfg['intermediate_size']
    vocab = cfg['vocab_size']
    nl = cfg['num_hidden_layers']

    keys = jax.random.split(key, 2 + nl)
    emb = jax.random.normal(keys[0], (vocab, h), jnp.float32) * 0.02
    emb = emb.at[0].set(0.0)  # padding_idx = 0

    layers = []
    for li in range(nl):
        ks = jax.random.split(keys[2 + li], 11)
        wq = jax.random.normal(ks[0], (h, nh * d), jnp.float32) * 0.02
        wk = jax.random.normal(ks[1], (h, nkv * d), jnp.float32) * 0.02
        wv = jax.random.normal(ks[2], (h, nkv * d), jnp.float32) * 0.02
        layers.append({
            'w_qkv': jnp.concatenate([wq, wk, wv], axis=1).astype(jnp.bfloat16),
            'wo': (jax.random.normal(ks[3], (nh * d, h), jnp.float32) * 0.02).astype(jnp.bfloat16),
            'wg': (jax.random.normal(ks[4], (h, inter), jnp.float32) * 0.02).astype(jnp.bfloat16),
            'wu': (jax.random.normal(ks[5], (h, inter), jnp.float32) * 0.02).astype(jnp.bfloat16),
            'wd': (jax.random.normal(ks[6], (inter, h), jnp.float32) * 0.02).astype(jnp.bfloat16),
            'input_ln': jax.random.normal(ks[7], (h,), jnp.float32) * 0.1,
            'post_attn_ln': jax.random.normal(ks[8], (h,), jnp.float32) * 0.1,
            'pre_ff_ln': jax.random.normal(ks[9], (h,), jnp.float32) * 0.1,
            'post_ff_ln': jax.random.normal(ks[10], (h,), jnp.float32) * 0.1,
        })
    stacked = jax.tree_util.tree_map(lambda *a: jnp.stack(a, axis=0), *layers)

    return {
        'embed': emb,
        'final_norm': jax.random.normal(keys[1], (h,), jnp.float32) * 0.1,
        'layers': stacked,
        # 1 on even layers (sliding window), 0 on odd layers (global attention)
        'is_sliding': jnp.asarray([1 - (li % 2) for li in range(nl)],
                                  jnp.int32).reshape(nl, 1),
    }


# ----------------------------------------------------------------------------
# Model glue (plain JAX): embedding gather, position ids, RoPE tables, scan
# ----------------------------------------------------------------------------

def gemma2_forward(params, input_ids, attention_mask, cfg,
                   intermediate_output=None, final_layer_norm_intermediate=False):
    h = cfg['hidden_size']
    d = cfg['head_dim']
    nh = cfg['num_attention_heads']
    nkv = cfg['num_key_value_heads']
    eps = cfg['rms_norm_eps']
    scaling = cfg['query_pre_attn_scalar'] ** (-0.5)
    softcap = cfg['attn_logit_softcapping']
    sw = cfg['sliding_window']
    nl = cfg['num_hidden_layers']
    b, s = input_ids.shape

    # embedding + Gemma normalizer
    x = params['embed'][input_ids].astype(jnp.float32)
    x = x * jnp.asarray(h ** 0.5, jnp.float32)

    # position ids from the padding mask (cumsum - 1, padded positions -> 1)
    position_ids = jnp.cumsum(attention_mask.astype(jnp.int32), axis=-1) - 1
    position_ids = jnp.where(attention_mask == 0, 1, position_ids)

    # RoPE half tables (cos/sin of the d/2 base frequencies; both halves are identical)
    inv_freq = 1.0 / (cfg['rope_theta'] ** (jnp.arange(0, d, 2, dtype=jnp.float32) / d))
    freqs = position_ids.astype(jnp.float32)[:, :, None] * inv_freq[None, None, :]
    cos = jnp.cos(freqs)                              # (B, S, d/2)
    sin = jnp.sin(freqs)
    pad = attention_mask.astype(jnp.float32).reshape(b, 1, s)

    collect = intermediate_output is not None

    def layer_step(carry, scanned):
        xc = carry                                    # (B, S, H) f32 residual stream
        lp, flag = scanned
        xf = xc.reshape(b * s, h)
        # 1) input_layernorm (bf16) then fused QKV projection (both grid axes parallel)
        xn = rmsnorm(xf, lp['input_ln'], eps, out_dtype=jnp.bfloat16)
        qkv = matmul(xn, lp['w_qkv'])
        # 2) attention core (RoPE, mask, softcap, softmax, PV) -- all in-kernel
        attn = attention(qkv.reshape(b, s, -1), cos, sin, pad, flag,
                         num_heads=nh, num_kv_heads=nkv, head_dim=d,
                         scaling=scaling, softcap=softcap, sliding_window=sw)
        # 3) o_proj + post_attention_layernorm + residual (single full-K pass)
        x_new = matmul_norm_res(attn.reshape(b * s, nh * d), lp['wo'],
                                lp['post_attn_ln'], xf, eps)
        # 4) pre_ff_ln + MLP + post_ff_ln + residual
        x_new = mlp_block(x_new, lp['pre_ff_ln'], lp['wg'], lp['wu'], lp['wd'],
                          lp['post_ff_ln'], eps)
        return x_new.reshape(b, s, h), (xc if collect else None)

    x, layer_inputs = jax.lax.scan(layer_step, x,
                                   (params['layers'], params['is_sliding']))

    out = rmsnorm(x.reshape(b * s, h), params['final_norm'], eps).reshape(b, s, h)

    intermediate = None
    if collect:
        idx = intermediate_output
        if idx < 0:
            idx = nl + idx
        if 0 <= idx < nl:
            intermediate = layer_inputs[idx]
            if final_layer_norm_intermediate:
                intermediate = rmsnorm(intermediate.reshape(b * s, h),
                                       params['final_norm'], eps).reshape(b, s, h)
    return out, intermediate


# ----------------------------------------------------------------------------
# Main
# ----------------------------------------------------------------------------

if __name__ == "__main__":
    cfg = dict(
        vocab_size=256,
        hidden_size=256,
        intermediate_size=512,
        num_hidden_layers=2,
        num_attention_heads=2,
        num_key_value_heads=1,
        head_dim=128,             # 128-aligned so the per-group attention BlockSpecs are legal
        max_position_embeddings=2048,
        rope_theta=10000.0,
        rms_norm_eps=1e-6,
        query_pre_attn_scalar=128,
        attn_logit_softcapping=50.0,
        sliding_window=4,
        attention_bias=False,
        attention_dropout=0.0,
        hidden_activation='gelu_pytorch_tanh',
    )
    key = jax.random.PRNGKey(0)
    pkey, ikey = jax.random.split(key)
    params = init_params(pkey, cfg)

    B, S = 2, 8
    input_ids = jax.random.randint(ikey, (B, S), 1, cfg['vocab_size'], dtype=jnp.int32)
    attention_mask = jnp.array([[1, 1, 1, 1, 1, 1, 1, 1],
                                [1, 1, 1, 1, 1, 1, 0, 0]], dtype=jnp.int32)

    fwd = jax.jit(lambda p, ids, am: gemma2_forward(p, ids, am, cfg))
    hidden, intermediate = fwd(params, input_ids, attention_mask)
    hidden = jax.block_until_ready(hidden)

    assert hidden.shape == (B, S, cfg['hidden_size'])
    assert bool(jnp.all(jnp.isfinite(hidden)))
    print("KERNEL_OK")
</pallas_src>

<mosaic_0001>
module attributes {stable_mosaic.version = 11 : i64} {
  func.func @_matmul_kernel(%arg0: i32, %arg1: i32, %arg2: memref<16x256xbf16, #tpu.memory_space<vmem>>, %arg3: memref<256x512xbf16, #tpu.memory_space<vmem>>, %arg4: memref<16x512xbf16, #tpu.memory_space<vmem>>) attributes {dimension_semantics = [#tpu.dimension_semantics<parallel>, #tpu.dimension_semantics<parallel>], iteration_bounds = array<i64: 1, 1>, scalar_prefetch = 0 : i64, scratch_operands = 0 : i64, tpu.core_type = #tpu.core_type<tc>, window_params = [{transform_indices = @transform_0, window_bounds = array<i64: 16, 256>}, {transform_indices = @transform_1, window_bounds = array<i64: 256, 512>}, {transform_indices = @transform_2, window_bounds = array<i64: 16, 512>}]} {
    %c0 = arith.constant 0 : index
    %c0_0 = arith.constant 0 : index
    %0 = vector.load %arg2[%c0, %c0_0] : memref<16x256xbf16, #tpu.memory_space<vmem>>, vector<16x256xbf16>
    %c0_1 = arith.constant 0 : index
    %c0_2 = arith.constant 0 : index
    %1 = vector.load %arg3[%c0_1, %c0_2] : memref<256x512xbf16, #tpu.memory_space<vmem>>, vector<256x512xbf16>
    %cst = arith.constant dense<0.000000e+00> : vector<16x512xf32>
    %2 = tpu.matmul %0, %1, %cst {dimension_numbers = #tpu.dot_dimension_numbers<[1], [0], [0], [1], [0, 0, 1, 1], [], []>} : vector<16x256xbf16>, vector<256x512xbf16>, vector<16x512xf32> -> vector<16x512xf32>
    %3 = arith.truncf %2 : vector<16x512xf32> to vector<16x512xbf16>
    %c0_3 = arith.constant 0 : index
    %c0_4 = arith.constant 0 : index
    %4 = vector.load %arg4[%c0_3, %c0_4] : memref<16x512xbf16, #tpu.memory_space<vmem>>, vector<16x512xbf16>
    tpu.vector_store %arg4[%c0_3, %c0_4], %3 {strides = array<i32>} : memref<16x512xbf16, #tpu.memory_space<vmem>>, vector<16x512xbf16>,
    return
  }
  func.func @transform_0(%arg0: i32, %arg1: i32) -> (i32, i32) {
    %c0_i32 = arith.constant 0 : i32
    %c0_i32_0 = arith.constant 0 : i32
    return %arg0, %c0_i32 : i32, i32
  }
  func.func @transform_1(%arg0: i32, %arg1: i32) -> (i32, i32) {
    %c0_i32 = arith.constant 0 : i32
    %c0_i32_0 = arith.constant 0 : i32
    return %c0_i32, %arg1 : i32, i32
  }
  func.func @transform_2(%arg0: i32, %arg1: i32) -> (i32, i32) {
    %c0_i32 = arith.constant 0 : i32
    return %arg0, %arg1 : i32, i32
  }
}

module attributes {stable_mosaic.version = 11 : i64} {
  func.func @_rmsnorm_kernel(%arg0: i32, %arg1: memref<16x256xf32, #tpu.memory_space<vmem>>, %arg2: memref<1x256xf32, #tpu.memory_space<vmem>>, %arg3: memref<16x256xbf16, #tpu.memory_space<vmem>>) attributes {dimension_semantics = [#tpu.dimension_semantics<parallel>], iteration_bounds = array<i64: 1>, scalar_prefetch = 0 : i64, scratch_operands = 0 : i64, tpu.core_type = #tpu.core_type<tc>, window_params = [{transform_indices = @transform_0, window_bounds = array<i64: 16, 256>}, {pipeline_mode = #tpu.pipeline_mode<synchronous>, transform_indices = @transform_1, window_bounds = array<i64: 1, 256>}, {transform_indices = @transform_2, window_bounds = array<i64: 16, 256>}]} {
    %c0 = arith.constant 0 : index
    %c0_0 = arith.constant 0 : index
    %0 = vector.load %arg1[%c0, %c0_0] : memref<16x256xf32, #tpu.memory_space<vmem>>, vector<16x256xf32>
    %1 = arith.mulf %0, %0 : vector<16x256xf32>
    %cst = arith.constant dense<0.000000e+00> : vector<16xf32>
    %2 = vector.multi_reduction <add>, %1, %cst [1] : vector<16x256xf32> to vector<16xf32>
    %3 = vector.shape_cast %2 : vector<16xf32> to vector<16x1xf32>
    %cst_1 = arith.constant 2.560000e+02 : f32
    %4 = vector.broadcast %cst_1 : f32 to vector<16x1xf32>
    %5 = arith.divf %3, %4 : vector<16x1xf32>
    %cst_2 = arith.constant 9.99999997E-7 : f32
    %6 = vector.broadcast %cst_2 : f32 to vector<16x1xf32>
    %7 = arith.addf %5, %6 : vector<16x1xf32>
    %8 = math.rsqrt %7 : vector<16x1xf32>
    %9 = vector.broadcast %8 : vector<16x1xf32> to vector<16x256xf32>
    %10 = arith.mulf %0, %9 : vector<16x256xf32>
    %c0_3 = arith.constant 0 : index
    %c0_4 = arith.constant 0 : index
    %11 = vector.load %arg2[%c0_3, %c0_4] : memref<1x256xf32, #tpu.memory_space<vmem>>, vector<1x256xf32>
    %cst_5 = arith.constant 1.000000e+00 : f32
    %12 = vector.broadcast %cst_5 : f32 to vector<1x256xf32>
    %13 = arith.addf %12, %11 : vector<1x256xf32>
    %14 = vector.broadcast %13 : vector<1x256xf32> to vector<16x256xf32>
    %15 = arith.mulf %10, %14 : vector<16x256xf32>
    %16 = arith.truncf %15 : vector<16x256xf32> to vector<16x256xbf16>
    %c0_6 = arith.constant 0 : index
    %c0_7 = arith.constant 0 : index
    %17 = vector.load %arg3[%c0_6, %c0_7] : memref<16x256xbf16, #tpu.memory_space<vmem>>, vector<16x256xbf16>
    tpu.vector_store %arg3[%c0_6, %c0_7], %16 {strides = array<i32>} : memref<16x256xbf16, #tpu.memory_space<vmem>>, vector<16x256xbf16>,
    return
  }
  func.func @transform_0(%arg0: i32) -> (i32, i32) {
    %c0_i32 = arith.constant 0 : i32
    %c0_i32_0 = arith.constant 0 : i32
    return %arg0, %c0_i32 : i32, i32
  }
  func.func @transform_1(%arg0: i32) -> (i32, i32) {
    %c0_i32 = arith.constant 0 : i32
    %c0_i32_0 = arith.constant 0 : i32
    %c0_i32_1 = arith.constant 0 : i32
    return %c0_i32, %c0_i32_0 : i32, i32
  }
  func.func @transform_2(%arg0: i32) -> (i32, i32) {
    %c0_i32 = arith.constant 0 : i32
    %c0_i32_0 = arith.constant 0 : i32
    return %arg0, %c0_i32 : i32, i32
  }
}

module attributes {stable_mosaic.version = 11 : i64} {
  func.func @_attn_kernel(%arg0: i32, %arg1: i32, %arg2: memref<1x8x256xbf16, #tpu.memory_space<vmem>>, %arg3: memref<1x8x128xbf16, #tpu.memory_space<vmem>>, %arg4: memref<1x8x128xbf16, #tpu.memory_space<vmem>>, %arg5: memref<1x8x64xf32, #tpu.memory_space<vmem>>, %arg6: memref<1x8x64xf32, #tpu.memory_space<vmem>>, %arg7: memref<1x1x8xf32, #tpu.memory_space<vmem>>, %arg8: memref<1xi32, #tpu.memory_space<smem>>, %arg9: memref<1x8x256xbf16, #tpu.memory_space<vmem>>, %arg10: memref<8x8xf32, #tpu.memory_space<vmem>>) attributes {dimension_semantics = [#tpu.dimension_semantics<parallel>, #tpu.dimension_semantics<parallel>], iteration_bounds = array<i64: 2, 1>, scalar_prefetch = 0 : i64, scratch_operands = 1 : i64, tpu.core_type = #tpu.core_type<tc>, window_params = [{transform_indices = @transform_0, window_bounds = array<i64: 1, 8, 256>}, {transform_indices = @transform_1, window_bounds = array<i64: 1, 8, 128>}, {transform_indices = @transform_2, window_bounds = array<i64: 1, 8, 128>}, {transform_indices = @transform_3, window_bounds = array<i64: 1, 8, 64>}, {transform_indices = @transform_4, window_bounds = array<i64: 1, 8, 64>}, {transform_indices = @transform_5, window_bounds = array<i64: 1, 1, 8>}, {transform_indices = @transform_6, window_bounds = array<i64: 1>}, {transform_indices = @transform_7, window_bounds = array<i64: 1, 8, 256>}]} {
    %c0 = arith.constant 0 : index
    %c0_0 = arith.constant 0 : index
    %c0_1 = arith.constant 0 : index
    %0 = vector.load %arg5[%c0, %c0_0, %c0_1] : memref<1x8x64xf32, #tpu.memory_space<vmem>>, vector<1x8x64xf32>
    %1 = vector.shape_cast %0 : vector<1x8x64xf32> to vector<8x64xf32>
    %c0_2 = arith.constant 0 : index
    %c0_3 = arith.constant 0 : index
    %c0_4 = arith.constant 0 : index
    %2 = vector.load %arg6[%c0_2, %c0_3, %c0_4] : memref<1x8x64xf32, #tpu.memory_space<vmem>>, vector<1x8x64xf32>
    %3 = vector.shape_cast %2 : vector<1x8x64xf32> to vector<8x64xf32>
    %c0_5 = arith.constant 0 : index
    %c0_6 = arith.constant 0 : index
    %c0_7 = arith.constant 0 : index
    %4 = vector.load %arg7[%c0_5, %c0_6, %c0_7] : memref<1x1x8xf32, #tpu.memory_space<vmem>>, vector<1x1x8xf32>
    %5 = vector.shape_cast %4 : vector<1x1x8xf32> to vector<1x8xf32>
    %6 = tpu.iota {dimensions = array<i32: 0>} : vector<8x8xi32>
    %7 = tpu.iota {dimensions = array<i32: 1>} : vector<8x8xi32>
    %8 = arith.cmpi sgt, %7, %6 : vector<8x8xi32>
    %cst = arith.constant 0.000000e+00 : f32
    %9 = vector.broadcast %cst : f32 to vector<1x8xf32>
    %10 = arith.cmpf oeq, %5, %9 : vector<1x8xf32>
    %11 = vector.broadcast %10 : vector<1x8xi1> to vector<8x8xi1>
    %12 = arith.ori %8, %11 : vector<8x8xi1>
    %cst_8 = arith.constant -3.40282347E+38 : f32
    %cst_9 = arith.constant 0.000000e+00 : f32
    %13 = vector.broadcast %cst_8 : f32 to vector<8x8xf32>
    %14 = vector.broadcast %cst_9 : f32 to vector<8x8xf32>
    %15 = arith.select %12, %13, %14 : vector<8x8xi1>, vector<8x8xf32>
    %c0_10 = arith.constant 0 : index
    %c0_11 = arith.constant 0 : index
    %16 = vector.load %arg10[%c0_10, %c0_11] : memref<8x8xf32, #tpu.memory_space<vmem>>, vector<8x8xf32>
    tpu.vector_store %arg10[%c0_10, %c0_11], %15 {strides = array<i32>} : memref<8x8xf32, #tpu.memory_space<vmem>>, vector<8x8xf32>,
    %c0_12 = arith.constant 0 : index
    %17 = memref.load %arg8[%c0_12] : memref<1xi32, #tpu.memory_space<smem>>
    %c0_i32 = arith.constant 0 : i32
    %18 = arith.cmpi ne, %17, %c0_i32 : i32
    %19 = arith.extui %18 : i1 to i32
    %c0_i32_13 = arith.constant 0 : i32
    %20 = arith.cmpi ne, %19, %c0_i32_13 : i32
    scf.if %20 {
      %116 = arith.subi %6, %7 : vector<8x8xi32>
      %c4_i32 = arith.constant 4 : i32
      %117 = vector.broadcast %c4_i32 : i32 to vector<8x8xi32>
      %118 = arith.cmpi sge, %116, %117 : vector<8x8xi32>
      %c0_54 = arith.constant 0 : index
      %c0_55 = arith.constant 0 : index
      %119 = vector.load %arg10[%c0_54, %c0_55] : memref<8x8xf32, #tpu.memory_space<vmem>>, vector<8x8xf32>
      %cst_56 = arith.constant -3.40282347E+38 : f32
      %120 = vector.broadcast %cst_56 : f32 to vector<8x8xf32>
      %121 = arith.select %118, %120, %119 : vector<8x8xi1>, vector<8x8xf32>
      %c0_57 = arith.constant 0 : index
      %c0_58 = arith.constant 0 : index
      %122 = vector.load %arg10[%c0_57, %c0_58] : memref<8x8xf32, #tpu.memory_space<vmem>>, vector<8x8xf32>
      tpu.vector_store %arg10[%c0_57, %c0_58], %121 {strides = array<i32>} : memref<8x8xf32, #tpu.memory_space<vmem>>, vector<8x8xf32>,
    } else {
    }
    %c0_14 = arith.constant 0 : index
    %c0_15 = arith.constant 0 : index
    %21 = vector.load %arg10[%c0_14, %c0_15] : memref<8x8xf32, #tpu.memory_space<vmem>>, vector<8x8xf32>
    %c0_16 = arith.constant 0 : index
    %c0_17 = arith.constant 0 : index
    %c0_18 = arith.constant 0 : index
    %22 = vector.load %arg3[%c0_16, %c0_17, %c0_18] : memref<1x8x128xbf16, #tpu.memory_space<vmem>>, vector<1x8x64xbf16>
    %23 = vector.shape_cast %22 : vector<1x8x64xbf16> to vector<8x64xbf16>
    %24 = arith.extf %23 : vector<8x64xbf16> to vector<8x64xf32>
    %c0_19 = arith.constant 0 : index
    %c0_20 = arith.constant 0 : index
    %c64 = arith.constant 64 : index
    %25 = vector.load %arg3[%c0_19, %c0_20, %c64] : memref<1x8x128xbf16, #tpu.memory_space<vmem>>, vector<1x8x64xbf16>
    %26 = vector.shape_cast %25 : vector<1x8x64xbf16> to vector<8x64xbf16>
    %27 = arith.extf %26 : vector<8x64xbf16> to vector<8x64xf32>
    %28 = arith.mulf %24, %1 : vector<8x64xf32>
    %29 = arith.mulf %27, %3 : vector<8x64xf32>
    %30 = arith.subf %28, %29 : vector<8x64xf32>
    %31 = arith.mulf %27, %1 : vector<8x64xf32>
    %32 = arith.mulf %24, %3 : vector<8x64xf32>
    %33 = arith.addf %31, %32 : vector<8x64xf32>
    %34 = tpu.concatenate %30, %33 in 1 : vector<8x64xf32>, vector<8x64xf32> -> vector<8x128xf32>
    %35 = arith.truncf %34 : vector<8x128xf32> to vector<8x128xbf16>
    %c0_21 = arith.constant 0 : index
    %c0_22 = arith.constant 0 : index
    %c0_23 = arith.constant 0 : index
    %36 = vector.load %arg4[%c0_21, %c0_22, %c0_23] : memref<1x8x128xbf16, #tpu.memory_space<vmem>>, vector<1x8x128xbf16>
    %37 = vector.shape_cast %36 : vector<1x8x128xbf16> to vector<8x128xbf16>
    %c0_24 = arith.constant 0 : index
    %c0_25 = arith.constant 0 : index
    %c0_26 = arith.constant 0 : index
    %38 = vector.load %arg2[%c0_24, %c0_25, %c0_26] : memref<1x8x256xbf16, #tpu.memory_space<vmem>>, vector<1x8x64xbf16>
    %39 = vector.shape_cast %38 : vector<1x8x64xbf16> to vector<8x64xbf16>
    %40 = arith.extf %39 : vector<8x64xbf16> to vector<8x64xf32>
    %c0_27 = arith.constant 0 : index
    %c0_28 = arith.constant 0 : index
    %c64_29 = arith.constant 64 : index
    %41 = vector.load %arg2[%c0_27, %c0_28, %c64_29] : memref<1x8x256xbf16, #tpu.memory_space<vmem>>, vector<1x8x64xbf16>
    %42 = vector.shape_cast %41 : vector<1x8x64xbf16> to vector<8x64xbf16>
    %43 = arith.extf %42 : vector<8x64xbf16> to vector<8x64xf32>
    %44 = arith.mulf %40, %1 : vector<8x64xf32>
    %45 = arith.mulf %43, %3 : vector<8x64xf32>
    %46 = arith.subf %44, %45 : vector<8x64xf32>
    %47 = arith.mulf %43, %1 : vector<8x64xf32>
    %48 = arith.mulf %40, %3 : vector<8x64xf32>
    %49 = arith.addf %47, %48 : vector<8x64xf32>
    %50 = tpu.concatenate %46, %49 in 1 : vector<8x64xf32>, vector<8x64xf32> -> vector<8x128xf32>
    %51 = arith.truncf %50 : vector<8x128xf32> to vector<8x128xbf16>
    %cst_30 = arith.constant dense<0.000000e+00> : vector<8x8xf32>
    %52 = tpu.matmul %51, %35, %cst_30 {dimension_numbers = #tpu.dot_dimension_numbers<[1], [1], [0], [0], [0, 0, 1, 0], [], []>} : vector<8x128xbf16>, vector<8x128xbf16>, vector<8x8xf32> -> vector<8x8xf32>
    %cst_31 = arith.constant 0.0883883461 : f32
    %53 = vector.broadcast %cst_31 : f32 to vector<8x8xf32>
    %54 = arith.mulf %52, %53 : vector<8x8xf32>
    %cst_32 = arith.constant 2.000000e-02 : f32
    %55 = vector.broadcast %cst_32 : f32 to vector<8x8xf32>
    %56 = arith.mulf %54, %55 : vector<8x8xf32>
    %57 = math.tanh %56 : vector<8x8xf32>
    %cst_33 = arith.constant 5.000000e+01 : f32
    %58 = vector.broadcast %cst_33 : f32 to vector<8x8xf32>
    %59 = arith.mulf %58, %57 : vector<8x8xf32>
    %60 = arith.addf %59, %21 : vector<8x8xf32>
    %cst_34 = arith.constant dense<0xFF800000> : vector<8xf32>
    %61 = vector.multi_reduction <maximumf>, %60, %cst_34 [1] : vector<8x8xf32> to vector<8xf32>
    %62 = vector.shape_cast %61 : vector<8xf32> to vector<8x1xf32>
    %63 = vector.broadcast %62 : vector<8x1xf32> to vector<8x8xf32>
    %64 = arith.subf %60, %63 : vector<8x8xf32>
    %65 = math.exp %64 : vector<8x8xf32>
    %cst_35 = arith.constant dense<0.000000e+00> : vector<8xf32>
    %66 = vector.multi_reduction <add>, %65, %cst_35 [1] : vector<8x8xf32> to vector<8xf32>
    %67 = vector.shape_cast %66 : vector<8xf32> to vector<8x1xf32>
    %68 = tpu.reciprocal %67 {approx = true} : vector<8x1xf32> -> vector<8x1xf32>
    %69 = vector.broadcast %68 : vector<8x1xf32> to vector<8x8xf32>
    %70 = arith.mulf %65, %69 : vector<8x8xf32>
    %71 = arith.truncf %70 : vector<8x8xf32> to vector<8x8xbf16>
    %cst_36 = arith.constant dense<0.000000e+00> : vector<8x128xf32>
    %72 = tpu.matmul %71, %37, %cst_36 {dimension_numbers = #tpu.dot_dimension_numbers<[1], [0], [0], [1], [0, 0, 1, 1], [], []>} : vector<8x8xbf16>, vector<8x128xbf16>, vector<8x128xf32> -> vector<8x128xf32>
    %73 = arith.truncf %72 : vector<8x128xf32> to vector<8x128xbf16>
    %c0_37 = arith.constant 0 : index
    %c0_38 = arith.constant 0 : index
    %c0_39 = arith.constant 0 : index
    %74 = vector.load %arg9[%c0_37, %c0_38, %c0_39] : memref<1x8x256xbf16, #tpu.memory_space<vmem>>, vector<1x8x128xbf16>
    %75 = vector.shape_cast %74 : vector<1x8x128xbf16> to vector<8x128xbf16>
    %76 = vector.shape_cast %73 : vector<8x128xbf16> to vector<1x8x128xbf16>
    tpu.vector_store %arg9[%c0_37, %c0_38, %c0_39], %76 {strides = array<i32>} : memref<1x8x256xbf16, #tpu.memory_space<vmem>>, vector<1x8x128xbf16>,
    %c0_40 = arith.constant 0 : index
    %c0_41 = arith.constant 0 : index
    %c128 = arith.constant 128 : index
    %77 = vector.load %arg2[%c0_40, %c0_41, %c128] : memref<1x8x256xbf16, #tpu.memory_space<vmem>>, vector<1x8x64xbf16>
    %78 = vector.shape_cast %77 : vector<1x8x64xbf16> to vector<8x64xbf16>
    %79 = arith.extf %78 : vector<8x64xbf16> to vector<8x64xf32>
    %c0_42 = arith.constant 0 : index
    %c0_43 = arith.constant 0 : index
    %c192 = arith.constant 192 : index
    %80 = vector.load %arg2[%c0_42, %c0_43, %c192] : memref<1x8x256xbf16, #tpu.memory_space<vmem>>, vector<1x8x64xbf16>
    %81 = vector.shape_cast %80 : vector<1x8x64xbf16> to vector<8x64xbf16>
    %82 = arith.extf %81 : vector<8x64xbf16> to vector<8x64xf32>
    %83 = arith.mulf %79, %1 : vector<8x64xf32>
    %84 = arith.mulf %82, %3 : vector<8x64xf32>
    %85 = arith.subf %83, %84 : vector<8x64xf32>
    %86 = arith.mulf %82, %1 : vector<8x64xf32>
    %87 = arith.mulf %79, %3 : vector<8x64xf32>
    %88 = arith.addf %86, %87 : vector<8x64xf32>
    %89 = tpu.concatenate %85, %88 in 1 : vector<8x64xf32>, vector<8x64xf32> -> vector<8x128xf32>
    %90 = arith.truncf %89 : vector<8x128xf32> to vector<8x128xbf16>
    %cst_44 = arith.constant dense<0.000000e+00> : vector<8x8xf32>
    %91 = tpu.matmul %90, %35, %cst_44 {dimension_numbers = #tpu.dot_dimension_numbers<[1], [1], [0], [0], [0, 0, 1, 0], [], []>} : vector<8x128xbf16>, vector<8x128xbf16>, vector<8x8xf32> -> vector<8x8xf32>
    %cst_45 = arith.constant 0.0883883461 : f32
    %92 = vector.broadcast %cst_45 : f32 to vector<8x8xf32>
    %93 = arith.mulf %91, %92 : vector<8x8xf32>
    %cst_46 = arith.constant 2.000000e-02 : f32
    %94 = vector.broadcast %cst_46 : f32 to vector<8x8xf32>
    %95 = arith.mulf %93, %94 : vector<8x8xf32>
    %96 = math.tanh %95 : vector<8x8xf32>
    %cst_47 = arith.constant 5.000000e+01 : f32
    %97 = vector.broadcast %cst_47 : f32 to vector<8x8xf32>
    %98 = arith.mulf %97, %96 : vector<8x8xf32>
    %99 = arith.addf %98, %21 : vector<8x8xf32>
    %cst_48 = arith.constant dense<0xFF800000> : vector<8xf32>
    %100 = vector.multi_reduction <maximumf>, %99, %cst_48 [1] : vector<8x8xf32> to vector<8xf32>
    %101 = vector.shape_cast %100 : vector<8xf32> to vector<8x1xf32>
    %102 = vector.broadcast %101 : vector<8x1xf32> to vector<8x8xf32>
    %103 = arith.subf %99, %102 : vector<8x8xf32>
    %104 = math.exp %103 : vector<8x8xf32>
    %cst_49 = arith.constant dense<0.000000e+00> : vector<8xf32>
    %105 = vector.multi_reduction <add>, %104, %cst_49 [1] : vector<8x8xf32> to vector<8xf32>
    %106 = vector.shape_cast %105 : vector<8xf32> to vector<8x1xf32>
    %107 = tpu.reciprocal %106 {approx = true} : vector<8x1xf32> -> vector<8x1xf32>
    %108 = vector.broadcast %107 : vector<8x1xf32> to vector<8x8xf32>
    %109 = arith.mulf %104, %108 : vector<8x8xf32>
    %110 = arith.truncf %109 : vector<8x8xf32> to vector<8x8xbf16>
    %cst_50 = arith.constant dense<0.000000e+00> : vector<8x128xf32>
    %111 = tpu.matmul %110, %37, %cst_50 {dimension_numbers = #tpu.dot_dimension_numbers<[1], [0], [0], [1], [0, 0, 1, 1], [], []>} : vector<8x8xbf16>, vector<8x128xbf16>, vector<8x128xf32> -> vector<8x128xf32>
    %112 = arith.truncf %111 : vector<8x128xf32> to vector<8x128xbf16>
    %c0_51 = arith.constant 0 : index
    %c0_52 = arith.constant 0 : index
    %c128_53 = arith.constant 128 : index
    %113 = vector.load %arg9[%c0_51, %c0_52, %c128_53] : memref<1x8x256xbf16, #tpu.memory_space<vmem>>, vector<1x8x128xbf16>
    %114 = vector.shape_cast %113 : vector<1x8x128xbf16> to vector<8x128xbf16>
    %115 = vector.shape_cast %112 : vector<8x128xbf16> to vector<1x8x128xbf16>
    tpu.vector_store %arg9[%c0_51, %c0_52, %c128_53], %115 {strides = array<i32>} : memref<1x8x256xbf16, #tpu.memory_space<vmem>>, vector<1x8x128xbf16>,
    return
  }
  func.func @transform_0(%arg0: i32, %arg1: i32) -> (i32, i32, i32) {
    %c0_i32 = arith.constant 0 : i32
    %c0_i32_0 = arith.constant 0 : i32
    return %arg0, %c0_i32, %arg1 : i32, i32, i32
  }
  func.func @transform_1(%arg0: i32, %arg1: i32) -> (i32, i32, i32) {
    %c2_i32 = arith.constant 2 : i32
    %0 = arith.addi %c2_i32, %arg1 : i32
    %c0_i32 = arith.constant 0 : i32
    %c0_i32_0 = arith.constant 0 : i32
    return %arg0, %c0_i32, %0 : i32, i32, i32
  }
  func.func @transform_2(%arg0: i32, %arg1: i32) -> (i32, i32, i32) {
    %c3_i32 = arith.constant 3 : i32
    %0 = arith.addi %c3_i32, %arg1 : i32
    %c0_i32 = arith.constant 0 : i32
    %c0_i32_0 = arith.constant 0 : i32
    return %arg0, %c0_i32, %0 : i32, i32, i32
  }
  func.func @transform_3(%arg0: i32, %arg1: i32) -> (i32, i32, i32) {
    %c0_i32 = arith.constant 0 : i32
    %c0_i32_0 = arith.constant 0 : i32
    %c0_i32_1 = arith.constant 0 : i32
    return %arg0, %c0_i32, %c0_i32_0 : i32, i32, i32
  }
  func.func @transform_4(%arg0: i32, %arg1: i32) -> (i32, i32, i32) {
    %c0_i32 = arith.constant 0 : i32
    %c0_i32_0 = arith.constant 0 : i32
    %c0_i32_1 = arith.constant 0 : i32
    return %arg0, %c0_i32, %c0_i32_0 : i32, i32, i32
  }
  func.func @transform_5(%arg0: i32, %arg1: i32) -> (i32, i32, i32) {
    %c0_i32 = arith.constant 0 : i32
    %c0_i32_0 = arith.constant 0 : i32
    %c0_i32_1 = arith.constant 0 : i32
    return %arg0, %c0_i32, %c0_i32_0 : i32, i32, i32
  }
  func.func @transform_6(%arg0: i32, %arg1: i32) -> i32 {
    %c0_i32 = arith.constant 0 : i32
    %c0_i32_0 = arith.constant 0 : i32
    return %c0_i32 : i32
  }
  func.func @transform_7(%arg0: i32, %arg1: i32) -> (i32, i32, i32) {
    %c0_i32 = arith.constant 0 : i32
    %c0_i32_0 = arith.constant 0 : i32
    return %arg0, %c0_i32, %arg1 : i32, i32, i32
  }
}

module attributes {stable_mosaic.version = 11 : i64} {
  func.func @_matmul_norm_res_kernel(%arg0: i32, %arg1: memref<16x256xbf16, #tpu.memory_space<vmem>>, %arg2: memref<256x256xbf16, #tpu.memory_space<vmem>>, %arg3: memref<1x256xf32, #tpu.memory_space<vmem>>, %arg4: memref<16x256xf32, #tpu.memory_space<vmem>>, %arg5: memref<16x256xf32, #tpu.memory_space<vmem>>) attributes {dimension_semantics = [#tpu.dimension_semantics<parallel>], iteration_bounds = array<i64: 1>, scalar_prefetch = 0 : i64, scratch_operands = 0 : i64, tpu.core_type = #tpu.core_type<tc>, window_params = [{transform_indices = @transform_0, window_bounds = array<i64: 16, 256>}, {pipeline_mode = #tpu.pipeline_mode<synchronous>, transform_indices = @transform_1, window_bounds = array<i64: 256, 256>}, {pipeline_mode = #tpu.pipeline_mode<synchronous>, transform_indices = @transform_2, window_bounds = array<i64: 1, 256>}, {transform_indices = @transform_3, window_bounds = array<i64: 16, 256>}, {transform_indices = @transform_4, window_bounds = array<i64: 16, 256>}]} {
    %c0 = arith.constant 0 : index
    %c0_0 = arith.constant 0 : index
    %0 = vector.load %arg1[%c0, %c0_0] : memref<16x256xbf16, #tpu.memory_space<vmem>>, vector<16x256xbf16>
    %c0_1 = arith.constant 0 : index
    %c0_2 = arith.constant 0 : index
    %1 = vector.load %arg2[%c0_1, %c0_2] : memref<256x256xbf16, #tpu.memory_space<vmem>>, vector<256x256xbf16>
    %cst = arith.constant dense<0.000000e+00> : vector<16x256xf32>
    %2 = tpu.matmul %0, %1, %cst {dimension_numbers = #tpu.dot_dimension_numbers<[1], [0], [0], [1], [0, 0, 1, 1], [], []>} : vector<16x256xbf16>, vector<256x256xbf16>, vector<16x256xf32> -> vector<16x256xf32>
    %3 = arith.mulf %2, %2 : vector<16x256xf32>
    %cst_3 = arith.constant dense<0.000000e+00> : vector<16xf32>
    %4 = vector.multi_reduction <add>, %3, %cst_3 [1] : vector<16x256xf32> to vector<16xf32>
    %5 = vector.shape_cast %4 : vector<16xf32> to vector<16x1xf32>
    %cst_4 = arith.constant 2.560000e+02 : f32
    %6 = vector.broadcast %cst_4 : f32 to vector<16x1xf32>
    %7 = arith.divf %5, %6 : vector<16x1xf32>
    %cst_5 = arith.constant 9.99999997E-7 : f32
    %8 = vector.broadcast %cst_5 : f32 to vector<16x1xf32>
    %9 = arith.addf %7, %8 : vector<16x1xf32>
    %10 = math.rsqrt %9 : vector<16x1xf32>
    %11 = vector.broadcast %10 : vector<16x1xf32> to vector<16x256xf32>
    %12 = arith.mulf %2, %11 : vector<16x256xf32>
    %c0_6 = arith.constant 0 : index
    %c0_7 = arith.constant 0 : index
    %13 = vector.load %arg3[%c0_6, %c0_7] : memref<1x256xf32, #tpu.memory_space<vmem>>, vector<1x256xf32>
    %cst_8 = arith.constant 1.000000e+00 : f32
    %14 = vector.broadcast %cst_8 : f32 to vector<1x256xf32>
    %15 = arith.addf %14, %13 : vector<1x256xf32>
    %16 = vector.broadcast %15 : vector<1x256xf32> to vector<16x256xf32>
    %17 = arith.mulf %12, %16 : vector<16x256xf32>
    %c0_9 = arith.constant 0 : index
    %c0_10 = arith.constant 0 : index
    %18 = vector.load %arg4[%c0_9, %c0_10] : memref<16x256xf32, #tpu.memory_space<vmem>>, vector<16x256xf32>
    %19 = arith.addf %18, %17 : vector<16x256xf32>
    %c0_11 = arith.constant 0 : index
    %c0_12 = arith.constant 0 : index
    %20 = vector.load %arg5[%c0_11, %c0_12] : memref<16x256xf32, #tpu.memory_space<vmem>>, vector<16x256xf32>
    tpu.vector_store %arg5[%c0_11, %c0_12], %19 {strides = array<i32>} : memref<16x256xf32, #tpu.memory_space<vmem>>, vector<16x256xf32>,
    return
  }
  func.func @transform_0(%arg0: i32) -> (i32, i32) {
    %c0_i32 = arith.constant 0 : i32
    %c0_i32_0 = arith.constant 0 : i32
    return %arg0, %c0_i32 : i32, i32
  }
  func.func @transform_1(%arg0: i32) -> (i32, i32) {
    %c0_i32 = arith.constant 0 : i32
    %c0_i32_0 = arith.constant 0 : i32
    %c0_i32_1 = arith.constant 0 : i32
    return %c0_i32, %c0_i32_0 : i32, i32
  }
  func.func @transform_2(%arg0: i32) -> (i32, i32) {
    %c0_i32 = arith.constant 0 : i32
    %c0_i32_0 = arith.constant 0 : i32
    %c0_i32_1 = arith.constant 0 : i32
    return %c0_i32, %c0_i32_0 : i32, i32
  }
  func.func @transform_3(%arg0: i32) -> (i32, i32) {
    %c0_i32 = arith.constant 0 : i32
    %c0_i32_0 = arith.constant 0 : i32
    return %arg0, %c0_i32 : i32, i32
  }
  func.func @transform_4(%arg0: i32) -> (i32, i32) {
    %c0_i32 = arith.constant 0 : i32
    %c0_i32_0 = arith.constant 0 : i32
    return %arg0, %c0_i32 : i32, i32
  }
}

module attributes {stable_mosaic.version = 11 : i64} {
  func.func @_rmsnorm_kernel(%arg0: i32, %arg1: memref<16x256xf32, #tpu.memory_space<vmem>>, %arg2: memref<1x256xf32, #tpu.memory_space<vmem>>, %arg3: memref<16x256xf32, #tpu.memory_space<vmem>>) attributes {dimension_semantics = [#tpu.dimension_semantics<parallel>], iteration_bounds = array<i64: 1>, scalar_prefetch = 0 : i64, scratch_operands = 0 : i64, tpu.core_type = #tpu.core_type<tc>, window_params = [{transform_indices = @transform_0, window_bounds = array<i64: 16, 256>}, {pipeline_mode = #tpu.pipeline_mode<synchronous>, transform_indices = @transform_1, window_bounds = array<i64: 1, 256>}, {transform_indices = @transform_2, window_bounds = array<i64: 16, 256>}]} {
    %c0 = arith.constant 0 : index
    %c0_0 = arith.constant 0 : index
    %0 = vector.load %arg1[%c0, %c0_0] : memref<16x256xf32, #tpu.memory_space<vmem>>, vector<16x256xf32>
    %1 = arith.mulf %0, %0 : vector<16x256xf32>
    %cst = arith.constant dense<0.000000e+00> : vector<16xf32>
    %2 = vector.multi_reduction <add>, %1, %cst [1] : vector<16x256xf32> to vector<16xf32>
    %3 = vector.shape_cast %2 : vector<16xf32> to vector<16x1xf32>
    %cst_1 = arith.constant 2.560000e+02 : f32
    %4 = vector.broadcast %cst_1 : f32 to vector<16x1xf32>
    %5 = arith.divf %3, %4 : vector<16x1xf32>
    %cst_2 = arith.constant 9.99999997E-7 : f32
    %6 = vector.broadcast %cst_2 : f32 to vector<16x1xf32>
    %7 = arith.addf %5, %6 : vector<16x1xf32>
    %8 = math.rsqrt %7 : vector<16x1xf32>
    %9 = vector.broadcast %8 : vector<16x1xf32> to vector<16x256xf32>
    %10 = arith.mulf %0, %9 : vector<16x256xf32>
    %c0_3 = arith.constant 0 : index
    %c0_4 = arith.constant 0 : index
    %11 = vector.load %arg2[%c0_3, %c0_4] : memref<1x256xf32, #tpu.memory_space<vmem>>, vector<1x256xf32>
    %cst_5 = arith.constant 1.000000e+00 : f32
    %12 = vector.broadcast %cst_5 : f32 to vector<1x256xf32>
    %13 = arith.addf %12, %11 : vector<1x256xf32>
    %14 = vector.broadcast %13 : vector<1x256xf32> to vector<16x256xf32>
    %15 = arith.mulf %10, %14 : vector<16x256xf32>
    %c0_6 = arith.constant 0 : index
    %c0_7 = arith.constant 0 : index
    %16 = vector.load %arg3[%c0_6, %c0_7] : memref<16x256xf32, #tpu.memory_space<vmem>>, vector<16x256xf32>
    tpu.vector_store %arg3[%c0_6, %c0_7], %15 {strides = array<i32>} : memref<16x256xf32, #tpu.memory_space<vmem>>, vector<16x256xf32>,
    return
  }
  func.func @transform_0(%arg0: i32) -> (i32, i32) {
    %c0_i32 = arith.constant 0 : i32
    %c0_i32_0 = arith.constant 0 : i32
    return %arg0, %c0_i32 : i32, i32
  }
  func.func @transform_1(%arg0: i32) -> (i32, i32) {
    %c0_i32 = arith.constant 0 : i32
    %c0_i32_0 = arith.constant 0 : i32
    %c0_i32_1 = arith.constant 0 : i32
    return %c0_i32, %c0_i32_0 : i32, i32
  }
  func.func @transform_2(%arg0: i32) -> (i32, i32) {
    %c0_i32 = arith.constant 0 : i32
    %c0_i32_0 = arith.constant 0 : i32
    return %arg0, %c0_i32 : i32, i32
  }
}

module attributes {stable_mosaic.version = 11 : i64} {
  func.func @_mlp_kernel(%arg0: i32, %arg1: i32, %arg2: memref<16x256xf32, #tpu.memory_space<vmem>>, %arg3: memref<1x256xf32, #tpu.memory_space<vmem>>, %arg4: memref<256x256xbf16, #tpu.memory_space<vmem>>, %arg5: memref<256x256xbf16, #tpu.memory_space<vmem>>, %arg6: memref<256x256xbf16, #tpu.memory_space<vmem>>, %arg7: memref<1x256xf32, #tpu.memory_space<vmem>>, %arg8: memref<16x256xf32, #tpu.memory_space<vmem>>, %arg9: memref<16x256xbf16, #tpu.memory_space<vmem>>, %arg10: memref<16x256xf32, #tpu.memory_space<vmem>>) attributes {dimension_semantics = [#tpu.dimension_semantics<parallel>, #tpu.dimension_semantics<arbitrary>], iteration_bounds = array<i64: 1, 2>, scalar_prefetch = 0 : i64, scratch_operands = 2 : i64, tpu.core_type = #tpu.core_type<tc>, window_params = [{transform_indices = @transform_0, window_bounds = array<i64: 16, 256>}, {pipeline_mode = #tpu.pipeline_mode<synchronous>, transform_indices = @transform_1, window_bounds = array<i64: 1, 256>}, {transform_indices = @transform_2, window_bounds = array<i64: 256, 256>}, {transform_indices = @transform_3, window_bounds = array<i64: 256, 256>}, {transform_indices = @transform_4, window_bounds = array<i64: 256, 256>}, {pipeline_mode = #tpu.pipeline_mode<synchronous>, transform_indices = @transform_5, window_bounds = array<i64: 1, 256>}, {transform_indices = @transform_6, window_bounds = array<i64: 16, 256>}]} {
    %c0_i32 = arith.constant 0 : i32
    %0 = arith.cmpi eq, %arg1, %c0_i32 : i32
    %1 = arith.extui %0 : i1 to i32
    %c0_i32_0 = arith.constant 0 : i32
    %2 = arith.cmpi ne, %1, %c0_i32_0 : i32
    scf.if %2 {
      %c0_31 = arith.constant 0 : index
      %c0_32 = arith.constant 0 : index
      %59 = vector.load %arg2[%c0_31, %c0_32] : memref<16x256xf32, #tpu.memory_space<vmem>>, vector<16x256xf32>
      %60 = arith.mulf %59, %59 : vector<16x256xf32>
      %cst_33 = arith.constant dense<0.000000e+00> : vector<16xf32>
      %61 = vector.multi_reduction <add>, %60, %cst_33 [1] : vector<16x256xf32> to vector<16xf32>
      %62 = vector.shape_cast %61 : vector<16xf32> to vector<16x1xf32>
      %cst_34 = arith.constant 2.560000e+02 : f32
      %63 = vector.broadcast %cst_34 : f32 to vector<16x1xf32>
      %64 = arith.divf %62, %63 : vector<16x1xf32>
      %cst_35 = arith.constant 9.99999997E-7 : f32
      %65 = vector.broadcast %cst_35 : f32 to vector<16x1xf32>
      %66 = arith.addf %64, %65 : vector<16x1xf32>
      %67 = math.rsqrt %66 : vector<16x1xf32>
      %68 = vector.broadcast %67 : vector<16x1xf32> to vector<16x256xf32>
      %69 = arith.mulf %59, %68 : vector<16x256xf32>
      %c0_36 = arith.constant 0 : index
      %c0_37 = arith.constant 0 : index
      %70 = vector.load %arg3[%c0_36, %c0_37] : memref<1x256xf32, #tpu.memory_space<vmem>>, vector<1x256xf32>
      %cst_38 = arith.constant 1.000000e+00 : f32
      %71 = vector.broadcast %cst_38 : f32 to vector<1x256xf32>
      %72 = arith.addf %71, %70 : vector<1x256xf32>
      %73 = vector.broadcast %72 : vector<1x256xf32> to vector<16x256xf32>
      %74 = arith.mulf %69, %73 : vector<16x256xf32>
      %75 = arith.truncf %74 : vector<16x256xf32> to vector<16x256xbf16>
      %c0_39 = arith.constant 0 : index
      %c0_40 = arith.constant 0 : index
      %76 = vector.load %arg9[%c0_39, %c0_40] : memref<16x256xbf16, #tpu.memory_space<vmem>>, vector<16x256xbf16>
      tpu.vector_store %arg9[%c0_39, %c0_40], %75 {strides = array<i32>} : memref<16x256xbf16, #tpu.memory_space<vmem>>, vector<16x256xbf16>,
      %cst_41 = arith.constant 0.000000e+00 : f32
      %77 = vector.broadcast %cst_41 : f32 to vector<16x256xf32>
      %c0_42 = arith.constant 0 : index
      %c0_43 = arith.constant 0 : index
      %78 = vector.load %arg10[%c0_42, %c0_43] : memref<16x256xf32, #tpu.memory_space<vmem>>, vector<16x256xf32>
      tpu.vector_store %arg10[%c0_42, %c0_43], %77 {strides = array<i32>} : memref<16x256xf32, #tpu.memory_space<vmem>>, vector<16x256xf32>,
    } else {
    }
    %c0 = arith.constant 0 : index
    %c0_1 = arith.constant 0 : index
    %3 = vector.load %arg9[%c0, %c0_1] : memref<16x256xbf16, #tpu.memory_space<vmem>>, vector<16x256xbf16>
    %c0_2 = arith.constant 0 : index
    %c0_3 = arith.constant 0 : index
    %4 = vector.load %arg4[%c0_2, %c0_3] : memref<256x256xbf16, #tpu.memory_space<vmem>>, vector<256x256xbf16>
    %cst = arith.constant dense<0.000000e+00> : vector<16x256xf32>
    %5 = tpu.matmul %3, %4, %cst {dimension_numbers = #tpu.dot_dimension_numbers<[1], [0], [0], [1], [0, 0, 1, 1], [], []>} : vector<16x256xbf16>, vector<256x256xbf16>, vector<16x256xf32> -> vector<16x256xf32>
    %c0_4 = arith.constant 0 : index
    %c0_5 = arith.constant 0 : index
    %6 = vector.load %arg5[%c0_4, %c0_5] : memref<256x256xbf16, #tpu.memory_space<vmem>>, vector<256x256xbf16>
    %cst_6 = arith.constant dense<0.000000e+00> : vector<16x256xf32>
    %7 = tpu.matmul %3, %6, %cst_6 {dimension_numbers = #tpu.dot_dimension_numbers<[1], [0], [0], [1], [0, 0, 1, 1], [], []>} : vector<16x256xbf16>, vector<256x256xbf16>, vector<16x256xf32> -> vector<16x256xf32>
    %cst_7 = arith.constant 5.000000e-01 : f32
    %8 = vector.broadcast %cst_7 : f32 to vector<16x256xf32>
    %9 = arith.mulf %8, %5 : vector<16x256xf32>
    %cst_8 = arith.constant 0.707106769 : f32
    %10 = vector.broadcast %cst_8 : f32 to vector<16x256xf32>
    %11 = arith.mulf %5, %10 : vector<16x256xf32>
    %cst_9 = arith.constant 0.000000e+00 : f32
    %12 = vector.broadcast %cst_9 : f32 to vector<16x256xf32>
    %13 = arith.cmpf oge, %11, %12 : vector<16x256xf32>
    %cst_10 = arith.constant 1.000000e+00 : f32
    %cst_11 = arith.constant -1.000000e+00 : f32
    %14 = vector.broadcast %cst_10 : f32 to vector<16x256xf32>
    %15 = vector.broadcast %cst_11 : f32 to vector<16x256xf32>
    %16 = arith.select %13, %14, %15 : vector<16x256xi1>, vector<16x256xf32>
    %17 = math.absf %11 : vector<16x256xf32>
    %cst_12 = arith.constant 0.327591091 : f32
    %18 = vector.broadcast %cst_12 : f32 to vector<16x256xf32>
    %19 = arith.mulf %18, %17 : vector<16x256xf32>
    %cst_13 = arith.constant 1.000000e+00 : f32
    %20 = vector.broadcast %cst_13 : f32 to vector<16x256xf32>
    %21 = arith.addf %20, %19 : vector<16x256xf32>
    %cst_14 = arith.constant 1.000000e+00 : f32
    %22 = vector.broadcast %cst_14 : f32 to vector<16x256xf32>
    %23 = arith.divf %22, %21 : vector<16x256xf32>
    %cst_15 = arith.constant 1.06140542 : f32
    %24 = vector.broadcast %cst_15 : f32 to vector<16x256xf32>
    %25 = arith.mulf %24, %23 : vector<16x256xf32>
    %cst_16 = arith.constant -1.45315206 : f32
    %26 = vector.broadcast %cst_16 : f32 to vector<16x256xf32>
    %27 = arith.addf %25, %26 : vector<16x256xf32>
    %28 = arith.mulf %27, %23 : vector<16x256xf32>
    %cst_17 = arith.constant 1.42141378 : f32
    %29 = vector.broadcast %cst_17 : f32 to vector<16x256xf32>
    %30 = arith.addf %28, %29 : vector<16x256xf32>
    %31 = arith.mulf %30, %23 : vector<16x256xf32>
    %cst_18 = arith.constant -0.284496725 : f32
    %32 = vector.broadcast %cst_18 : f32 to vector<16x256xf32>
    %33 = arith.addf %31, %32 : vector<16x256xf32>
    %34 = arith.mulf %33, %23 : vector<16x256xf32>
    %cst_19 = arith.constant 0.254829586 : f32
    %35 = vector.broadcast %cst_19 : f32 to vector<16x256xf32>
    %36 = arith.addf %34, %35 : vector<16x256xf32>
    %37 = arith.mulf %36, %23 : vector<16x256xf32>
    %cst_20 = arith.constant 0.000000e+00 : f32
    %38 = vector.broadcast %cst_20 : f32 to vector<16x256xf32>
    %39 = arith.subf %38, %17 : vector<16x256xf32>
    %40 = arith.mulf %39, %17 : vector<16x256xf32>
    %41 = math.exp %40 : vector<16x256xf32>
    %42 = arith.mulf %37, %41 : vector<16x256xf32>
    %cst_21 = arith.constant 1.000000e+00 : f32
    %43 = vector.broadcast %cst_21 : f32 to vector<16x256xf32>
    %44 = arith.subf %43, %42 : vector<16x256xf32>
    %45 = arith.mulf %16, %44 : vector<16x256xf32>
    %cst_22 = arith.constant 1.000000e+00 : f32
    %46 = vector.broadcast %cst_22 : f32 to vector<16x256xf32>
    %47 = arith.addf %46, %45 : vector<16x256xf32>
    %48 = arith.mulf %9, %47 : vector<16x256xf32>
    %49 = arith.mulf %48, %7 : vector<16x256xf32>
    %50 = arith.truncf %49 : vector<16x256xf32> to vector<16x256xbf16>
    %c0_23 = arith.constant 0 : index
    %c0_24 = arith.constant 0 : index
    %51 = vector.load %arg10[%c0_23, %c0_24] : memref<16x256xf32, #tpu.memory_space<vmem>>, vector<16x256xf32>
    %c0_25 = arith.constant 0 : index
    %c0_26 = arith.constant 0 : index
    %52 = vector.load %arg6[%c0_25, %c0_26] : memref<256x256xbf16, #tpu.memory_space<vmem>>, vector<256x256xbf16>
    %cst_27 = arith.constant dense<0.000000e+00> : vector<16x256xf32>
    %53 = tpu.matmul %50, %52, %cst_27 {dimension_numbers = #tpu.dot_dimension_numbers<[1], [0], [0], [1], [0, 0, 1, 1], [], []>} : vector<16x256xbf16>, vector<256x256xbf16>, vector<16x256xf32> -> vector<16x256xf32>
    %54 = arith.addf %51, %53 : vector<16x256xf32>
    %c0_28 = arith.constant 0 : index
    %c0_29 = arith.constant 0 : index
    %55 = vector.load %arg10[%c0_28, %c0_29] : memref<16x256xf32, #tpu.memory_space<vmem>>, vector<16x256xf32>
    tpu.vector_store %arg10[%c0_28, %c0_29], %54 {strides = array<i32>} : memref<16x256xf32, #tpu.memory_space<vmem>>, vector<16x256xf32>,
    %c1_i32 = arith.constant 1 : i32
    %56 = arith.cmpi eq, %arg1, %c1_i32 : i32
    %57 = arith.extui %56 : i1 to i32
    %c0_i32_30 = arith.constant 0 : i32
    %58 = arith.cmpi ne, %57, %c0_i32_30 : i32
    scf.if %58 {
      %c0_31 = arith.constant 0 : index
      %c0_32 = arith.constant 0 : index
      %59 = vector.load %arg10[%c0_31, %c0_32] : memref<16x256xf32, #tpu.memory_space<vmem>>, vector<16x256xf32>
      %60 = arith.mulf %59, %59 : vector<16x256xf32>
      %cst_33 = arith.constant dense<0.000000e+00> : vector<16xf32>
      %61 = vector.multi_reduction <add>, %60, %cst_33 [1] : vector<16x256xf32> to vector<16xf32>
      %62 = vector.shape_cast %61 : vector<16xf32> to vector<16x1xf32>
      %cst_34 = arith.constant 2.560000e+02 : f32
      %63 = vector.broadcast %cst_34 : f32 to vector<16x1xf32>
      %64 = arith.divf %62, %63 : vector<16x1xf32>
      %cst_35 = arith.constant 9.99999997E-7 : f32
      %65 = vector.broadcast %cst_35 : f32 to vector<16x1xf32>
      %66 = arith.addf %64, %65 : vector<16x1xf32>
      %67 = math.rsqrt %66 : vector<16x1xf32>
      %68 = vector.broadcast %67 : vector<16x1xf32> to vector<16x256xf32>
      %69 = arith.mulf %59, %68 : vector<16x256xf32>
      %c0_36 = arith.constant 0 : index
      %c0_37 = arith.constant 0 : index
      %70 = vector.load %arg7[%c0_36, %c0_37] : memref<1x256xf32, #tpu.memory_space<vmem>>, vector<1x256xf32>
      %cst_38 = arith.constant 1.000000e+00 : f32
      %71 = vector.broadcast %cst_38 : f32 to vector<1x256xf32>
      %72 = arith.addf %71, %70 : vector<1x256xf32>
      %73 = vector.broadcast %72 : vector<1x256xf32> to vector<16x256xf32>
      %74 = arith.mulf %69, %73 : vector<16x256xf32>
      %c0_39 = arith.constant 0 : index
      %c0_40 = arith.constant 0 : index
      %75 = vector.load %arg2[%c0_39, %c0_40] : memref<16x256xf32, #tpu.memory_space<vmem>>, vector<16x256xf32>
      %76 = arith.addf %75, %74 : vector<16x256xf32>
      %c0_41 = arith.constant 0 : index
      %c0_42 = arith.constant 0 : index
      %77 = vector.load %arg8[%c0_41, %c0_42] : memref<16x256xf32, #tpu.memory_space<vmem>>, vector<16x256xf32>
      tpu.vector_store %arg8[%c0_41, %c0_42], %76 {strides = array<i32>} : memref<16x256xf32, #tpu.memory_space<vmem>>, vector<16x256xf32>,
    } else {
    }
    return
  }
  func.func @transform_0(%arg0: i32, %arg1: i32) -> (i32, i32) {
    %c0_i32 = arith.constant 0 : i32
    %c0_i32_0 = arith.constant 0 : i32
    return %arg0, %c0_i32 : i32, i32
  }
  func.func @transform_1(%arg0: i32, %arg1: i32) -> (i32, i32) {
    %c0_i32 = arith.constant 0 : i32
    %c0_i32_0 = arith.constant 0 : i32
    %c0_i32_1 = arith.constant 0 : i32
    return %c0_i32, %c0_i32_0 : i32, i32
  }
  func.func @transform_2(%arg0: i32, %arg1: i32) -> (i32, i32) {
    %c0_i32 = arith.constant 0 : i32
    %c0_i32_0 = arith.constant 0 : i32
    return %c0_i32, %arg1 : i32, i32
  }
  func.func @transform_3(%arg0: i32, %arg1: i32) -> (i32, i32) {
    %c0_i32 = arith.constant 0 : i32
    %c0_i32_0 = arith.constant 0 : i32
    return %c0_i32, %arg1 : i32, i32
  }
  func.func @transform_4(%arg0: i32, %arg1: i32) -> (i32, i32) {
    %c0_i32 = arith.constant 0 : i32
    %c0_i32_0 = arith.constant 0 : i32
    return %arg1, %c0_i32 : i32, i32
  }
  func.func @transform_5(%arg0: i32, %arg1: i32) -> (i32, i32) {
    %c0_i32 = arith.constant 0 : i32
    %c0_i32_0 = arith.constant 0 : i32
    %c0_i32_1 = arith.constant 0 : i32
    return %c0_i32, %c0_i32_0 : i32, i32
  }
  func.func @transform_6(%arg0: i32, %arg1: i32) -> (i32, i32) {
    %c0_i32 = arith.constant 0 : i32
    %c0_i32_0 = arith.constant 0 : i32
    return %arg0, %c0_i32 : i32, i32
  }
}

</mosaic_0001>

<llo_original>
// kernel: closed_call.26
$region0: #{closed_call.26}
  #allocation0 [shape = 'u32[]', space=smem, size = 0x4, offset = 0x4, fixed_abs, tag = 'smem constant byte address 0x4 - core index']
  #allocation1 [shape = 'u32[72,128]{1,0:T(1,128)}', space=vmem, size = 0x9000, scoped, tag = 'internal scratch']
  %s0 = inlined_call_operand.vmem [shape: f32[16,256], index: 0, kind: input, shape index: {}]
  %s1 = inlined_call_operand.vmem [shape: f32[1,256], index: 1, kind: input, shape index: {}]
  %s2 = inlined_call_operand.vmem [shape: bf16[16,256], index: 2, kind: output, shape index: {}]
  %s3 = sld [smem:[#allocation0]]
  $region18: #{closed_call.26} parent=0
    _
  %s5 = ssub.s32 1, %s3
  %s6 = scalar_select 0, %s5, %s3
  // Predicated region
  $region2: #{closed_call.26} parent=0 // pred_check
    _
  $region3: #{closed_call.26} parent=0 // pred_check_branch
    %8 = sbr.rel (0) target = $region5
  $region4: #{closed_call.26} parent=0 // pred_region
    _
  $region5: #{closed_call.26} parent=0 // pred_fallthru
    _
  // Predicated region
  $region6: #{closed_call.26} parent=0 // pred_check
    _
  $region7: #{closed_call.26} parent=0 // pred_check_branch
    %10 = sbr.rel (0) target = $region9
  $region8: #{closed_call.26} parent=0 // pred_region
    _
  $region9: #{closed_call.26} parent=0 // pred_fallthru
    _
  %v11 = vld [vmem:[%s0] sm:$0xff]
  %v12 = vld [vmem:[%s0 + $0x8] sm:$0xff]
  %v13 = vld [vmem:[%s0 + $0x10] sm:$0xff]
  %v14 = vld [vmem:[%s0 + $0x18] sm:$0xff]
  %v15 = vmul.f32 %v11, %v11
  %v16 = vmul.f32 %v12, %v12
  %v17 = vmul.f32 %v13, %v13
  %v18 = vmul.f32 %v14, %v14
  %v19 = vadd.f32 %v15, %v16
  %20 = vadd.xlane.f32.xlu0 %v19
  %v21 = vpop.xlane.xlu0 %20
  %v22 = vadd.f32 %v17, %v18
  %23 = vadd.xlane.f32.xlu0 %v22
  %v24 = vpop.xlane.xlu0 %23
  %v25 = vrcp.pop 256.0
  %v26 = vmul.f32 256.0, %v25
  %v27 = vsub.f32 1.0, %v26
  %v28 = vmul.f32 %v25, %v27
  %v29 = vadd.f32 %v25, %v28
  %vm30 = vweird.f32 %v25
  %v31 = vsel %vm30, %v25, %v29
  %v32 = vmul.f32 %v21, %v31
  %v33 = vmul.f32 %v24, %v31
  %v34 = vadd.f32 %v32, 1e-06
  %v35 = vadd.f32 %v33, 1e-06
  %v36 = vrsqrt.pop %v34
  %v37 = vmul.f32 %v36, %v34
  %v38 = vmul.f32 %v37, %v36
  %v39 = vmul.f32 0.5, %v38
  %v40 = vsub.f32 1.5, %v39
  %v41 = vmul.f32 %v36, %v40
  %vm42 = vweird.f32 %v34
  %vm43 = vweird.f32 %v36
  %vm44 = vmor %vm42, %vm43
  %v45 = vsel %vm44, %v36, %v41
  %v46 = vrsqrt.pop %v35
  %v47 = vmul.f32 %v46, %v35
  %v48 = vmul.f32 %v47, %v46
  %v49 = vmul.f32 0.5, %v48
  %v50 = vsub.f32 1.5, %v49
  %v51 = vmul.f32 %v46, %v50
  %vm52 = vweird.f32 %v35
  %vm53 = vweird.f32 %v46
  %vm54 = vmor %vm52, %vm53
  %v55 = vsel %vm54, %v46, %v51
  %v56 = vmul.f32 %v11, %v45
  %v57 = vmul.f32 %v12, %v45
  %v58 = vmul.f32 %v13, %v55
  %v59 = vmul.f32 %v14, %v55
  %v60 = vld [vmem:[%s1] sm:$0x3]
  %v61 = vadd.f32 %v60, 1.0
  %v63 = vperm.slane %v61, 0
  %v64 = vperm.slane %v61, 1
  %v67 = vmul.f32 %v56, %v63
  %v68 = vmul.f32 %v57, %v64
  %v69 = vmul.f32 %v58, %v63
  %v70 = vmul.f32 %v59, %v64
  %v71 = vpack.c.bf16 %v68, %v67
  %v72 = vpack.c.bf16 %v70, %v69
  %73 = vst [vmem:[%s2] sm:$0xff] %v71
  %74 = vst [vmem:[%s2 + $0x8] sm:$0xff] %v72
  // Predicated region
  $region10: #{closed_call.26} parent=0 // pred_check
    _
  $region11: #{closed_call.26} parent=0 // pred_check_branch
    %76 = sbr.rel (0) target = $region13
  $region12: #{closed_call.26} parent=0 // pred_region
    _
  $region13: #{closed_call.26} parent=0 // pred_fallthru
    _
  // Predicated region
  $region14: #{closed_call.26} parent=0 // pred_check
    _
  $region15: #{closed_call.26} parent=0 // pred_check_branch
    %78 = sbr.rel (0) target = $region17
  $region16: #{closed_call.26} parent=0 // pred_region
    _
  $region17: #{closed_call.26} parent=0 // pred_fallthru
    _

// kernel: closed_call.27
$region0: #{closed_call.27}
  #allocation0 [shape = 'u32[]', space=smem, size = 0x4, offset = 0x4, fixed_abs, tag = 'smem constant byte address 0x4 - core index']
  #allocation1 [shape = 'u32[72,128]{1,0:T(1,128)}', space=vmem, size = 0x9000, scoped, tag = 'internal scratch']
  %s0 = inlined_call_operand.vmem [shape: bf16[16,256], index: 0, kind: input, shape index: {}]
  %s1 = inlined_call_operand.vmem [shape: bf16[256,512], index: 1, kind: input, shape index: {}]
  %s2 = inlined_call_operand.vmem [shape: bf16[16,512], index: 2, kind: output, shape index: {}]
  %s3 = sld [smem:[#allocation0]]
  $region18: #{closed_call.27} parent=0
    _
  %s5 = ssub.s32 1, %s3
  %s6 = scalar_select 0, %s5, %s3
  // Predicated region
  $region2: #{closed_call.27} parent=0 // pred_check
    _
  $region3: #{closed_call.27} parent=0 // pred_check_branch
    %8 = sbr.rel (0) target = $region5
  $region4: #{closed_call.27} parent=0 // pred_region
    _
  $region5: #{closed_call.27} parent=0 // pred_fallthru
    _
  // Predicated region
  $region6: #{closed_call.27} parent=0 // pred_check
    _
  $region7: #{closed_call.27} parent=0 // pred_check_branch
    %10 = sbr.rel (0) target = $region9
  $region8: #{closed_call.27} parent=0 // pred_region
    _
  $region9: #{closed_call.27} parent=0 // pred_fallthru
    _
  %v11 = vld [vmem:[%s0] sm:$0xff]
  %v12 = vld [vmem:[%s0 + $0x8] sm:$0xff]
  %v13 = vld [vmem:[%s1] sm:$0xff]
  %v14 = vld [vmem:[%s1 + $0x8] sm:$0xff]
  %v15 = vld [vmem:[%s1 + $0x10] sm:$0xff]
  %v16 = vld [vmem:[%s1 + $0x18] sm:$0xff]
  %v17 = vld [vmem:[%s1 + $0x20] sm:$0xff]
  %v18 = vld [vmem:[%s1 + $0x28] sm:$0xff]
  %v19 = vld [vmem:[%s1 + $0x30] sm:$0xff]
  %v20 = vld [vmem:[%s1 + $0x38] sm:$0xff]
  %v21 = vld [vmem:[%s1 + $0x40] sm:$0xff]
  %v22 = vld [vmem:[%s1 + $0x48] sm:$0xff]
  %v23 = vld [vmem:[%s1 + $0x50] sm:$0xff]
  %v24 = vld [vmem:[%s1 + $0x58] sm:$0xff]
  %v25 = vld [vmem:[%s1 + $0x60] sm:$0xff]
  %v26 = vld [vmem:[%s1 + $0x68] sm:$0xff]
  %v27 = vld [vmem:[%s1 + $0x70] sm:$0xff]
  %v28 = vld [vmem:[%s1 + $0x78] sm:$0xff]
  %v29 = vld [vmem:[%s1 + $0x80] sm:$0xff]
  %v30 = vld [vmem:[%s1 + $0x88] sm:$0xff]
  %v31 = vld [vmem:[%s1 + $0x90] sm:$0xff]
  %v32 = vld [vmem:[%s1 + $0x98] sm:$0xff]
  %v33 = vld [vmem:[%s1 + $0xa0] sm:$0xff]
  %v34 = vld [vmem:[%s1 + $0xa8] sm:$0xff]
  %v35 = vld [vmem:[%s1 + $0xb0] sm:$0xff]
  %v36 = vld [vmem:[%s1 + $0xb8] sm:$0xff]
  %v37 = vld [vmem:[%s1 + $0xc0] sm:$0xff]
  %v38 = vld [vmem:[%s1 + $0xc8] sm:$0xff]
  %v39 = vld [vmem:[%s1 + $0xd0] sm:$0xff]
  %v40 = vld [vmem:[%s1 + $0xd8] sm:$0xff]
  %v41 = vld [vmem:[%s1 + $0xe0] sm:$0xff]
  %v42 = vld [vmem:[%s1 + $0xe8] sm:$0xff]
  %v43 = vld [vmem:[%s1 + $0xf0] sm:$0xff]
  %v44 = vld [vmem:[%s1 + $0xf8] sm:$0xff]
  %v45 = vld [vmem:[%s1 + $0x100] sm:$0xff]
  %v46 = vld [vmem:[%s1 + $0x108] sm:$0xff]
  %v47 = vld [vmem:[%s1 + $0x110] sm:$0xff]
  %v48 = vld [vmem:[%s1 + $0x118] sm:$0xff]
  %v49 = vld [vmem:[%s1 + $0x120] sm:$0xff]
  %v50 = vld [vmem:[%s1 + $0x128] sm:$0xff]
  %v51 = vld [vmem:[%s1 + $0x130] sm:$0xff]
  %v52 = vld [vmem:[%s1 + $0x138] sm:$0xff]
  %v53 = vld [vmem:[%s1 + $0x140] sm:$0xff]
  %v54 = vld [vmem:[%s1 + $0x148] sm:$0xff]
  %v55 = vld [vmem:[%s1 + $0x150] sm:$0xff]
  %v56 = vld [vmem:[%s1 + $0x158] sm:$0xff]
  %v57 = vld [vmem:[%s1 + $0x160] sm:$0xff]
  %v58 = vld [vmem:[%s1 + $0x168] sm:$0xff]
  %v59 = vld [vmem:[%s1 + $0x170] sm:$0xff]
  %v60 = vld [vmem:[%s1 + $0x178] sm:$0xff]
  %v61 = vld [vmem:[%s1 + $0x180] sm:$0xff]
  %v62 = vld [vmem:[%s1 + $0x188] sm:$0xff]
  %v63 = vld [vmem:[%s1 + $0x190] sm:$0xff]
  %v64 = vld [vmem:[%s1 + $0x198] sm:$0xff]
  %v65 = vld [vmem:[%s1 + $0x1a0] sm:$0xff]
  %v66 = vld [vmem:[%s1 + $0x1a8] sm:$0xff]
  %v67 = vld [vmem:[%s1 + $0x1b0] sm:$0xff]
  %v68 = vld [vmem:[%s1 + $0x1b8] sm:$0xff]
  %v69 = vld [vmem:[%s1 + $0x1c0] sm:$0xff]
  %v70 = vld [vmem:[%s1 + $0x1c8] sm:$0xff]
  %v71 = vld [vmem:[%s1 + $0x1d0] sm:$0xff]
  %v72 = vld [vmem:[%s1 + $0x1d8] sm:$0xff]
  %v73 = vld [vmem:[%s1 + $0x1e0] sm:$0xff]
  %v74 = vld [vmem:[%s1 + $0x1e8] sm:$0xff]
  %v75 = vld [vmem:[%s1 + $0x1f0] sm:$0xff]
  %v76 = vld [vmem:[%s1 + $0x1f8] sm:$0xff]
  %v79 = vunpack.c.l.b16 %v11
  %v80 = vunpack.c.h.b16 %v11
  %v81 = vunpack.c.l.b16 %v12
  %v82 = vunpack.c.h.b16 %v12
  %v83 = vpack.c.b16 %v81, %v79
  %v84 = vpack.c.b16 %v82, %v80
  %v151 = vunpack.c.l.b16 %v13
  %v152 = vunpack.c.h.b16 %v13
  %v153 = vunpack.c.l.b16 %v14
  %v154 = vunpack.c.h.b16 %v14
  %v155 = vunpack.c.l.b16 %v15
  %v156 = vunpack.c.h.b16 %v15
  %v157 = vunpack.c.l.b16 %v16
  %v158 = vunpack.c.h.b16 %v16
  %v159 = vunpack.c.l.b16 %v17
  %v160 = vunpack.c.h.b16 %v17
  %v161 = vunpack.c.l.b16 %v18
  %v162 = vunpack.c.h.b16 %v18
  %v163 = vunpack.c.l.b16 %v19
  %v164 = vunpack.c.h.b16 %v19
  %v165 = vunpack.c.l.b16 %v20
  %v166 = vunpack.c.h.b16 %v20
  %v167 = vunpack.c.l.b16 %v21
  %v168 = vunpack.c.h.b16 %v21
  %v169 = vunpack.c.l.b16 %v22
  %v170 = vunpack.c.h.b16 %v22
  %v171 = vunpack.c.l.b16 %v23
  %v172 = vunpack.c.h.b16 %v23
  %v173 = vunpack.c.l.b16 %v24
  %v174 = vunpack.c.h.b16 %v24
  %v175 = vunpack.c.l.b16 %v25
  %v176 = vunpack.c.h.b16 %v25
  %v177 = vunpack.c.l.b16 %v26
  %v178 = vunpack.c.h.b16 %v26
  %v179 = vunpack.c.l.b16 %v27
  %v180 = vunpack.c.h.b16 %v27
  %v181 = vunpack.c.l.b16 %v28
  %v182 = vunpack.c.h.b16 %v28
  %v183 = vunpack.c.l.b16 %v29
  %v184 = vunpack.c.h.b16 %v29
  %v185 = vunpack.c.l.b16 %v30
  %v186 = vunpack.c.h.b16 %v30
  %v187 = vunpack.c.l.b16 %v31
  %v188 = vunpack.c.h.b16 %v31
  %v189 = vunpack.c.l.b16 %v32
  %v190 = vunpack.c.h.b16 %v32
  %v191 = vunpack.c.l.b16 %v33
  %v192 = vunpack.c.h.b16 %v33
  %v193 = vunpack.c.l.b16 %v34
  %v194 = vunpack.c.h.b16 %v34
  %v195 = vunpack.c.l.b16 %v35
  %v196 = vunpack.c.h.b16 %v35
  %v197 = vunpack.c.l.b16 %v36
  %v198 = vunpack.c.h.b16 %v36
  %v199 = vunpack.c.l.b16 %v37
  %v200 = vunpack.c.h.b16 %v37
  %v201 = vunpack.c.l.b16 %v38
  %v202 = vunpack.c.h.b16 %v38
  %v203 = vunpack.c.l.b16 %v39
  %v204 = vunpack.c.h.b16 %v39
  %v205 = vunpack.c.l.b16 %v40
  %v206 = vunpack.c.h.b16 %v40
  %v207 = vunpack.c.l.b16 %v41
  %v208 = vunpack.c.h.b16 %v41
  %v209 = vunpack.c.l.b16 %v42
  %v210 = vunpack.c.h.b16 %v42
  %v211 = vunpack.c.l.b16 %v43
  %v212 = vunpack.c.h.b16 %v43
  %v213 = vunpack.c.l.b16 %v44
  %v214 = vunpack.c.h.b16 %v44
  %v215 = vunpack.c.l.b16 %v45
  %v216 = vunpack.c.h.b16 %v45
  %v217 = vunpack.c.l.b16 %v46
  %v218 = vunpack.c.h.b16 %v46
  %v219 = vunpack.c.l.b16 %v47
  %v220 = vunpack.c.h.b16 %v47
  %v221 = vunpack.c.l.b16 %v48
  %v222 = vunpack.c.h.b16 %v48
  %v223 = vunpack.c.l.b16 %v49
  %v224 = vunpack.c.h.b16 %v49
  %v225 = vunpack.c.l.b16 %v50
  %v226 = vunpack.c.h.b16 %v50
  %v227 = vunpack.c.l.b16 %v51
  %v228 = vunpack.c.h.b16 %v51
  %v229 = vunpack.c.l.b16 %v52
  %v230 = vunpack.c.h.b16 %v52
  %v231 = vunpack.c.l.b16 %v53
  %v232 = vunpack.c.h.b16 %v53
  %v233 = vunpack.c.l.b16 %v54
  %v234 = vunpack.c.h.b16 %v54
  %v235 = vunpack.c.l.b16 %v55
  %v236 = vunpack.c.h.b16 %v55
  %v237 = vunpack.c.l.b16 %v56
  %v238 = vunpack.c.h.b16 %v56
  %v239 = vunpack.c.l.b16 %v57
  %v240 = vunpack.c.h.b16 %v57
  %v241 = vunpack.c.l.b16 %v58
  %v242 = vunpack.c.h.b16 %v58
  %v243 = vunpack.c.l.b16 %v59
  %v244 = vunpack.c.h.b16 %v59
  %v245 = vunpack.c.l.b16 %v60
  %v246 = vunpack.c.h.b16 %v60
  %v247 = vunpack.c.l.b16 %v61
  %v248 = vunpack.c.h.b16 %v61
  %v249 = vunpack.c.l.b16 %v62
  %v250 = vunpack.c.h.b16 %v62
  %v251 = vunpack.c.l.b16 %v63
  %v252 = vunpack.c.h.b16 %v63
  %v253 = vunpack.c.l.b16 %v64
  %v254 = vunpack.c.h.b16 %v64
  %v255 = vunpack.c.l.b16 %v65
  %v256 = vunpack.c.h.b16 %v65
  %v257 = vunpack.c.l.b16 %v66
  %v258 = vunpack.c.h.b16 %v66
  %v259 = vunpack.c.l.b16 %v67
  %v260 = vunpack.c.h.b16 %v67
  %v261 = vunpack.c.l.b16 %v68
  %v262 = vunpack.c.h.b16 %v68
  %v263 = vunpack.c.l.b16 %v69
  %v264 = vunpack.c.h.b16 %v69
  %v265 = vunpack.c.l.b16 %v70
  %v266 = vunpack.c.h.b16 %v70
  %v267 = vunpack.c.l.b16 %v71
  %v268 = vunpack.c.h.b16 %v71
  %v269 = vunpack.c.l.b16 %v72
  %v270 = vunpack.c.h.b16 %v72
  %v271 = vunpack.c.l.b16 %v73
  %v272 = vunpack.c.h.b16 %v73
  %v273 = vunpack.c.l.b16 %v74
  %v274 = vunpack.c.h.b16 %v74
  %v275 = vunpack.c.l.b16 %v75
  %v276 = vunpack.c.h.b16 %v75
  %v277 = vunpack.c.l.b16 %v76
  %v278 = vunpack.c.h.b16 %v76
  %v279 = vpack.c.b16 %v155, %v151
  %v280 = vpack.c.b16 %v156, %v152
  %v281 = vpack.c.b16 %v157, %v153
  %v282 = vpack.c.b16 %v158, %v154
  %v283 = vpack.c.b16 %v163, %v159
  %v284 = vpack.c.b16 %v164, %v160
  %v285 = vpack.c.b16 %v165, %v161
  %v286 = vpack.c.b16 %v166, %v162
  %v287 = vpack.c.b16 %v171, %v167
  %v288 = vpack.c.b16 %v172, %v168
  %v289 = vpack.c.b16 %v173, %v169
  %v290 = vpack.c.b16 %v174, %v170
  %v291 = vpack.c.b16 %v179, %v175
  %v292 = vpack.c.b16 %v180, %v176
  %v293 = vpack.c.b16 %v181, %v177
  %v294 = vpack.c.b16 %v182, %v178
  %v295 = vpack.c.b16 %v187, %v183
  %v296 = vpack.c.b16 %v188, %v184
  %v297 = vpack.c.b16 %v189, %v185
  %v298 = vpack.c.b16 %v190, %v186
  %v299 = vpack.c.b16 %v195, %v191
  %v300 = vpack.c.b16 %v196, %v192
  %v301 = vpack.c.b16 %v197, %v193
  %v302 = vpack.c.b16 %v198, %v194
  %v303 = vpack.c.b16 %v203, %v199
  %v304 = vpack.c.b16 %v204, %v200
  %v305 = vpack.c.b16 %v205, %v201
  %v306 = vpack.c.b16 %v206, %v202
  %v307 = vpack.c.b16 %v211, %v207
  %v308 = vpack.c.b16 %v212, %v208
  %v309 = vpack.c.b16 %v213, %v209
  %v310 = vpack.c.b16 %v214, %v210
  %v311 = vpack.c.b16 %v219, %v215
  %v312 = vpack.c.b16 %v220, %v216
  %v313 = vpack.c.b16 %v221, %v217
  %v314 = vpack.c.b16 %v222, %v218
  %v315 = vpack.c.b16 %v227, %v223
  %v316 = vpack.c.b16 %v228, %v224
  %v317 = vpack.c.b16 %v229, %v225
  %v318 = vpack.c.b16 %v230, %v226
  %v319 = vpack.c.b16 %v235, %v231
  %v320 = vpack.c.b16 %v236, %v232
  %v321 = vpack.c.b16 %v237, %v233
  %v322 = vpack.c.b16 %v238, %v234
  %v323 = vpack.c.b16 %v243, %v239
  %v324 = vpack.c.b16 %v244, %v240
  %v325 = vpack.c.b16 %v245, %v241
  %v326 = vpack.c.b16 %v246, %v242
  %v327 = vpack.c.b16 %v251, %v247
  %v328 = vpack.c.b16 %v252, %v248
  %v329 = vpack.c.b16 %v253, %v249
  %v330 = vpack.c.b16 %v254, %v250
  %v331 = vpack.c.b16 %v259, %v255
  %v332 = vpack.c.b16 %v260, %v256
  %v333 = vpack.c.b16 %v261, %v257
  %v334 = vpack.c.b16 %v262, %v258
  %v335 = vpack.c.b16 %v267, %v263
  %v336 = vpack.c.b16 %v268, %v264
  %v337 = vpack.c.b16 %v269, %v265
  %v338 = vpack.c.b16 %v270, %v266
  %v339 = vpack.c.b16 %v275, %v271
  %v340 = vpack.c.b16 %v276, %v272
  %v341 = vpack.c.b16 %v277, %v273
  %v342 = vpack.c.b16 %v278, %v274
  %407 = vmatpush.bf16.msra.mxu0 %v307
  %408 = vmatpush.bf16.msra.mxu0 %v303
  %409 = vmatpush.bf16.msra.mxu0 %v299
  %410 = vmatpush.bf16.msra.mxu0 %v295
  %411 = vmatpush.bf16.msra.mxu0 %v291
  %412 = vmatpush.bf16.msra.mxu0 %v287
  %413 = vmatpush.bf16.msra.mxu0 %v283
  %414 = vmatpush.bf16.msra.mxu0 %v279
  %415 = vmatmul.bf16.gmra.mxu0 %v83
  %v416 = vpop.f32.mrf.mxu0
  %v417 = vadd.f32 0.0, %v416
  %v418 = vpop.f32.mrf.mxu0
  %v419 = vadd.f32 0.0, %v418
  %420 = vdwg.mxu0
  %421 = vmatpush.bf16.msra.mxu0 %v339
  %422 = vmatpush.bf16.msra.mxu0 %v335
  %423 = vmatpush.bf16.msra.mxu0 %v331
  %424 = vmatpush.bf16.msra.mxu0 %v327
  %425 = vmatpush.bf16.msra.mxu0 %v323
  %426 = vmatpush.bf16.msra.mxu0 %v319
  %427 = vmatpush.bf16.msra.mxu0 %v315
  %428 = vmatpush.bf16.msra.mxu0 %v311
  %429 = vmatmul.bf16.gmra.mxu0 %v84
  %v430 = vpop.f32.mrf.mxu0
  %v431 = vadd.f32 %v417, %v430
  %v432 = vpop.f32.mrf.mxu0
  %v433 = vadd.f32 %v419, %v432
  %434 = vdwg.mxu0
  %435 = vmatpush.bf16.msra.mxu0 %v308
  %436 = vmatpush.bf16.msra.mxu0 %v304
  %437 = vmatpush.bf16.msra.mxu0 %v300
  %438 = vmatpush.bf16.msra.mxu0 %v296
  %439 = vmatpush.bf16.msra.mxu0 %v292
  %440 = vmatpush.bf16.msra.mxu0 %v288
  %441 = vmatpush.bf16.msra.mxu0 %v284
  %442 = vmatpush.bf16.msra.mxu0 %v280
  %443 = vmatmul.bf16.gmra.mxu0 %v83
  %v444 = vpop.f32.mrf.mxu0
  %v445 = vadd.f32 0.0, %v444
  %v446 = vpop.f32.mrf.mxu0
  %v447 = vadd.f32 0.0, %v446
  %448 = vdwg.mxu0
  %449 = vmatpush.bf16.msra.mxu0 %v340
  %450 = vmatpush.bf16.msra.mxu0 %v336
  %451 = vmatpush.bf16.msra.mxu0 %v332
  %452 = vmatpush.bf16.msra.mxu0 %v328
  %453 = vmatpush.bf16.msra.mxu0 %v324
  %454 = vmatpush.bf16.msra.mxu0 %v320
  %455 = vmatpush.bf16.msra.mxu0 %v316
  %456 = vmatpush.bf16.msra.mxu0 %v312
  %457 = vmatmul.bf16.gmra.mxu0 %v84
  %v458 = vpop.f32.mrf.mxu0
  %v459 = vadd.f32 %v445, %v458
  %v460 = vpop.f32.mrf.mxu0
  %v461 = vadd.f32 %v447, %v460
  %462 = vdwg.mxu0
  %463 = vmatpush.bf16.msra.mxu0 %v309
  %464 = vmatpush.bf16.msra.mxu0 %v305
  %465 = vmatpush.bf16.msra.mxu0 %v301
  %466 = vmatpush.bf16.msra.mxu0 %v297
  %467 = vmatpush.bf16.msra.mxu0 %v293
  %468 = vmatpush.bf16.msra.mxu0 %v289
  %469 = vmatpush.bf16.msra.mxu0 %v285
  %470 = vmatpush.bf16.msra.mxu0 %v281
  %471 = vmatmul.bf16.gmra.mxu0 %v83
  %v472 = vpop.f32.mrf.mxu0
  %v473 = vadd.f32 0.0, %v472
  %v474 = vpop.f32.mrf.mxu0
  %v475 = vadd.f32 0.0, %v474
  %476 = vdwg.mxu0
  %477 = vmatpush.bf16.msra.mxu0 %v341
  %478 = vmatpush.bf16.msra.mxu0 %v337
  %479 = vmatpush.bf16.msra.mxu0 %v333
  %480 = vmatpush.bf16.msra.mxu0 %v329
  %481 = vmatpush.bf16.msra.mxu0 %v325
  %482 = vmatpush.bf16.msra.mxu0 %v321
  %483 = vmatpush.bf16.msra.mxu0 %v317
  %484 = vmatpush.bf16.msra.mxu0 %v313
  %485 = vmatmul.bf16.gmra.mxu0 %v84
  %v486 = vpop.f32.mrf.mxu0
  %v487 = vadd.f32 %v473, %v486
  %v488 = vpop.f32.mrf.mxu0
  %v489 = vadd.f32 %v475, %v488
  %490 = vdwg.mxu0
  %491 = vmatpush.bf16.msra.mxu0 %v310
  %492 = vmatpush.bf16.msra.mxu0 %v306
  %493 = vmatpush.bf16.msra.mxu0 %v302
  %494 = vmatpush.bf16.msra.mxu0 %v298
  %495 = vmatpush.bf16.msra.mxu0 %v294
  %496 = vmatpush.bf16.msra.mxu0 %v290
  %497 = vmatpush.bf16.msra.mxu0 %v286
  %498 = vmatpush.bf16.msra.mxu0 %v282
  %499 = vmatmul.bf16.gmra.mxu0 %v83
  %v500 = vpop.f32.mrf.mxu0
  %v501 = vadd.f32 0.0, %v500
  %v502 = vpop.f32.mrf.mxu0
  %v503 = vadd.f32 0.0, %v502
  %504 = vdwg.mxu0
  %505 = vmatpush.bf16.msra.mxu0 %v342
  %506 = vmatpush.bf16.msra.mxu0 %v338
  %507 = vmatpush.bf16.msra.mxu0 %v334
  %508 = vmatpush.bf16.msra.mxu0 %v330
  %509 = vmatpush.bf16.msra.mxu0 %v326
  %510 = vmatpush.bf16.msra.mxu0 %v322
  %511 = vmatpush.bf16.msra.mxu0 %v318
  %512 = vmatpush.bf16.msra.mxu0 %v314
  %513 = vmatmul.bf16.gmra.mxu0 %v84
  %v514 = vpop.f32.mrf.mxu0
  %v515 = vadd.f32 %v501, %v514
  %v516 = vpop.f32.mrf.mxu0
  %v517 = vadd.f32 %v503, %v516
  %518 = vdwg.mxu0
  %v519 = vpack.c.bf16 %v459, %v431
  %v520 = vpack.c.bf16 %v515, %v487
  %v521 = vpack.c.bf16 %v461, %v433
  %v522 = vpack.c.bf16 %v517, %v489
  %523 = vst [vmem:[%s2] sm:$0xff] %v519
  %524 = vst [vmem:[%s2 + $0x8] sm:$0xff] %v520
  %525 = vst [vmem:[%s2 + $0x10] sm:$0xff] %v521
  %526 = vst [vmem:[%s2 + $0x18] sm:$0xff] %v522
  // Predicated region
  $region10: #{closed_call.27} parent=0 // pred_check
    _
  $region11: #{closed_call.27} parent=0 // pred_check_branch
    %528 = sbr.rel (0) target = $region13
  $region12: #{closed_call.27} parent=0 // pred_region
    _
  $region13: #{closed_call.27} parent=0 // pred_fallthru
    _
  // Predicated region
  $region14: #{closed_call.27} parent=0 // pred_check
    _
  $region15: #{closed_call.27} parent=0 // pred_check_branch
    %530 = sbr.rel (0) target = $region17
  $region16: #{closed_call.27} parent=0 // pred_region
    _
  $region17: #{closed_call.27} parent=0 // pred_fallthru
    _

// kernel: closed_call.28
$region0: #{closed_call.28}
  #allocation0 [shape = 'u32[]', space=smem, size = 0x4, offset = 0x4, fixed_abs, tag = 'smem constant byte address 0x4 - core index']
  #allocation1 [shape = 'u32[72,128]{1,0:T(1,128)}', space=vmem, size = 0x9000, scoped, tag = 'internal scratch']
  #allocation2 [shape = 'f32[8,8]{1,0:T(8,128)}', space=vmem, size = 0x1000, scoped, tag = 'scratch operand']
  #allocation3 [shape = 's32[1]{0:T(128)S(6)}', space=smem, size = 0x200, scoped, tag = 'scoped memory for closed_call.28']
  %s0 = inlined_call_operand.vmem [shape: bf16[2,8,512], index: 0, kind: input, shape index: {}, may-alias: {0,1,2}]
  %s1 = inlined_call_operand.vmem [shape: bf16[2,8,512], index: 1, kind: input, shape index: {}, may-alias: {0,1,2}]
  %s2 = inlined_call_operand.vmem [shape: bf16[2,8,512], index: 2, kind: input, shape index: {}, may-alias: {0,1,2}]
  %s3 = inlined_call_operand.vmem [shape: f32[2,8,64], index: 3, kind: input, shape index: {}]
  %s4 = inlined_call_operand.vmem [shape: f32[2,8,64], index: 4, kind: input, shape index: {}]
  %s5 = inlined_call_operand.vmem [shape: f32[2,1,8], index: 5, kind: input, shape index: {}]
  %s6 = inlined_call_operand.<no memory space> [shape: s32[1], index: 6, kind: input, shape index: {}]
  %s7 = inlined_call_operand.vmem [shape: bf16[2,8,256], index: 7, kind: output, shape index: {}]
  %s8 = sld [smem:[#allocation0]]
  $region65: #{closed_call.28} parent=0
    _
  %s10 = ssub.s32 1, %s8
  %s11 = scalar_select 0, %s10, %s8
  %12 = sst [smem:[#allocation3]] %s6
  loop: start=0, step=1, limit=4
  $region2: #{closed_call.28} parent=0 // loop_pre_header
    _
  $region3: #{closed_call.28} parent=0 // loop_header
    %s14 = sphi 0, %s18
    %p15 = scmp.ge.s32.totalorder %s14, 4
    %s21 = sphi 0, %s33
    %s22 = sphi 0, %s29
    %s23 = sphi 0, %s21
    %s24 = sphi 0, %s22
    %s25 = sphi 0, %s23
    %s26 = sphi 0, %s24
    %s38 = sphi 0, %s40
    %s41 = sphi 0, %s38
    %s42 = sphi 0, %s41
    %s58 = sphi 0, %s42
    %s68 = sphi 0, %s70
    %s71 = sphi 0, %s68
    %s72 = sphi 0, %s71
    %s88 = sphi 0, %s72
    %s98 = sphi 0, %s100
    %s101 = sphi 0, %s98
    %s102 = sphi 0, %s101
    %s118 = sphi 0, %s102
    %s124 = sphi 0, %s126
    %s127 = sphi 0, %s124
    %s128 = sphi 0, %s127
    %s144 = sphi 0, %s128
    %s150 = sphi 0, %s152
    %s153 = sphi 0, %s150
    %s154 = sphi 0, %s153
    %s170 = sphi 0, %s154
    %s176 = sphi 0, %s178
    %s179 = sphi 0, %s176
    %s180 = sphi 0, %s179
    %s196 = sphi 0, %s180
    %s200 = sphi 0, %s200
    %s202 = sphi 0, %s200
    %s203 = sphi 0, %s202
    %s217 = sphi 0, %s203
    %s225 = sphi 0, %s227
    %s228 = sphi 0, %s225
    %s229 = sphi 0, %s228
    %s245 = sphi 0, %s229
  $region4: #{closed_call.28} parent=0 // loop_header_branch
    %17 = sbr.rel (%p15) target = $region8
  $region5: #{closed_call.28} parent=0 // loop_body
    %s19 = ssub.s32 %s14, 1
    %s20 = ssub.s32 %s14, 2
    %s27 = sadd.s32 1, %s22
    %p28 = scmp.ge.s32.totalorder %s27, 1
    %s29 = scalar_select %p28, 0, %s27
    %s30 = sadd.s32 1, %s21
    %s31 = scalar_select %p28, %s30, %s21
    %p32 = scmp.ge.s32.totalorder %s31, 2
    %s33 = scalar_select %p32, 0, %s31
    %s34 = ssub.s32 %s21, %s33
    %s35 = ssub.s32 %s22, %s29
    %s36 = sor.u32 %s34, %s35
    %p37 = scmp.eq.s32.totalorder %s36, 0
    %s39 = sadd.s32 %s38, 1
    %s40 = scalar_select %p37, %s38, %s39
    %p43 = pneg %p37
    %p44 = scmp.eq.s32.totalorder %s14, 1
    %p45 = por %p43, %p44
    %p46 = scmp.ne.s32.totalorder %s38, %s41
    %p47 = scmp.eq.s32.totalorder %s14, 0
    %p48 = por %p46, %p47
    %p49 = scmp.ne.s32.totalorder %s38, %s41
    %p50 = scmp.eq.s32.totalorder %s19, 1
    %p51 = por %p49, %p50
    %p52 = scmp.ne.s32.totalorder %s41, %s42
    %p53 = scmp.eq.s32.totalorder %s19, 0
    %p54 = por %p52, %p53
    %p55 = scmp.ne.s32.totalorder %s41, %s42
    %p56 = scmp.eq.s32.totalorder %s20, 1
    %p57 = por %p55, %p56
    %p59 = scmp.ne.s32.totalorder %s42, %s58
    %p60 = scmp.eq.s32.totalorder %s20, 0
    %p61 = por %p59, %p60
    %s62 = sadd.s32 %s22, 2
    %s63 = sadd.s32 %s29, 2
    %s64 = ssub.s32 %s21, %s33
    %s65 = ssub.s32 %s62, %s63
    %s66 = sor.u32 %s64, %s65
    %p67 = scmp.eq.s32.totalorder %s66, 0
    %s69 = sadd.s32 %s68, 1
    %s70 = scalar_select %p67, %s68, %s69
    %p73 = pneg %p67
    %p74 = scmp.eq.s32.totalorder %s14, 1
    %p75 = por %p73, %p74
    %p76 = scmp.ne.s32.totalorder %s68, %s71
    %p77 = scmp.eq.s32.totalorder %s14, 0
    %p78 = por %p76, %p77
    %p79 = scmp.ne.s32.totalorder %s68, %s71
    %p80 = scmp.eq.s32.totalorder %s19, 1
    %p81 = por %p79, %p80
    %p82 = scmp.ne.s32.totalorder %s71, %s72
    %p83 = scmp.eq.s32.totalorder %s19, 0
    %p84 = por %p82, %p83
    %p85 = scmp.ne.s32.totalorder %s71, %s72
    %p86 = scmp.eq.s32.totalorder %s20, 1
    %p87 = por %p85, %p86
    %p89 = scmp.ne.s32.totalorder %s72, %s88
    %p90 = scmp.eq.s32.totalorder %s20, 0
    %p91 = por %p89, %p90
    %s92 = sadd.s32 %s22, 3
    %s93 = sadd.s32 %s29, 3
    %s94 = ssub.s32 %s21, %s33
    %s95 = ssub.s32 %s92, %s93
    %s96 = sor.u32 %s94, %s95
    %p97 = scmp.eq.s32.totalorder %s96, 0
    %s99 = sadd.s32 %s98, 1
    %s100 = scalar_select %p97, %s98, %s99
    %p103 = pneg %p97
    %p104 = scmp.eq.s32.totalorder %s14, 1
    %p105 = por %p103, %p104
    %p106 = scmp.ne.s32.totalorder %s98, %s101
    %p107 = scmp.eq.s32.totalorder %s14, 0
    %p108 = por %p106, %p107
    %p109 = scmp.ne.s32.totalorder %s98, %s101
    %p110 = scmp.eq.s32.totalorder %s19, 1
    %p111 = por %p109, %p110
    %p112 = scmp.ne.s32.totalorder %s101, %s102
    %p113 = scmp.eq.s32.totalorder %s19, 0
    %p114 = por %p112, %p113
    %p115 = scmp.ne.s32.totalorder %s101, %s102
    %p116 = scmp.eq.s32.totalorder %s20, 1
    %p117 = por %p115, %p116
    %p119 = scmp.ne.s32.totalorder %s102, %s118
    %p120 = scmp.eq.s32.totalorder %s20, 0
    %p121 = por %p119, %p120
    %s122 = ssub.s32 %s21, %s33
    %p123 = scmp.eq.s32.totalorder %s122, 0
    %s125 = sadd.s32 %s124, 1
    %s126 = scalar_select %p123, %s124, %s125
    %p129 = pneg %p123
    %p130 = scmp.eq.s32.totalorder %s14, 1
    %p131 = por %p129, %p130
    %p132 = scmp.ne.s32.totalorder %s124, %s127
    %p133 = scmp.eq.s32.totalorder %s14, 0
    %p134 = por %p132, %p133
    %p135 = scmp.ne.s32.totalorder %s124, %s127
    %p136 = scmp.eq.s32.totalorder %s19, 1
    %p137 = por %p135, %p136
    %p138 = scmp.ne.s32.totalorder %s127, %s128
    %p139 = scmp.eq.s32.totalorder %s19, 0
    %p140 = por %p138, %p139
    %p141 = scmp.ne.s32.totalorder %s127, %s128
    %p142 = scmp.eq.s32.totalorder %s20, 1
    %p143 = por %p141, %p142
    %p145 = scmp.ne.s32.totalorder %s128, %s144
    %p146 = scmp.eq.s32.totalorder %s20, 0
    %p147 = por %p145, %p146
    %s148 = ssub.s32 %s21, %s33
    %p149 = scmp.eq.s32.totalorder %s148, 0
    %s151 = sadd.s32 %s150, 1
    %s152 = scalar_select %p149, %s150, %s151
    %p155 = pneg %p149
    %p156 = scmp.eq.s32.totalorder %s14, 1
    %p157 = por %p155, %p156
    %p158 = scmp.ne.s32.totalorder %s150, %s153
    %p159 = scmp.eq.s32.totalorder %s14, 0
    %p160 = por %p158, %p159
    %p161 = scmp.ne.s32.totalorder %s150, %s153
    %p162 = scmp.eq.s32.totalorder %s19, 1
    %p163 = por %p161, %p162
    %p164 = scmp.ne.s32.totalorder %s153, %s154
    %p165 = scmp.eq.s32.totalorder %s19, 0
    %p166 = por %p164, %p165
    %p167 = scmp.ne.s32.totalorder %s153, %s154
    %p168 = scmp.eq.s32.totalorder %s20, 1
    %p169 = por %p167, %p168
    %p171 = scmp.ne.s32.totalorder %s154, %s170
    %p172 = scmp.eq.s32.totalorder %s20, 0
    %p173 = por %p171, %p172
    %s174 = ssub.s32 %s21, %s33
    %p175 = scmp.eq.s32.totalorder %s174, 0
    %s177 = sadd.s32 %s176, 1
    %s178 = scalar_select %p175, %s176, %s177
    %p181 = pneg %p175
    %p182 = scmp.eq.s32.totalorder %s14, 1
    %p183 = por %p181, %p182
    %p184 = scmp.ne.s32.totalorder %s176, %s179
    %p185 = scmp.eq.s32.totalorder %s14, 0
    %p186 = por %p184, %p185
    %p187 = scmp.ne.s32.totalorder %s176, %s179
    %p188 = scmp.eq.s32.totalorder %s19, 1
    %p189 = por %p187, %p188
    %p190 = scmp.ne.s32.totalorder %s179, %s180
    %p191 = scmp.eq.s32.totalorder %s19, 0
    %p192 = por %p190, %p191
    %p193 = scmp.ne.s32.totalorder %s179, %s180
    %p194 = scmp.eq.s32.totalorder %s20, 1
    %p195 = por %p193, %p194
    %p197 = scmp.ne.s32.totalorder %s180, %s196
    %p198 = scmp.eq.s32.totalorder %s20, 0
    %p199 = por %p197, %p198
    %s201 = sadd.s32 %s200, 1
    %p204 = scmp.eq.s32.totalorder %s14, 1
    %p205 = scmp.ne.s32.totalorder %s200, %s202
    %p206 = scmp.eq.s32.totalorder %s14, 0
    %p207 = por %p205, %p206
    %p208 = scmp.ne.s32.totalorder %s200, %s202
    %p209 = scmp.eq.s32.totalorder %s19, 1
    %p210 = por %p208, %p209
    %p211 = scmp.ne.s32.totalorder %s202, %s203
    %p212 = scmp.eq.s32.totalorder %s19, 0
    %p213 = por %p211, %p212
    %p214 = scmp.ne.s32.totalorder %s202, %s203
    %p215 = scmp.eq.s32.totalorder %s20, 1
    %p216 = por %p214, %p215
    %p218 = scmp.ne.s32.totalorder %s203, %s217
    %p219 = scmp.eq.s32.totalorder %s20, 0
    %p220 = por %p218, %p219
    %s221 = ssub.s32 %s21, %s33
    %s222 = ssub.s32 %s22, %s29
    %s223 = sor.u32 %s221, %s222
    %p224 = scmp.eq.s32.totalorder %s223, 0
    %s226 = sadd.s32 %s225, 1
    %s227 = scalar_select %p224, %s225, %s226
    %p230 = pneg %p224
    %p231 = scmp.eq.s32.totalorder %s14, 1
    %p232 = por %p230, %p231
    %p233 = scmp.ne.s32.totalorder %s225, %s228
    %p234 = scmp.eq.s32.totalorder %s14, 0
    %p235 = por %p233, %p234
    %p236 = scmp.ne.s32.totalorder %s225, %s228
    %p237 = scmp.eq.s32.totalorder %s19, 1
    %p238 = por %p236, %p237
    %p239 = scmp.ne.s32.totalorder %s228, %s229
    %p240 = scmp.eq.s32.totalorder %s19, 0
    %p241 = por %p239, %p240
    %p242 = scmp.ne.s32.totalorder %s228, %s229
    %p243 = scmp.eq.s32.totalorder %s20, 1
    %p244 = por %p242, %p243
    %p246 = scmp.ne.s32.totalorder %s229, %s245
    %p247 = scmp.eq.s32.totalorder %s20, 0
    %p248 = por %p246, %p247
    %p249 = scmp.le.s32.totalorder 1, %s14
    %p250 = scmp.lt.s32.totalorder %s14, 3
    %p251 = pnand %p249, %p250
    %p252 = pneg %p251
    // Predicated region
    $region9: #{closed_call.28} parent=5 // pred_check
      _
    $region10: #{closed_call.28} parent=5 // pred_check_branch
      %254 = sbr.rel (%p251) target = $region12
    $region11: #{closed_call.28} parent=5 // pred_region
      %s255 = ssub.s32 %s14, 1
      // Predicated region
      $region13: #{closed_call.28} parent=11 // pred_check
        %p256 = pneg %p213
      $region14: #{closed_call.28} parent=11 // pred_check_branch
        %258 = sbr.rel (%p256) target = $region16
      $region15: #{closed_call.28} parent=11 // pred_region
        _
      $region16: #{closed_call.28} parent=11 // pred_fallthru
        _
    $region12: #{closed_call.28} parent=5 // pred_fallthru
      _
    %p259 = scmp.lt.s32.totalorder %s14, 2
    // Predicated region
    $region17: #{closed_call.28} parent=5 // pred_check
      %p260 = pneg %p259
    $region18: #{closed_call.28} parent=5 // pred_check_branch
      %262 = sbr.rel (%p260) target = $region20
    $region19: #{closed_call.28} parent=5 // pred_region
      // Predicated region
      $region21: #{closed_call.28} parent=19 // pred_check
        %p263 = pneg %p48
      $region22: #{closed_call.28} parent=19 // pred_check_branch
        %265 = sbr.rel (%p263) target = $region24
      $region23: #{closed_call.28} parent=19 // pred_region
        %s266 = smul.u32 2, %s22
        %p267 = scmp.lt.s32.totalorder %s21, 1
        %s268 = scalar_select %p267, %s21, 1
        %p269 = scmp.lt.s32.totalorder %s266, 3
        %s270 = scalar_select %p269, %s266, 3
        %s271 = smul.addr %s268, 4
        %s272 = sadd.s32 %s270, %s271
        %s273 = smul.addr %s272, 4
        %s274 = scalar_lea.vmem %s0, %s273
        %s275 = smul.u32 2, %s22
      $region24: #{closed_call.28} parent=19 // pred_fallthru
        _
      // Predicated region
      $region25: #{closed_call.28} parent=19 // pred_check
        %p276 = pneg %p78
      $region26: #{closed_call.28} parent=19 // pred_check_branch
        %278 = sbr.rel (%p276) target = $region28
      $region27: #{closed_call.28} parent=19 // pred_region
        %s279 = sadd.s32 %s22, 2
        %p280 = scmp.lt.s32.totalorder %s21, 1
        %s281 = scalar_select %p280, %s21, 1
        %p282 = scmp.lt.s32.totalorder %s279, 3
        %s283 = scalar_select %p282, %s279, 3
        %s284 = smul.addr %s281, 4
        %s285 = sadd.s32 %s283, %s284
        %s286 = smul.addr %s285, 4
        %s287 = scalar_lea.vmem %s1, %s286
        %s288 = sadd.s32 %s22, 2
      $region28: #{closed_call.28} parent=19 // pred_fallthru
        _
      // Predicated region
      $region29: #{closed_call.28} parent=19 // pred_check
        %p289 = pneg %p108
      $region30: #{closed_call.28} parent=19 // pred_check_branch
        %291 = sbr.rel (%p289) target = $region32
      $region31: #{closed_call.28} parent=19 // pred_region
        %s292 = sadd.s32 %s22, 3
        %p293 = scmp.lt.s32.totalorder %s21, 1
        %s294 = scalar_select %p293, %s21, 1
        %p295 = scmp.lt.s32.totalorder %s292, 3
        %s296 = scalar_select %p295, %s292, 3
        %s297 = smul.addr %s294, 4
        %s298 = sadd.s32 %s296, %s297
        %s299 = smul.addr %s298, 4
        %s300 = scalar_lea.vmem %s2, %s299
        %s301 = sadd.s32 %s22, 3
      $region32: #{closed_call.28} parent=19 // pred_fallthru
        _
      // Predicated region
      $region33: #{closed_call.28} parent=19 // pred_check
        %p302 = pneg %p134
      $region34: #{closed_call.28} parent=19 // pred_check_branch
        %304 = sbr.rel (%p302) target = $region36
      $region35: #{closed_call.28} parent=19 // pred_region
        %p305 = scmp.lt.s32.totalorder %s21, 1
        %s306 = scalar_select %p305, %s21, 1
        %s307 = smul.addr %s306, 8
        %s308 = scalar_lea.vmem %s3, %s307
      $region36: #{closed_call.28} parent=19 // pred_fallthru
        _
      // Predicated region
      $region37: #{closed_call.28} parent=19 // pred_check
        %p309 = pneg %p160
      $region38: #{closed_call.28} parent=19 // pred_check_branch
        %311 = sbr.rel (%p309) target = $region40
      $region39: #{closed_call.28} parent=19 // pred_region
        %p312 = scmp.lt.s32.totalorder %s21, 1
        %s313 = scalar_select %p312, %s21, 1
        %s314 = smul.addr %s313, 8
        %s315 = scalar_lea.vmem %s4, %s314
      $region40: #{closed_call.28} parent=19 // pred_fallthru
        _
      // Predicated region
      $region41: #{closed_call.28} parent=19 // pred_check
        %p316 = pneg %p186
      $region42: #{closed_call.28} parent=19 // pred_check_branch
        %318 = sbr.rel (%p316) target = $region44
      $region43: #{closed_call.28} parent=19 // pred_region
        %p319 = scmp.lt.s32.totalorder %s21, 1
        %s320 = scalar_select %p319, %s21, 1
        %s321 = scalar_lea.vmem %s5, %s320
      $region44: #{closed_call.28} parent=19 // pred_fallthru
        _
    $region20: #{closed_call.28} parent=5 // pred_fallthru
      _
    %p322 = scmp.le.s32.totalorder 1, %s14
    %p323 = scmp.lt.s32.totalorder %s14, 3
    %p324 = pnand %p322, %p323
    %p325 = pneg %p324
    // Predicated region
    $region45: #{closed_call.28} parent=5 // pred_check
      _
    $region46: #{closed_call.28} parent=5 // pred_check_branch
      %327 = sbr.rel (%p324) target = $region48
    $region47: #{closed_call.28} parent=5 // pred_region
      %s328 = ssub.s32 %s14, 1
      %s329 = smul.u32 2, %s24
      %p330 = scmp.lt.s32.totalorder %s23, 1
      %s331 = scalar_select %p330, %s23, 1
      %p332 = scmp.lt.s32.totalorder %s329, 3
      %s333 = scalar_select %p332, %s329, 3
      %s334 = smul.addr %s331, 4
      %s335 = sadd.s32 %s333, %s334
      %s336 = smul.addr %s335, 4
      %s337 = scalar_lea.vmem %s0, %s336
      %p338 = pneg %p54
      %p339 = pneg %p51
      %s340 = sadd.s32 %s24, 2
      %p341 = scmp.lt.s32.totalorder %s23, 1
      %s342 = scalar_select %p341, %s23, 1
      %p343 = scmp.lt.s32.totalorder %s340, 3
      %s344 = scalar_select %p343, %s340, 3
      %s345 = smul.addr %s342, 4
      %s346 = sadd.s32 %s344, %s345
      %s347 = smul.addr %s346, 4
      %s348 = scalar_lea.vmem %s1, %s347
      %p349 = pneg %p84
      %p350 = pneg %p81
      %s351 = sadd.s32 %s24, 3
      %p352 = scmp.lt.s32.totalorder %s23, 1
      %s353 = scalar_select %p352, %s23, 1
      %p354 = scmp.lt.s32.totalorder %s351, 3
      %s355 = scalar_select %p354, %s351, 3
      %s356 = smul.addr %s353, 4
      %s357 = sadd.s32 %s355, %s356
      %s358 = smul.addr %s357, 4
      %s359 = scalar_lea.vmem %s2, %s358
      %p360 = pneg %p114
      %p361 = pneg %p111
      %p362 = scmp.lt.s32.totalorder %s23, 1
      %s363 = scalar_select %p362, %s23, 1
      %s364 = smul.addr %s363, 8
      %s365 = scalar_lea.vmem %s3, %s364
      %p366 = pneg %p140
      %p367 = pneg %p137
      %p368 = scmp.lt.s32.totalorder %s23, 1
      %s369 = scalar_select %p368, %s23, 1
      %s370 = smul.addr %s369, 8
      %s371 = scalar_lea.vmem %s4, %s370
      %p372 = pneg %p166
      %p373 = pneg %p163
      %p374 = scmp.lt.s32.totalorder %s23, 1
      %s375 = scalar_select %p374, %s23, 1
      %s376 = scalar_lea.vmem %s5, %s375
      %p377 = pneg %p192
      %p378 = pneg %p189
      %p379 = pneg %p213
      %p380 = pneg %p210
      %p381 = pneg %p241
      %p382 = pneg %p238
      %s383 = smul.u32 2, %s24
      %p384 = scmp.lt.s32.totalorder %s23, 1
      %s385 = scalar_select %p384, %s23, 1
      %p386 = scmp.lt.s32.totalorder %s383, 1
      %s387 = scalar_select %p386, %s383, 1
      %s388 = smul.addr %s385, 2
      %s389 = sadd.s32 %s387, %s388
      %s390 = smul.addr %s389, 4
      %s391 = scalar_lea.vmem %s7, %s390
      %s392 = smul.u32 2, %s24
      %p393 = scmp.lt.s32.totalorder %s23, 1
      %s394 = scalar_select %p393, %s23, 1
      %p395 = scmp.lt.s32.totalorder %s392, 3
      %s396 = scalar_select %p395, %s392, 3
      %s397 = smul.addr %s394, 4
      %s398 = sadd.s32 %s396, %s397
      %s399 = smul.addr %s398, 4
      %s400 = scalar_lea.vmem %s0, %s399
      %s401 = smul.u32 2, %s24
      %s402 = sadd.s32 %s24, 2
      %p403 = scmp.lt.s32.totalorder %s23, 1
      %s404 = scalar_select %p403, %s23, 1
      %p405 = scmp.lt.s32.totalorder %s402, 3
      %s406 = scalar_select %p405, %s402, 3
      %s407 = smul.addr %s404, 4
      %s408 = sadd.s32 %s406, %s407
      %s409 = smul.addr %s408, 4
      %s410 = scalar_lea.vmem %s1, %s409
      %s411 = sadd.s32 %s24, 2
      %s412 = sadd.s32 %s24, 3
      %p413 = scmp.lt.s32.totalorder %s23, 1
      %s414 = scalar_select %p413, %s23, 1
      %p415 = scmp.lt.s32.totalorder %s412, 3
      %s416 = scalar_select %p415, %s412, 3
      %s417 = smul.addr %s414, 4
      %s418 = sadd.s32 %s416, %s417
      %s419 = smul.addr %s418, 4
      %s420 = scalar_lea.vmem %s2, %s419
      %s421 = sadd.s32 %s24, 3
      %p422 = scmp.lt.s32.totalorder %s23, 1
      %s423 = scalar_select %p422, %s23, 1
      %s424 = smul.addr %s423, 8
      %s425 = scalar_lea.vmem %s3, %s424
      %p426 = scmp.lt.s32.totalorder %s23, 1
      %s427 = scalar_select %p426, %s23, 1
      %s428 = smul.addr %s427, 8
      %s429 = scalar_lea.vmem %s4, %s428
      %p430 = scmp.lt.s32.totalorder %s23, 1
      %s431 = scalar_select %p430, %s23, 1
      %s432 = scalar_lea.vmem %s5, %s431
      %s433 = smul.u32 2, %s24
      %p434 = scmp.lt.s32.totalorder %s23, 1
      %s435 = scalar_select %p434, %s23, 1
      %p436 = scmp.lt.s32.totalorder %s433, 1
      %s437 = scalar_select %p436, %s433, 1
      %s438 = smul.addr %s435, 2
      %s439 = sadd.s32 %s437, %s438
      %s440 = smul.addr %s439, 4
      %s441 = scalar_lea.vmem %s7, %s440
      %s442 = smul.u32 2, %s24
      %v444 = vld [vmem:[%s425] sm:$0xff]
      %v445 = vld [vmem:[%s429] sm:$0xff]
      %v446 = vld [vmem:[%s432] sm:$0x1]
      %v447 = vlaneseq
      %v448 = vshrl.u32 %v447, 7
      %v449 = vlaneseq
      %v450 = vand.u32 %v449, 127
      %vm451 = vcmp.gt.s32.totalorder %v450, %v448
      %vm452 = vcmp.eq.f32.partialorder %v446, 0.0
      %v453 = vsel %vm452, 1, 0
      %v454 = vperm.slane %v453, 0
      %vm455 = vcmp.eq.s32.totalorder %v454, 1
      %vm456 = vmor %vm451, %vm455
      %v457 = vsel %vm456, -3.4028235e+38, 0.0
      %vm458 = vcmask 64512
      %459 = vst.msk [vmem:[#allocation2] sm:$0xff] %vm458, %v457
      %s460 = sld [smem:[#allocation3]]
      %p461 = scmp.ne.s32.totalorder %s460, 0
      // Predicated region
      $region49: #{closed_call.28} parent=47 // pred_check
        %p462 = pneg %p461
      $region50: #{closed_call.28} parent=47 // pred_check_branch
        %464 = sbr.rel (%p462) target = $region52
      $region51: #{closed_call.28} parent=47 // pred_region
        %v465 = vsub.s32 %v448, %v450
        %vm466 = vcmp.ge.s32.totalorder %v465, 4
        %v467 = vld [vmem:[#allocation2] sm:$0xff]
        %v468 = vsel %vm466, -3.4028235e+38, %v467
        %469 = vst.msk [vmem:[#allocation2] sm:$0xff] %vm458, %v468
      $region52: #{closed_call.28} parent=47 // pred_fallthru
        _
      %v470 = vld [vmem:[#allocation2] sm:$0xff]
      %v471 = vld [vmem:[%s410] sm:$0xf]
      %v472 = vunpack.c.l.bf16 %v471
      %v473 = vmul.f32 %v472, %v444
      %475 = vrot.lane.b32.xlu0 %v445, 64
      %v476 = vpop.permute.xlu0 %475
      %v478 = vmul.f32 %v472, %v476
      %480 = vrot.lane.b32.xlu0 %v478, 64
      %v481 = vpop.permute.xlu0 %480
      %v483 = vsub.f32 %v473, %v481
      %485 = vrot.lane.b32.xlu0 %v444, 64
      %v486 = vpop.permute.xlu0 %485
      %v488 = vmul.f32 %v472, %v486
      %v489 = vmul.f32 %v472, %v445
      %491 = vrot.lane.b32.xlu0 %v489, 64
      %v492 = vpop.permute.xlu0 %491
      %v494 = vadd.f32 %v488, %v492
      %vm495 = vcmask 523264
      %v496 = vsel %vm495, %v483, %v494
      %v497 = vpack.c.bf16 %v496, %v496
      %v498 = vld [vmem:[%s420] sm:$0xf]
      %v499 = vld [vmem:[%s400] sm:$0xf]
      %v500 = vunpack.c.l.bf16 %v499
      %v501 = vmul.f32 %v500, %v444
      %v502 = vmul.f32 %v500, %v476
      %504 = vrot.lane.b32.xlu0 %v502, 64
      %v505 = vpop.permute.xlu0 %504
      %v507 = vsub.f32 %v501, %v505
      %v508 = vmul.f32 %v500, %v486
      %v509 = vmul.f32 %v500, %v445
      %511 = vrot.lane.b32.xlu0 %v509, 64
      %v512 = vpop.permute.xlu0 %511
      %v514 = vadd.f32 %v508, %v512
      %v515 = vsel %vm495, %v507, %v514
      %v516 = vpack.c.bf16 %v515, %v515
      %517 = vmatpush.bf16.xpose.msra.mxu0 0
      %518 = vmatpush.bf16.xpose.msra.mxu0 0
      %519 = vmatpush.bf16.xpose.msra.mxu0 0
      %520 = vmatpush.bf16.xpose.msra.mxu0 0
      %521 = vmatpush.bf16.xpose.msra.mxu0 0
      %522 = vmatpush.bf16.xpose.msra.mxu0 0
      %523 = vmatpush.bf16.xpose.msra.mxu0 0
      %524 = vmatpush.bf16.xpose.msra.mxu0 %v497
      %525 = vmatmul.bf16.gmra.mxu0 %v516
      %v526 = vpop.f32.mrf.mxu0
      %v527 = vadd.f32 0.0, %v526
      %v528 = vpop.f32.mrf.mxu0
      %529 = vdwg.mxu0
      %v530 = vmul.f32 %v527, 0.088388346
      %v531 = vmul.f32 %v530, 0.02
      %v532 = vtanh.pop %v531
      %v533 = vmul.f32 %v532, 50.0
      %v534 = vadd.f32 %v533, %v470
      %v535 = vsel %vm458, %v534, -inf
      %536 = vmax.xlane.f32.xlu0 %v535
      %v537 = vpop.xlane.xlu0 %536
      %v538 = vsub.f32 %v534, %v537
      %v539 = vmul.f32 %v538, 1.442695
      %v540 = vpow.pop %v539
      %v541 = vsel %vm458, %v540, 0.0
      %542 = vadd.xlane.f32.xlu0 %v541
      %v543 = vpop.xlane.xlu0 %542
      %v544 = vrcp.pop %v543
      %v545 = vmul.f32 %v540, %v544
      %v546 = vpack.c.bf16 %v545, %v545
      %v548 = vsel %vm458, %v546, 0
      %vm550 = vcmask 1043456
      %v552 = vsel %vm550, %v498, 0
      %554 = vmatpush.bf16.msra.mxu0 0
      %555 = vmatpush.bf16.msra.mxu0 0
      %556 = vmatpush.bf16.msra.mxu0 0
      %557 = vmatpush.bf16.msra.mxu0 0
      %558 = vmatpush.bf16.msra.mxu0 0
      %559 = vmatpush.bf16.msra.mxu0 0
      %560 = vmatpush.bf16.msra.mxu0 0
      %561 = vmatpush.bf16.msra.mxu0 %v552
      %562 = vmatmul.bf16.gmra.mxu0 %v548
      %v563 = vpop.f32.mrf.mxu0
      %v564 = vadd.f32 0.0, %v563
      %v565 = vpop.f32.mrf.mxu0
      %566 = vdwg.mxu0
      %v567 = vpack.c.bf16 %v564, %v564
      %568 = vst [vmem:[%s441] sm:$0xf] %v567
      %v569 = vld [vmem:[%s400 + $0x4] sm:$0xf]
      %v570 = vunpack.c.l.bf16 %v569
      %v571 = vmul.f32 %v570, %v444
      %v572 = vmul.f32 %v570, %v476
      %574 = vrot.lane.b32.xlu0 %v572, 64
      %v575 = vpop.permute.xlu0 %574
      %v577 = vsub.f32 %v571, %v575
      %v578 = vmul.f32 %v570, %v486
      %v579 = vmul.f32 %v570, %v445
      %581 = vrot.lane.b32.xlu0 %v579, 64
      %v582 = vpop.permute.xlu0 %581
      %v584 = vadd.f32 %v578, %v582
      %v585 = vsel %vm495, %v577, %v584
      %v586 = vpack.c.bf16 %v585, %v585
      %587 = vmatpush.bf16.xpose.msra.mxu0 0
      %588 = vmatpush.bf16.xpose.msra.mxu0 0
      %589 = vmatpush.bf16.xpose.msra.mxu0 0
      %590 = vmatpush.bf16.xpose.msra.mxu0 0
      %591 = vmatpush.bf16.xpose.msra.mxu0 0
      %592 = vmatpush.bf16.xpose.msra.mxu0 0
      %593 = vmatpush.bf16.xpose.msra.mxu0 0
      %594 = vmatpush.bf16.xpose.msra.mxu0 %v497
      %595 = vmatmul.bf16.gmra.mxu0 %v586
      %v596 = vpop.f32.mrf.mxu0
      %v597 = vadd.f32 0.0, %v596
      %v598 = vpop.f32.mrf.mxu0
      %599 = vdwg.mxu0
      %v600 = vmul.f32 %v597, 0.088388346
      %v601 = vmul.f32 %v600, 0.02
      %v602 = vtanh.pop %v601
      %v603 = vmul.f32 %v602, 50.0
      %v604 = vadd.f32 %v603, %v470
      %v605 = vsel %vm458, %v604, -inf
      %606 = vmax.xlane.f32.xlu0 %v605
      %v607 = vpop.xlane.xlu0 %606
      %v608 = vsub.f32 %v604, %v607
      %v609 = vmul.f32 %v608, 1.442695
      %v610 = vpow.pop %v609
      %v611 = vsel %vm458, %v610, 0.0
      %612 = vadd.xlane.f32.xlu0 %v611
      %v613 = vpop.xlane.xlu0 %612
      %v614 = vrcp.pop %v613
      %v615 = vmul.f32 %v610, %v614
      %v616 = vpack.c.bf16 %v615, %v615
      %v618 = vsel %vm458, %v616, 0
      %620 = vmatpush.bf16.msra.mxu0 0
      %621 = vmatpush.bf16.msra.mxu0 0
      %622 = vmatpush.bf16.msra.mxu0 0
      %623 = vmatpush.bf16.msra.mxu0 0
      %624 = vmatpush.bf16.msra.mxu0 0
      %625 = vmatpush.bf16.msra.mxu0 0
      %626 = vmatpush.bf16.msra.mxu0 0
      %627 = vmatpush.bf16.msra.mxu0 %v552
      %628 = vmatmul.bf16.gmra.mxu0 %v618
      %v629 = vpop.f32.mrf.mxu0
      %v630 = vadd.f32 0.0, %v629
      %v631 = vpop.f32.mrf.mxu0
      %632 = vdwg.mxu0
      %v633 = vpack.c.bf16 %v630, %v630
      %634 = vst [vmem:[%s441 + $0x4] sm:$0xf] %v633
      %s635 = smul.u32 2, %s24
      %p636 = scmp.lt.s32.totalorder %s23, 1
      %s637 = scalar_select %p636, %s23, 1
      %p638 = scmp.lt.s32.totalorder %s635, 1
      %s639 = scalar_select %p638, %s635, 1
      %s640 = smul.addr %s637, 2
      %s641 = sadd.s32 %s639, %s640
      %s642 = smul.addr %s641, 4
      %s643 = scalar_lea.vmem %s7, %s642
      // Predicated region
      $region53: #{closed_call.28} parent=47 // pred_check
        %p644 = pneg %p238
      $region54: #{closed_call.28} parent=47 // pred_check_branch
        %646 = sbr.rel (%p644) target = $region56
      $region55: #{closed_call.28} parent=47 // pred_region
        %s647 = smul.u32 2, %s24
      $region56: #{closed_call.28} parent=47 // pred_fallthru
        _
    $region48: #{closed_call.28} parent=5 // pred_fallthru
      _
    %p648 = scmp.le.s32.totalorder 2, %s14
    // Predicated region
    $region57: #{closed_call.28} parent=5 // pred_check
      %p649 = pneg %p648
    $region58: #{closed_call.28} parent=5 // pred_check_branch
      %651 = sbr.rel (%p649) target = $region60
    $region59: #{closed_call.28} parent=5 // pred_region
      %s652 = ssub.s32 %s14, 2
      // Predicated region
      $region61: #{closed_call.28} parent=59 // pred_check
        %p653 = pneg %p244
      $region62: #{closed_call.28} parent=59 // pred_check_branch
        %655 = sbr.rel (%p653) target = $region64
      $region63: #{closed_call.28} parent=59 // pred_region
        %s656 = smul.u32 2, %s26
        %p657 = scmp.lt.s32.totalorder %s25, 1
        %s658 = scalar_select %p657, %s25, 1
        %p659 = scmp.lt.s32.totalorder %s656, 1
        %s660 = scalar_select %p659, %s656, 1
        %s661 = smul.addr %s658, 2
        %s662 = sadd.s32 %s660, %s661
        %s663 = smul.addr %s662, 4
        %s664 = scalar_lea.vmem %s7, %s663
      $region64: #{closed_call.28} parent=59 // pred_fallthru
        _
    $region60: #{closed_call.28} parent=5 // pred_fallthru
      _
  $region6: #{closed_call.28} parent=0 // loop_footer
    %s18 = sadd.s32 1, %s14
  $region7: #{closed_call.28} parent=0 // loop_footer_branch
    %13 = sbr.rel target = $region3
  $region8: #{closed_call.28} parent=0 // loop_exit
    _

// kernel: closed_call.29
$region0: #{closed_call.29}
  #allocation0 [shape = 'u32[]', space=smem, size = 0x4, offset = 0x4, fixed_abs, tag = 'smem constant byte address 0x4 - core index']
  #allocation1 [shape = 'u32[72,128]{1,0:T(1,128)}', space=vmem, size = 0x9000, scoped, tag = 'internal scratch']
  %s0 = inlined_call_operand.vmem [shape: bf16[16,256], index: 0, kind: input, shape index: {}]
  %s1 = inlined_call_operand.vmem [shape: bf16[256,256], index: 1, kind: input, shape index: {}]
  %s2 = inlined_call_operand.vmem [shape: f32[1,256], index: 2, kind: input, shape index: {}]
  %s3 = inlined_call_operand.vmem [shape: f32[16,256], index: 3, kind: input, shape index: {}]
  %s4 = inlined_call_operand.vmem [shape: f32[16,256], index: 4, kind: output, shape index: {}]
  %s5 = sld [smem:[#allocation0]]
  $region26: #{closed_call.29} parent=0
    _
  %s7 = ssub.s32 1, %s5
  %s8 = scalar_select 0, %s7, %s5
  // Predicated region
  $region2: #{closed_call.29} parent=0 // pred_check
    _
  $region3: #{closed_call.29} parent=0 // pred_check_branch
    %10 = sbr.rel (0) target = $region5
  $region4: #{closed_call.29} parent=0 // pred_region
    _
  $region5: #{closed_call.29} parent=0 // pred_fallthru
    _
  // Predicated region
  $region6: #{closed_call.29} parent=0 // pred_check
    _
  $region7: #{closed_call.29} parent=0 // pred_check_branch
    %12 = sbr.rel (0) target = $region9
  $region8: #{closed_call.29} parent=0 // pred_region
    _
  $region9: #{closed_call.29} parent=0 // pred_fallthru
    _
  // Predicated region
  $region10: #{closed_call.29} parent=0 // pred_check
    _
  $region11: #{closed_call.29} parent=0 // pred_check_branch
    %14 = sbr.rel (0) target = $region13
  $region12: #{closed_call.29} parent=0 // pred_region
    _
  $region13: #{closed_call.29} parent=0 // pred_fallthru
    _
  // Predicated region
  $region14: #{closed_call.29} parent=0 // pred_check
    _
  $region15: #{closed_call.29} parent=0 // pred_check_branch
    %16 = sbr.rel (0) target = $region17
  $region16: #{closed_call.29} parent=0 // pred_region
    _
  $region17: #{closed_call.29} parent=0 // pred_fallthru
    _
  %v17 = vld [vmem:[%s0] sm:$0xff]
  %v18 = vld [vmem:[%s0 + $0x8] sm:$0xff]
  %v19 = vld [vmem:[%s1] sm:$0xff]
  %v20 = vld [vmem:[%s1 + $0x8] sm:$0xff]
  %v21 = vld [vmem:[%s1 + $0x10] sm:$0xff]
  %v22 = vld [vmem:[%s1 + $0x18] sm:$0xff]
  %v23 = vld [vmem:[%s1 + $0x20] sm:$0xff]
  %v24 = vld [vmem:[%s1 + $0x28] sm:$0xff]
  %v25 = vld [vmem:[%s1 + $0x30] sm:$0xff]
  %v26 = vld [vmem:[%s1 + $0x38] sm:$0xff]
  %v27 = vld [vmem:[%s1 + $0x40] sm:$0xff]
  %v28 = vld [vmem:[%s1 + $0x48] sm:$0xff]
  %v29 = vld [vmem:[%s1 + $0x50] sm:$0xff]
  %v30 = vld [vmem:[%s1 + $0x58] sm:$0xff]
  %v31 = vld [vmem:[%s1 + $0x60] sm:$0xff]
  %v32 = vld [vmem:[%s1 + $0x68] sm:$0xff]
  %v33 = vld [vmem:[%s1 + $0x70] sm:$0xff]
  %v34 = vld [vmem:[%s1 + $0x78] sm:$0xff]
  %v35 = vld [vmem:[%s1 + $0x80] sm:$0xff]
  %v36 = vld [vmem:[%s1 + $0x88] sm:$0xff]
  %v37 = vld [vmem:[%s1 + $0x90] sm:$0xff]
  %v38 = vld [vmem:[%s1 + $0x98] sm:$0xff]
  %v39 = vld [vmem:[%s1 + $0xa0] sm:$0xff]
  %v40 = vld [vmem:[%s1 + $0xa8] sm:$0xff]
  %v41 = vld [vmem:[%s1 + $0xb0] sm:$0xff]
  %v42 = vld [vmem:[%s1 + $0xb8] sm:$0xff]
  %v43 = vld [vmem:[%s1 + $0xc0] sm:$0xff]
  %v44 = vld [vmem:[%s1 + $0xc8] sm:$0xff]
  %v45 = vld [vmem:[%s1 + $0xd0] sm:$0xff]
  %v46 = vld [vmem:[%s1 + $0xd8] sm:$0xff]
  %v47 = vld [vmem:[%s1 + $0xe0] sm:$0xff]
  %v48 = vld [vmem:[%s1 + $0xe8] sm:$0xff]
  %v49 = vld [vmem:[%s1 + $0xf0] sm:$0xff]
  %v50 = vld [vmem:[%s1 + $0xf8] sm:$0xff]
  %v53 = vunpack.c.l.b16 %v17
  %v54 = vunpack.c.h.b16 %v17
  %v55 = vunpack.c.l.b16 %v18
  %v56 = vunpack.c.h.b16 %v18
  %v57 = vpack.c.b16 %v55, %v53
  %v58 = vpack.c.b16 %v56, %v54
  %v93 = vunpack.c.l.b16 %v19
  %v94 = vunpack.c.h.b16 %v19
  %v95 = vunpack.c.l.b16 %v20
  %v96 = vunpack.c.h.b16 %v20
  %v97 = vunpack.c.l.b16 %v21
  %v98 = vunpack.c.h.b16 %v21
  %v99 = vunpack.c.l.b16 %v22
  %v100 = vunpack.c.h.b16 %v22
  %v101 = vunpack.c.l.b16 %v23
  %v102 = vunpack.c.h.b16 %v23
  %v103 = vunpack.c.l.b16 %v24
  %v104 = vunpack.c.h.b16 %v24
  %v105 = vunpack.c.l.b16 %v25
  %v106 = vunpack.c.h.b16 %v25
  %v107 = vunpack.c.l.b16 %v26
  %v108 = vunpack.c.h.b16 %v26
  %v109 = vunpack.c.l.b16 %v27
  %v110 = vunpack.c.h.b16 %v27
  %v111 = vunpack.c.l.b16 %v28
  %v112 = vunpack.c.h.b16 %v28
  %v113 = vunpack.c.l.b16 %v29
  %v114 = vunpack.c.h.b16 %v29
  %v115 = vunpack.c.l.b16 %v30
  %v116 = vunpack.c.h.b16 %v30
  %v117 = vunpack.c.l.b16 %v31
  %v118 = vunpack.c.h.b16 %v31
  %v119 = vunpack.c.l.b16 %v32
  %v120 = vunpack.c.h.b16 %v32
  %v121 = vunpack.c.l.b16 %v33
  %v122 = vunpack.c.h.b16 %v33
  %v123 = vunpack.c.l.b16 %v34
  %v124 = vunpack.c.h.b16 %v34
  %v125 = vunpack.c.l.b16 %v35
  %v126 = vunpack.c.h.b16 %v35
  %v127 = vunpack.c.l.b16 %v36
  %v128 = vunpack.c.h.b16 %v36
  %v129 = vunpack.c.l.b16 %v37
  %v130 = vunpack.c.h.b16 %v37
  %v131 = vunpack.c.l.b16 %v38
  %v132 = vunpack.c.h.b16 %v38
  %v133 = vunpack.c.l.b16 %v39
  %v134 = vunpack.c.h.b16 %v39
  %v135 = vunpack.c.l.b16 %v40
  %v136 = vunpack.c.h.b16 %v40
  %v137 = vunpack.c.l.b16 %v41
  %v138 = vunpack.c.h.b16 %v41
  %v139 = vunpack.c.l.b16 %v42
  %v140 = vunpack.c.h.b16 %v42
  %v141 = vunpack.c.l.b16 %v43
  %v142 = vunpack.c.h.b16 %v43
  %v143 = vunpack.c.l.b16 %v44
  %v144 = vunpack.c.h.b16 %v44
  %v145 = vunpack.c.l.b16 %v45
  %v146 = vunpack.c.h.b16 %v45
  %v147 = vunpack.c.l.b16 %v46
  %v148 = vunpack.c.h.b16 %v46
  %v149 = vunpack.c.l.b16 %v47
  %v150 = vunpack.c.h.b16 %v47
  %v151 = vunpack.c.l.b16 %v48
  %v152 = vunpack.c.h.b16 %v48
  %v153 = vunpack.c.l.b16 %v49
  %v154 = vunpack.c.h.b16 %v49
  %v155 = vunpack.c.l.b16 %v50
  %v156 = vunpack.c.h.b16 %v50
  %v157 = vpack.c.b16 %v95, %v93
  %v158 = vpack.c.b16 %v96, %v94
  %v159 = vpack.c.b16 %v99, %v97
  %v160 = vpack.c.b16 %v100, %v98
  %v161 = vpack.c.b16 %v103, %v101
  %v162 = vpack.c.b16 %v104, %v102
  %v163 = vpack.c.b16 %v107, %v105
  %v164 = vpack.c.b16 %v108, %v106
  %v165 = vpack.c.b16 %v111, %v109
  %v166 = vpack.c.b16 %v112, %v110
  %v167 = vpack.c.b16 %v115, %v113
  %v168 = vpack.c.b16 %v116, %v114
  %v169 = vpack.c.b16 %v119, %v117
  %v170 = vpack.c.b16 %v120, %v118
  %v171 = vpack.c.b16 %v123, %v121
  %v172 = vpack.c.b16 %v124, %v122
  %v173 = vpack.c.b16 %v127, %v125
  %v174 = vpack.c.b16 %v128, %v126
  %v175 = vpack.c.b16 %v131, %v129
  %v176 = vpack.c.b16 %v132, %v130
  %v177 = vpack.c.b16 %v135, %v133
  %v178 = vpack.c.b16 %v136, %v134
  %v179 = vpack.c.b16 %v139, %v137
  %v180 = vpack.c.b16 %v140, %v138
  %v181 = vpack.c.b16 %v143, %v141
  %v182 = vpack.c.b16 %v144, %v142
  %v183 = vpack.c.b16 %v147, %v145
  %v184 = vpack.c.b16 %v148, %v146
  %v185 = vpack.c.b16 %v151, %v149
  %v186 = vpack.c.b16 %v152, %v150
  %v187 = vpack.c.b16 %v155, %v153
  %v188 = vpack.c.b16 %v156, %v154
  %221 = vmatpush.bf16.msra.mxu0 %v171
  %222 = vmatpush.bf16.msra.mxu0 %v169
  %223 = vmatpush.bf16.msra.mxu0 %v167
  %224 = vmatpush.bf16.msra.mxu0 %v165
  %225 = vmatpush.bf16.msra.mxu0 %v163
  %226 = vmatpush.bf16.msra.mxu0 %v161
  %227 = vmatpush.bf16.msra.mxu0 %v159
  %228 = vmatpush.bf16.msra.mxu0 %v157
  %229 = vmatmul.bf16.gmra.mxu0 %v57
  %v230 = vpop.f32.mrf.mxu0
  %v231 = vadd.f32 0.0, %v230
  %v232 = vpop.f32.mrf.mxu0
  %v233 = vadd.f32 0.0, %v232
  %234 = vdwg.mxu0
  %235 = vmatpush.bf16.msra.mxu0 %v187
  %236 = vmatpush.bf16.msra.mxu0 %v185
  %237 = vmatpush.bf16.msra.mxu0 %v183
  %238 = vmatpush.bf16.msra.mxu0 %v181
  %239 = vmatpush.bf16.msra.mxu0 %v179
  %240 = vmatpush.bf16.msra.mxu0 %v177
  %241 = vmatpush.bf16.msra.mxu0 %v175
  %242 = vmatpush.bf16.msra.mxu0 %v173
  %243 = vmatmul.bf16.gmra.mxu0 %v58
  %v244 = vpop.f32.mrf.mxu0
  %v245 = vadd.f32 %v231, %v244
  %v246 = vpop.f32.mrf.mxu0
  %v247 = vadd.f32 %v233, %v246
  %248 = vdwg.mxu0
  %249 = vmatpush.bf16.msra.mxu0 %v172
  %250 = vmatpush.bf16.msra.mxu0 %v170
  %251 = vmatpush.bf16.msra.mxu0 %v168
  %252 = vmatpush.bf16.msra.mxu0 %v166
  %253 = vmatpush.bf16.msra.mxu0 %v164
  %254 = vmatpush.bf16.msra.mxu0 %v162
  %255 = vmatpush.bf16.msra.mxu0 %v160
  %256 = vmatpush.bf16.msra.mxu0 %v158
  %257 = vmatmul.bf16.gmra.mxu0 %v57
  %v258 = vpop.f32.mrf.mxu0
  %v259 = vadd.f32 0.0, %v258
  %v260 = vpop.f32.mrf.mxu0
  %v261 = vadd.f32 0.0, %v260
  %262 = vdwg.mxu0
  %263 = vmatpush.bf16.msra.mxu0 %v188
  %264 = vmatpush.bf16.msra.mxu0 %v186
  %265 = vmatpush.bf16.msra.mxu0 %v184
  %266 = vmatpush.bf16.msra.mxu0 %v182
  %267 = vmatpush.bf16.msra.mxu0 %v180
  %268 = vmatpush.bf16.msra.mxu0 %v178
  %269 = vmatpush.bf16.msra.mxu0 %v176
  %270 = vmatpush.bf16.msra.mxu0 %v174
  %271 = vmatmul.bf16.gmra.mxu0 %v58
  %v272 = vpop.f32.mrf.mxu0
  %v273 = vadd.f32 %v259, %v272
  %v274 = vpop.f32.mrf.mxu0
  %v275 = vadd.f32 %v261, %v274
  %276 = vdwg.mxu0
  %v277 = vmul.f32 %v245, %v245
  %v278 = vmul.f32 %v273, %v273
  %v279 = vmul.f32 %v247, %v247
  %v280 = vmul.f32 %v275, %v275
  %v281 = vadd.f32 %v277, %v278
  %282 = vadd.xlane.f32.xlu0 %v281
  %v283 = vpop.xlane.xlu0 %282
  %v284 = vadd.f32 %v279, %v280
  %285 = vadd.xlane.f32.xlu0 %v284
  %v286 = vpop.xlane.xlu0 %285
  %v287 = vrcp.pop 256.0
  %v288 = vmul.f32 256.0, %v287
  %v289 = vsub.f32 1.0, %v288
  %v290 = vmul.f32 %v287, %v289
  %v291 = vadd.f32 %v287, %v290
  %vm292 = vweird.f32 %v287
  %v293 = vsel %vm292, %v287, %v291
  %v294 = vmul.f32 %v283, %v293
  %v295 = vmul.f32 %v286, %v293
  %v296 = vadd.f32 %v294, 1e-06
  %v297 = vadd.f32 %v295, 1e-06
  %v298 = vrsqrt.pop %v296
  %v299 = vmul.f32 %v298, %v296
  %v300 = vmul.f32 %v299, %v298
  %v301 = vmul.f32 0.5, %v300
  %v302 = vsub.f32 1.5, %v301
  %v303 = vmul.f32 %v298, %v302
  %vm304 = vweird.f32 %v296
  %vm305 = vweird.f32 %v298
  %vm306 = vmor %vm304, %vm305
  %v307 = vsel %vm306, %v298, %v303
  %v308 = vrsqrt.pop %v297
  %v309 = vmul.f32 %v308, %v297
  %v310 = vmul.f32 %v309, %v308
  %v311 = vmul.f32 0.5, %v310
  %v312 = vsub.f32 1.5, %v311
  %v313 = vmul.f32 %v308, %v312
  %vm314 = vweird.f32 %v297
  %vm315 = vweird.f32 %v308
  %vm316 = vmor %vm314, %vm315
  %v317 = vsel %vm316, %v308, %v313
  %v318 = vmul.f32 %v245, %v307
  %v319 = vmul.f32 %v273, %v307
  %v320 = vmul.f32 %v247, %v317
  %v321 = vmul.f32 %v275, %v317
  %v322 = vld [vmem:[%s2] sm:$0x3]
  %v323 = vadd.f32 %v322, 1.0
  %v325 = vperm.slane %v323, 0
  %v326 = vperm.slane %v323, 1
  %v329 = vmul.f32 %v318, %v325
  %v330 = vmul.f32 %v319, %v326
  %v331 = vmul.f32 %v320, %v325
  %v332 = vmul.f32 %v321, %v326
  %v333 = vld [vmem:[%s3] sm:$0xff]
  %v334 = vld [vmem:[%s3 + $0x8] sm:$0xff]
  %v335 = vld [vmem:[%s3 + $0x10] sm:$0xff]
  %v336 = vld [vmem:[%s3 + $0x18] sm:$0xff]
  %v337 = vadd.f32 %v333, %v329
  %v338 = vadd.f32 %v334, %v330
  %v339 = vadd.f32 %v335, %v331
  %v340 = vadd.f32 %v336, %v332
  %341 = vst [vmem:[%s4] sm:$0xff] %v337
  %342 = vst [vmem:[%s4 + $0x8] sm:$0xff] %v338
  %343 = vst [vmem:[%s4 + $0x10] sm:$0xff] %v339
  %344 = vst [vmem:[%s4 + $0x18] sm:$0xff] %v340
  // Predicated region
  $region18: #{closed_call.29} parent=0 // pred_check
    _
  $region19: #{closed_call.29} parent=0 // pred_check_branch
    %346 = sbr.rel (0) target = $region21
  $region20: #{closed_call.29} parent=0 // pred_region
    _
  $region21: #{closed_call.29} parent=0 // pred_fallthru
    _
  // Predicated region
  $region22: #{closed_call.29} parent=0 // pred_check
    _
  $region23: #{closed_call.29} parent=0 // pred_check_branch
    %348 = sbr.rel (0) target = $region25
  $region24: #{closed_call.29} parent=0 // pred_region
    _
  $region25: #{closed_call.29} parent=0 // pred_fallthru
    _

// kernel: _lambda_.1
$region0: #{_lambda_.1}
  #allocation0 [shape = 'u32[]', space=smem, size = 0x4, offset = 0x4, fixed_abs, tag = 'smem constant byte address 0x4 - core index']
  #allocation1 [shape = 'u32[72,128]{1,0:T(1,128)}', space=vmem, size = 0x9000, scoped, tag = 'internal scratch']
  %s0 = inlined_call_operand.vmem [shape: f32[16,256], index: 0, kind: input, shape index: {}]
  %s1 = inlined_call_operand.vmem [shape: f32[1,256], index: 1, kind: input, shape index: {}]
  %s2 = inlined_call_operand.hbm [shape: f32[16,256], index: 2, kind: output, shape index: {}]
  %s3 = sld [smem:[#allocation0]]
  $region18: #{_lambda_.1} parent=0
    _
  %s5 = ssub.s32 1, %s3
  %s6 = scalar_select 0, %s5, %s3
  $region1: #{_lambda_.1} parent=0
    #allocation2 [shape = 'u8[16384]{0}', space=vmem, size = 0x4000, scoped, tag = 'output window, operand 0, single buffered']
    #allocation3 [shape = 's32[1]{0}', space=sflag, size = 0x4, scoped, tag = 'scoped memory for _lambda_.1']
    %7 = vsyncpa [#allocation3], 0
    // Predicated region
    $region2: #{_lambda_.1} parent=1 // pred_check
      _
    $region3: #{_lambda_.1} parent=1 // pred_check_branch
      %9 = sbr.rel (0) target = $region5
    $region4: #{_lambda_.1} parent=1 // pred_region
      _
    $region5: #{_lambda_.1} parent=1 // pred_fallthru
      _
    // Predicated region
    $region6: #{_lambda_.1} parent=1 // pred_check
      _
    $region7: #{_lambda_.1} parent=1 // pred_check_branch
      %11 = sbr.rel (0) target = $region9
    $region8: #{_lambda_.1} parent=1 // pred_region
      _
    $region9: #{_lambda_.1} parent=1 // pred_fallthru
      _
    %v12 = vld [vmem:[%s0] sm:$0xff]
    %v13 = vld [vmem:[%s0 + $0x8] sm:$0xff]
    %v14 = vld [vmem:[%s0 + $0x10] sm:$0xff]
    %v15 = vld [vmem:[%s0 + $0x18] sm:$0xff]
    %v16 = vmul.f32 %v12, %v12
    %v17 = vmul.f32 %v13, %v13
    %v18 = vmul.f32 %v14, %v14
    %v19 = vmul.f32 %v15, %v15
    %v20 = vadd.f32 %v16, %v17
    %21 = vadd.xlane.f32.xlu0 %v20
    %v22 = vpop.xlane.xlu0 %21
    %v23 = vadd.f32 %v18, %v19
    %24 = vadd.xlane.f32.xlu0 %v23
    %v25 = vpop.xlane.xlu0 %24
    %v26 = vrcp.pop 256.0
    %v27 = vmul.f32 256.0, %v26
    %v28 = vsub.f32 1.0, %v27
    %v29 = vmul.f32 %v26, %v28
    %v30 = vadd.f32 %v26, %v29
    %vm31 = vweird.f32 %v26
    %v32 = vsel %vm31, %v26, %v30
    %v33 = vmul.f32 %v22, %v32
    %v34 = vmul.f32 %v25, %v32
    %v35 = vadd.f32 %v33, 1e-06
    %v36 = vadd.f32 %v34, 1e-06
    %v37 = vrsqrt.pop %v35
    %v38 = vmul.f32 %v37, %v35
    %v39 = vmul.f32 %v38, %v37
    %v40 = vmul.f32 0.5, %v39
    %v41 = vsub.f32 1.5, %v40
    %v42 = vmul.f32 %v37, %v41
    %vm43 = vweird.f32 %v35
    %vm44 = vweird.f32 %v37
    %vm45 = vmor %vm43, %vm44
    %v46 = vsel %vm45, %v37, %v42
    %v47 = vrsqrt.pop %v36
    %v48 = vmul.f32 %v47, %v36
    %v49 = vmul.f32 %v48, %v47
    %v50 = vmul.f32 0.5, %v49
    %v51 = vsub.f32 1.5, %v50
    %v52 = vmul.f32 %v47, %v51
    %vm53 = vweird.f32 %v36
    %vm54 = vweird.f32 %v47
    %vm55 = vmor %vm53, %vm54
    %v56 = vsel %vm55, %v47, %v52
    %v57 = vmul.f32 %v12, %v46
    %v58 = vmul.f32 %v13, %v46
    %v59 = vmul.f32 %v14, %v56
    %v60 = vmul.f32 %v15, %v56
    %v61 = vld [vmem:[%s1] sm:$0x3]
    %v62 = vadd.f32 %v61, 1.0
    %v64 = vperm.slane %v62, 0
    %v65 = vperm.slane %v62, 1
    %v68 = vmul.f32 %v57, %v64
    %v69 = vmul.f32 %v58, %v65
    %v70 = vmul.f32 %v59, %v64
    %v71 = vmul.f32 %v60, %v65
    %72 = vst [vmem:[#allocation2] sm:$0xff] %v68
    %73 = vst [vmem:[#allocation2 + $0x8] sm:$0xff] %v69
    %74 = vst [vmem:[#allocation2 + $0x10] sm:$0xff] %v70
    %75 = vst [vmem:[#allocation2 + $0x18] sm:$0xff] %v71
    // Predicated region
    $region10: #{_lambda_.1} parent=1 // pred_check
      _
    $region11: #{_lambda_.1} parent=1 // pred_check_branch
      %77 = sbr.rel (0) target = $region13
    $region12: #{_lambda_.1} parent=1 // pred_region
      %79 = vsyncadd [#allocation3], 0
      %s80 = sshll.u32 [#allocation2], 4
      %s81 = int_to_ptr.vmem [resolvable:$true] %s80
      %s82 = sshll.u32 %s2, 4
      %s83 = int_to_ptr.hbm [resolvable:$true] %s82
      %88 = dma.vmem_to_hbm [thread:$0]  %s81, 512, %s83, [#allocation3], 256, 256, 16
    $region13: #{_lambda_.1} parent=1 // pred_fallthru
      _
    // Predicated region
    $region14: #{_lambda_.1} parent=1 // pred_check
      _
    $region15: #{_lambda_.1} parent=1 // pred_check_branch
      %90 = sbr.rel (0) target = $region17
    $region16: #{_lambda_.1} parent=1 // pred_region
      %92 = dma.done [#allocation3], 512
    $region17: #{_lambda_.1} parent=1 // pred_fallthru
      _
    %93 = vsyncpa [#allocation3], 1

// kernel: closed_call.30
$region0: #{closed_call.30}
  #allocation0 [shape = 'u32[]', space=smem, size = 0x4, offset = 0x4, fixed_abs, tag = 'smem constant byte address 0x4 - core index']
  #allocation1 [shape = 'u32[72,128]{1,0:T(1,128)}', space=vmem, size = 0x9000, scoped, tag = 'internal scratch']
  #allocation2 [shape = 'bf16[16,256]{1,0:T(8,128)(2,1)}', space=vmem, size = 0x2000, scoped, tag = 'scratch operand']
  #allocation3 [shape = 'f32[16,256]{1,0:T(8,128)}', space=vmem, size = 0x4000, scoped, tag = 'scratch operand']
  %s0 = inlined_call_operand.vmem [shape: f32[16,256], index: 0, kind: input, shape index: {}]
  %s1 = inlined_call_operand.vmem [shape: f32[1,256], index: 1, kind: input, shape index: {}]
  %s2 = inlined_call_operand.vmem [shape: bf16[256,512], index: 2, kind: input, shape index: {}]
  %s3 = inlined_call_operand.vmem [shape: bf16[256,512], index: 3, kind: input, shape index: {}]
  %s4 = inlined_call_operand.vmem [shape: bf16[512,256], index: 4, kind: input, shape index: {}]
  %s5 = inlined_call_operand.vmem [shape: f32[1,256], index: 5, kind: input, shape index: {}]
  %s6 = inlined_call_operand.vmem [shape: f32[16,256], index: 6, kind: output, shape index: {}]
  %s7 = sld [smem:[#allocation0]]
  $region141: #{closed_call.30} parent=0
    _
  %s9 = ssub.s32 1, %s7
  %s10 = scalar_select 0, %s9, %s7
  $region1: #{closed_call.30} parent=0
    #allocation4 [shape = 'u8[262144]{0}', space=vmem, size = 0x40000, scoped, tag = 'input window, operand 2']
    #allocation5 [shape = 'u8[262144]{0}', space=vmem, size = 0x40000, scoped, tag = 'input window, operand 3']
    loop: start=0, step=1, limit=4
    $region2: #{closed_call.30} parent=1 // loop_pre_header
      _
    $region3: #{closed_call.30} parent=1 // loop_header
      %s12 = sphi 0, %s16
      %p13 = scmp.ge.s32.totalorder %s12, 4
      %s19 = sphi 0, %s31
      %s20 = sphi 0, %s27
      %s21 = sphi 0, %s19
      %s22 = sphi 0, %s20
      %s23 = sphi 0, %s21
      %s24 = sphi 0, %s22
      %s34 = sphi 0, %s36
      %s37 = sphi 0, %s34
      %s38 = sphi 0, %s37
      %s54 = sphi 0, %s38
      %s58 = sphi 0, %s58
      %s60 = sphi 0, %s58
      %s61 = sphi 0, %s60
      %s75 = sphi 0, %s61
      %s81 = sphi 0, %s83
      %s84 = sphi 0, %s81
      %s85 = sphi 0, %s84
      %s101 = sphi 0, %s85
      %s107 = sphi 0, %s109
      %s110 = sphi 0, %s107
      %s111 = sphi 0, %s110
      %s127 = sphi 0, %s111
      %s133 = sphi 0, %s135
      %s136 = sphi 0, %s133
      %s137 = sphi 0, %s136
      %s153 = sphi 0, %s137
      %s157 = sphi 0, %s157
      %s159 = sphi 0, %s157
      %s160 = sphi 0, %s159
      %s174 = sphi 0, %s160
      %s180 = sphi 0, %s182
      %s183 = sphi 0, %s180
      %s184 = sphi 0, %s183
      %s200 = sphi 0, %s184
    $region4: #{closed_call.30} parent=1 // loop_header_branch
      %15 = sbr.rel (%p13) target = $region8
    $region5: #{closed_call.30} parent=1 // loop_body
      %s17 = ssub.s32 %s12, 1
      %s18 = ssub.s32 %s12, 2
      %s25 = sadd.s32 1, %s20
      %p26 = scmp.ge.s32.totalorder %s25, 2
      %s27 = scalar_select %p26, 0, %s25
      %s28 = sadd.s32 1, %s19
      %s29 = scalar_select %p26, %s28, %s19
      %p30 = scmp.ge.s32.totalorder %s29, 1
      %s31 = scalar_select %p30, 0, %s29
      %s32 = ssub.s32 %s19, %s31
      %p33 = scmp.eq.s32.totalorder %s32, 0
      %s35 = sadd.s32 %s34, 1
      %s36 = scalar_select %p33, %s34, %s35
      %p39 = pneg %p33
      %p40 = scmp.eq.s32.totalorder %s12, 1
      %p41 = por %p39, %p40
      %p42 = scmp.ne.s32.totalorder %s34, %s37
      %p43 = scmp.eq.s32.totalorder %s12, 0
      %p44 = por %p42, %p43
      %p45 = scmp.ne.s32.totalorder %s34, %s37
      %p46 = scmp.eq.s32.totalorder %s17, 1
      %p47 = por %p45, %p46
      %p48 = scmp.ne.s32.totalorder %s37, %s38
      %p49 = scmp.eq.s32.totalorder %s17, 0
      %p50 = por %p48, %p49
      %p51 = scmp.ne.s32.totalorder %s37, %s38
      %p52 = scmp.eq.s32.totalorder %s18, 1
      %p53 = por %p51, %p52
      %p55 = scmp.ne.s32.totalorder %s38, %s54
      %p56 = scmp.eq.s32.totalorder %s18, 0
      %p57 = por %p55, %p56
      %s59 = sadd.s32 %s58, 1
      %p62 = scmp.eq.s32.totalorder %s12, 1
      %p63 = scmp.ne.s32.totalorder %s58, %s60
      %p64 = scmp.eq.s32.totalorder %s12, 0
      %p65 = por %p63, %p64
      %p66 = scmp.ne.s32.totalorder %s58, %s60
      %p67 = scmp.eq.s32.totalorder %s17, 1
      %p68 = por %p66, %p67
      %p69 = scmp.ne.s32.totalorder %s60, %s61
      %p70 = scmp.eq.s32.totalorder %s17, 0
      %p71 = por %p69, %p70
      %p72 = scmp.ne.s32.totalorder %s60, %s61
      %p73 = scmp.eq.s32.totalorder %s18, 1
      %p74 = por %p72, %p73
      %p76 = scmp.ne.s32.totalorder %s61, %s75
      %p77 = scmp.eq.s32.totalorder %s18, 0
      %p78 = por %p76, %p77
      %s79 = ssub.s32 %s20, %s27
      %p80 = scmp.eq.s32.totalorder %s79, 0
      %s82 = sadd.s32 %s81, 1
      %s83 = scalar_select %p80, %s81, %s82
      %p86 = pneg %p80
      %p87 = scmp.eq.s32.totalorder %s12, 1
      %p88 = por %p86, %p87
      %p89 = scmp.ne.s32.totalorder %s81, %s84
      %p90 = scmp.eq.s32.totalorder %s12, 0
      %p91 = por %p89, %p90
      %p92 = scmp.ne.s32.totalorder %s81, %s84
      %p93 = scmp.eq.s32.totalorder %s17, 1
      %p94 = por %p92, %p93
      %p95 = scmp.ne.s32.totalorder %s84, %s85
      %p96 = scmp.eq.s32.totalorder %s17, 0
      %p97 = por %p95, %p96
      %p98 = scmp.ne.s32.totalorder %s84, %s85
      %p99 = scmp.eq.s32.totalorder %s18, 1
      %p100 = por %p98, %p99
      %p102 = scmp.ne.s32.totalorder %s85, %s101
      %p103 = scmp.eq.s32.totalorder %s18, 0
      %p104 = por %p102, %p103
      %s105 = ssub.s32 %s20, %s27
      %p106 = scmp.eq.s32.totalorder %s105, 0
      %s108 = sadd.s32 %s107, 1
      %s109 = scalar_select %p106, %s107, %s108
      %p112 = pneg %p106
      %p113 = scmp.eq.s32.totalorder %s12, 1
      %p114 = por %p112, %p113
      %p115 = scmp.ne.s32.totalorder %s107, %s110
      %p116 = scmp.eq.s32.totalorder %s12, 0
      %p117 = por %p115, %p116
      %p118 = scmp.ne.s32.totalorder %s107, %s110
      %p119 = scmp.eq.s32.totalorder %s17, 1
      %p120 = por %p118, %p119
      %p121 = scmp.ne.s32.totalorder %s110, %s111
      %p122 = scmp.eq.s32.totalorder %s17, 0
      %p123 = por %p121, %p122
      %p124 = scmp.ne.s32.totalorder %s110, %s111
      %p125 = scmp.eq.s32.totalorder %s18, 1
      %p126 = por %p124, %p125
      %p128 = scmp.ne.s32.totalorder %s111, %s127
      %p129 = scmp.eq.s32.totalorder %s18, 0
      %p130 = por %p128, %p129
      %s131 = ssub.s32 %s20, %s27
      %p132 = scmp.eq.s32.totalorder %s131, 0
      %s134 = sadd.s32 %s133, 1
      %s135 = scalar_select %p132, %s133, %s134
      %p138 = pneg %p132
      %p139 = scmp.eq.s32.totalorder %s12, 1
      %p140 = por %p138, %p139
      %p141 = scmp.ne.s32.totalorder %s133, %s136
      %p142 = scmp.eq.s32.totalorder %s12, 0
      %p143 = por %p141, %p142
      %p144 = scmp.ne.s32.totalorder %s133, %s136
      %p145 = scmp.eq.s32.totalorder %s17, 1
      %p146 = por %p144, %p145
      %p147 = scmp.ne.s32.totalorder %s136, %s137
      %p148 = scmp.eq.s32.totalorder %s17, 0
      %p149 = por %p147, %p148
      %p150 = scmp.ne.s32.totalorder %s136, %s137
      %p151 = scmp.eq.s32.totalorder %s18, 1
      %p152 = por %p150, %p151
      %p154 = scmp.ne.s32.totalorder %s137, %s153
      %p155 = scmp.eq.s32.totalorder %s18, 0
      %p156 = por %p154, %p155
      %s158 = sadd.s32 %s157, 1
      %p161 = scmp.eq.s32.totalorder %s12, 1
      %p162 = scmp.ne.s32.totalorder %s157, %s159
      %p163 = scmp.eq.s32.totalorder %s12, 0
      %p164 = por %p162, %p163
      %p165 = scmp.ne.s32.totalorder %s157, %s159
      %p166 = scmp.eq.s32.totalorder %s17, 1
      %p167 = por %p165, %p166
      %p168 = scmp.ne.s32.totalorder %s159, %s160
      %p169 = scmp.eq.s32.totalorder %s17, 0
      %p170 = por %p168, %p169
      %p171 = scmp.ne.s32.totalorder %s159, %s160
      %p172 = scmp.eq.s32.totalorder %s18, 1
      %p173 = por %p171, %p172
      %p175 = scmp.ne.s32.totalorder %s160, %s174
      %p176 = scmp.eq.s32.totalorder %s18, 0
      %p177 = por %p175, %p176
      %s178 = ssub.s32 %s19, %s31
      %p179 = scmp.eq.s32.totalorder %s178, 0
      %s181 = sadd.s32 %s180, 1
      %s182 = scalar_select %p179, %s180, %s181
      %p185 = pneg %p179
      %p186 = scmp.eq.s32.totalorder %s12, 1
      %p187 = por %p185, %p186
      %p188 = scmp.ne.s32.totalorder %s180, %s183
      %p189 = scmp.eq.s32.totalorder %s12, 0
      %p190 = por %p188, %p189
      %p191 = scmp.ne.s32.totalorder %s180, %s183
      %p192 = scmp.eq.s32.totalorder %s17, 1
      %p193 = por %p191, %p192
      %p194 = scmp.ne.s32.totalorder %s183, %s184
      %p195 = scmp.eq.s32.totalorder %s17, 0
      %p196 = por %p194, %p195
      %p197 = scmp.ne.s32.totalorder %s183, %s184
      %p198 = scmp.eq.s32.totalorder %s18, 1
      %p199 = por %p197, %p198
      %p201 = scmp.ne.s32.totalorder %s184, %s200
      %p202 = scmp.eq.s32.totalorder %s18, 0
      %p203 = por %p201, %p202
      %p204 = scmp.le.s32.totalorder 1, %s12
      %p205 = scmp.lt.s32.totalorder %s12, 3
      %p206 = pnand %p204, %p205
      %p207 = pneg %p206
      // Predicated region
      $region9: #{closed_call.30} parent=5 // pred_check
        _
      $region10: #{closed_call.30} parent=5 // pred_check_branch
        %209 = sbr.rel (%p206) target = $region12
      $region11: #{closed_call.30} parent=5 // pred_region
        %s210 = ssub.s32 %s12, 1
        // Predicated region
        $region13: #{closed_call.30} parent=11 // pred_check
          %p211 = pneg %p50
        $region14: #{closed_call.30} parent=11 // pred_check_branch
          %213 = sbr.rel (%p211) target = $region16
        $region15: #{closed_call.30} parent=11 // pred_region
          %s214 = smul.u32 2, %s21
          %p215 = scmp.lt.s32.totalorder %s214, 1
          %s216 = scalar_select %p215, %s214, 1
          %s217 = smul.addr %s216, 2
          %s218 = smul.addr %s217, 8
          %s219 = scalar_lea.vmem %s0, %s218
          %s220 = smul.u32 2, %s21
        $region16: #{closed_call.30} parent=11 // pred_fallthru
          _
        // Predicated region
        $region17: #{closed_call.30} parent=11 // pred_check
          %p221 = pneg %p71
        $region18: #{closed_call.30} parent=11 // pred_check_branch
          %223 = sbr.rel (%p221) target = $region20
        $region19: #{closed_call.30} parent=11 // pred_region
          _
        $region20: #{closed_call.30} parent=11 // pred_fallthru
          _
        // Predicated region
        $region21: #{closed_call.30} parent=11 // pred_check
          %p224 = pneg %p170
        $region22: #{closed_call.30} parent=11 // pred_check_branch
          %226 = sbr.rel (%p224) target = $region24
        $region23: #{closed_call.30} parent=11 // pred_region
          _
        $region24: #{closed_call.30} parent=11 // pred_fallthru
          _
      $region12: #{closed_call.30} parent=5 // pred_fallthru
        _
      %p227 = scmp.lt.s32.totalorder %s12, 2
      // Predicated region
      $region25: #{closed_call.30} parent=5 // pred_check
        %p228 = pneg %p227
      $region26: #{closed_call.30} parent=5 // pred_check_branch
        %230 = sbr.rel (%p228) target = $region28
      $region27: #{closed_call.30} parent=5 // pred_region
        // Predicated region
        $region29: #{closed_call.30} parent=27 // pred_check
          %p231 = pneg %p91
        $region30: #{closed_call.30} parent=27 // pred_check_branch
          %233 = sbr.rel (%p231) target = $region32
        $region31: #{closed_call.30} parent=27 // pred_region
          %s234 = sand.u32 %s81, 1
          %s235 = sand.u32 %s81, 1
          %s236 = smul.addr %s235, 256
          %s237 = scalar_lea.vmem [#allocation4], %s236
          %s238 = smul.u32 2, %s20
          %s239 = smul.addr %s238, 4
          %s240 = scalar_lea.vmem %s2, %s239
          // Predicated region
          $region33: #{closed_call.30} parent=31 // pred_check
            _
          $region34: #{closed_call.30} parent=31 // pred_check_branch
            %242 = sbr.rel (0) target = $region36
          $region35: #{closed_call.30} parent=31 // pred_region
            // Predicated region
            $region37: #{closed_call.30} parent=35 // pred_check
              _
            $region38: #{closed_call.30} parent=35 // pred_check_branch
              %244 = sbr.rel (0) target = $region40
            $region39: #{closed_call.30} parent=35 // pred_region
              // Predicated region
              $region52: #{closed_call.30} parent=39 // pred_check
                _
              $region53: #{closed_call.30} parent=39 // pred_check_branch
                %322 = sbr.rel (0) target = $region55
              $region54: #{closed_call.30} parent=39 // pred_region
                loop: start=0, step=1, limit=1
                $region56: #{closed_call.30} parent=54 // loop_pre_header
                  _
                $region57: #{closed_call.30} parent=54 // loop_header
                  %s324 = sphi 0, %s328
                  %p325 = scmp.ge.s32.totalorder %s324, 1
                  %s329 = sphi %s240, %s240
                  %s330 = sphi %s237, %s237
                $region58: #{closed_call.30} parent=54 // loop_header_branch
                  %327 = sbr.rel (%p325) target = $region62
                $region59: #{closed_call.30} parent=54 // loop_body
                  %v331 = vld [vmem:[%s329] sm:$0xff]
                  %332 = vst [vmem:[%s330] sm:$0xff] %v331
                  %v333 = vld [vmem:[%s329 + $0x10] sm:$0xff]
                  %334 = vst [vmem:[%s330 + $0x8] sm:$0xff] %v333
                  %v335 = vld [vmem:[%s329 + $0x20] sm:$0xff]
                  %336 = vst [vmem:[%s330 + $0x10] sm:$0xff] %v335
                  %v337 = vld [vmem:[%s329 + $0x30] sm:$0xff]
                  %338 = vst [vmem:[%s330 + $0x18] sm:$0xff] %v337
                  %v339 = vld [vmem:[%s329 + $0x40] sm:$0xff]
                  %340 = vst [vmem:[%s330 + $0x20] sm:$0xff] %v339
                  %v341 = vld [vmem:[%s329 + $0x50] sm:$0xff]
                  %342 = vst [vmem:[%s330 + $0x28] sm:$0xff] %v341
                  %v343 = vld [vmem:[%s329 + $0x60] sm:$0xff]
                  %344 = vst [vmem:[%s330 + $0x30] sm:$0xff] %v343
                  %v345 = vld [vmem:[%s329 + $0x70] sm:$0xff]
                  %346 = vst [vmem:[%s330 + $0x38] sm:$0xff] %v345
                  %v347 = vld [vmem:[%s329 + $0x80] sm:$0xff]
                  %348 = vst [vmem:[%s330 + $0x40] sm:$0xff] %v347
                  %v349 = vld [vmem:[%s329 + $0x90] sm:$0xff]
                  %350 = vst [vmem:[%s330 + $0x48] sm:$0xff] %v349
                  %v351 = vld [vmem:[%s329 + $0xa0] sm:$0xff]
                  %352 = vst [vmem:[%s330 + $0x50] sm:$0xff] %v351
                  %v353 = vld [vmem:[%s329 + $0xb0] sm:$0xff]
                  %354 = vst [vmem:[%s330 + $0x58] sm:$0xff] %v353
                  %v355 = vld [vmem:[%s329 + $0xc0] sm:$0xff]
                  %356 = vst [vmem:[%s330 + $0x60] sm:$0xff] %v355
                  %v357 = vld [vmem:[%s329 + $0xd0] sm:$0xff]
                  %358 = vst [vmem:[%s330 + $0x68] sm:$0xff] %v357
                  %v359 = vld [vmem:[%s329 + $0xe0] sm:$0xff]
                  %360 = vst [vmem:[%s330 + $0x70] sm:$0xff] %v359
                  %v361 = vld [vmem:[%s329 + $0xf0] sm:$0xff]
                  %362 = vst [vmem:[%s330 + $0x78] sm:$0xff] %v361
                  %v363 = vld [vmem:[%s329 + $0x100] sm:$0xff]
                  %364 = vst [vmem:[%s330 + $0x80] sm:$0xff] %v363
                  %v365 = vld [vmem:[%s329 + $0x110] sm:$0xff]
                  %366 = vst [vmem:[%s330 + $0x88] sm:$0xff] %v365
                  %v367 = vld [vmem:[%s329 + $0x120] sm:$0xff]
                  %368 = vst [vmem:[%s330 + $0x90] sm:$0xff] %v367
                  %v369 = vld [vmem:[%s329 + $0x130] sm:$0xff]
                  %370 = vst [vmem:[%s330 + $0x98] sm:$0xff] %v369
                  %v371 = vld [vmem:[%s329 + $0x140] sm:$0xff]
                  %372 = vst [vmem:[%s330 + $0xa0] sm:$0xff] %v371
                  %v373 = vld [vmem:[%s329 + $0x150] sm:$0xff]
                  %374 = vst [vmem:[%s330 + $0xa8] sm:$0xff] %v373
                  %v375 = vld [vmem:[%s329 + $0x160] sm:$0xff]
                  %376 = vst [vmem:[%s330 + $0xb0] sm:$0xff] %v375
                  %v377 = vld [vmem:[%s329 + $0x170] sm:$0xff]
                  %378 = vst [vmem:[%s330 + $0xb8] sm:$0xff] %v377
                  %v379 = vld [vmem:[%s329 + $0x180] sm:$0xff]
                  %380 = vst [vmem:[%s330 + $0xc0] sm:$0xff] %v379
                  %v381 = vld [vmem:[%s329 + $0x190] sm:$0xff]
                  %382 = vst [vmem:[%s330 + $0xc8] sm:$0xff] %v381
                  %v383 = vld [vmem:[%s329 + $0x1a0] sm:$0xff]
                  %384 = vst [vmem:[%s330 + $0xd0] sm:$0xff] %v383
                  %v385 = vld [vmem:[%s329 + $0x1b0] sm:$0xff]
                  %386 = vst [vmem:[%s330 + $0xd8] sm:$0xff] %v385
                  %v387 = vld [vmem:[%s329 + $0x1c0] sm:$0xff]
                  %388 = vst [vmem:[%s330 + $0xe0] sm:$0xff] %v387
                  %v389 = vld [vmem:[%s329 + $0x1d0] sm:$0xff]
                  %390 = vst [vmem:[%s330 + $0xe8] sm:$0xff] %v389
                  %v391 = vld [vmem:[%s329 + $0x1e0] sm:$0xff]
                  %392 = vst [vmem:[%s330 + $0xf0] sm:$0xff] %v391
                  %v393 = vld [vmem:[%s329 + $0x1f0] sm:$0xff]
                  %394 = vst [vmem:[%s330 + $0xf8] sm:$0xff] %v393
                $region60: #{closed_call.30} parent=54 // loop_footer
                  %s328 = sadd.s32 1, %s324
                $region61: #{closed_call.30} parent=54 // loop_footer_branch
                  %323 = sbr.rel target = $region57
                $region62: #{closed_call.30} parent=54 // loop_exit
                  _
              $region55: #{closed_call.30} parent=39 // pred_fallthru
                _
              // Predicated region
              $region63: #{closed_call.30} parent=39 // pred_check
                _
              $region64: #{closed_call.30} parent=39 // pred_check_branch
                %396 = sbr.rel target = $region66
              $region65: #{closed_call.30} parent=39 // pred_region
                _
              $region66: #{closed_call.30} parent=39 // pred_fallthru
                _
            $region40: #{closed_call.30} parent=35 // pred_fallthru
              _
            // Predicated region
            $region41: #{closed_call.30} parent=35 // pred_check
              _
            $region42: #{closed_call.30} parent=35 // pred_check_branch
              %246 = sbr.rel target = $region44
            $region43: #{closed_call.30} parent=35 // pred_region
              %s248 = ssub.s32 256, 1
              loop: start=0, step=1, limit=1
              $region45: #{closed_call.30} parent=43 // loop_pre_header
                _
              $region46: #{closed_call.30} parent=43 // loop_header
                %s250 = sphi 0, %s254
                %p251 = scmp.ge.s32.totalorder %s250, 1
                %s255 = sphi %s240, %s240
                %s256 = sphi %s237, %s237
              $region47: #{closed_call.30} parent=43 // loop_header_branch
                %253 = sbr.rel (%p251) target = $region51
              $region48: #{closed_call.30} parent=43 // loop_body
                %v257 = vld [vmem:[%s255] sm:%s248]
                %258 = vst [vmem:[%s256] sm:%s248] %v257
                %v259 = vld [vmem:[%s255 + $0x10] sm:%s248]
                %260 = vst [vmem:[%s256 + $0x8] sm:%s248] %v259
                %v261 = vld [vmem:[%s255 + $0x20] sm:%s248]
                %262 = vst [vmem:[%s256 + $0x10] sm:%s248] %v261
                %v263 = vld [vmem:[%s255 + $0x30] sm:%s248]
                %264 = vst [vmem:[%s256 + $0x18] sm:%s248] %v263
                %v265 = vld [vmem:[%s255 + $0x40] sm:%s248]
                %266 = vst [vmem:[%s256 + $0x20] sm:%s248] %v265
                %v267 = vld [vmem:[%s255 + $0x50] sm:%s248]
                %268 = vst [vmem:[%s256 + $0x28] sm:%s248] %v267
                %v269 = vld [vmem:[%s255 + $0x60] sm:%s248]
                %270 = vst [vmem:[%s256 + $0x30] sm:%s248] %v269
                %v271 = vld [vmem:[%s255 + $0x70] sm:%s248]
                %272 = vst [vmem:[%s256 + $0x38] sm:%s248] %v271
                %v273 = vld [vmem:[%s255 + $0x80] sm:%s248]
                %274 = vst [vmem:[%s256 + $0x40] sm:%s248] %v273
                %v275 = vld [vmem:[%s255 + $0x90] sm:%s248]
                %276 = vst [vmem:[%s256 + $0x48] sm:%s248] %v275
                %v277 = vld [vmem:[%s255 + $0xa0] sm:%s248]
                %278 = vst [vmem:[%s256 + $0x50] sm:%s248] %v277
                %v279 = vld [vmem:[%s255 + $0xb0] sm:%s248]
                %280 = vst [vmem:[%s256 + $0x58] sm:%s248] %v279
                %v281 = vld [vmem:[%s255 + $0xc0] sm:%s248]
                %282 = vst [vmem:[%s256 + $0x60] sm:%s248] %v281
                %v283 = vld [vmem:[%s255 + $0xd0] sm:%s248]
                %284 = vst [vmem:[%s256 + $0x68] sm:%s248] %v283
                %v285 = vld [vmem:[%s255 + $0xe0] sm:%s248]
                %286 = vst [vmem:[%s256 + $0x70] sm:%s248] %v285
                %v287 = vld [vmem:[%s255 + $0xf0] sm:%s248]
                %288 = vst [vmem:[%s256 + $0x78] sm:%s248] %v287
                %v289 = vld [vmem:[%s255 + $0x100] sm:%s248]
                %290 = vst [vmem:[%s256 + $0x80] sm:%s248] %v289
                %v291 = vld [vmem:[%s255 + $0x110] sm:%s248]
                %292 = vst [vmem:[%s256 + $0x88] sm:%s248] %v291
                %v293 = vld [vmem:[%s255 + $0x120] sm:%s248]
                %294 = vst [vmem:[%s256 + $0x90] sm:%s248] %v293
                %v295 = vld [vmem:[%s255 + $0x130] sm:%s248]
                %296 = vst [vmem:[%s256 + $0x98] sm:%s248] %v295
                %v297 = vld [vmem:[%s255 + $0x140] sm:%s248]
                %298 = vst [vmem:[%s256 + $0xa0] sm:%s248] %v297
                %v299 = vld [vmem:[%s255 + $0x150] sm:%s248]
                %300 = vst [vmem:[%s256 + $0xa8] sm:%s248] %v299
                %v301 = vld [vmem:[%s255 + $0x160] sm:%s248]
                %302 = vst [vmem:[%s256 + $0xb0] sm:%s248] %v301
                %v303 = vld [vmem:[%s255 + $0x170] sm:%s248]
                %304 = vst [vmem:[%s256 + $0xb8] sm:%s248] %v303
                %v305 = vld [vmem:[%s255 + $0x180] sm:%s248]
                %306 = vst [vmem:[%s256 + $0xc0] sm:%s248] %v305
                %v307 = vld [vmem:[%s255 + $0x190] sm:%s248]
                %308 = vst [vmem:[%s256 + $0xc8] sm:%s248] %v307
                %v309 = vld [vmem:[%s255 + $0x1a0] sm:%s248]
                %310 = vst [vmem:[%s256 + $0xd0] sm:%s248] %v309
                %v311 = vld [vmem:[%s255 + $0x1b0] sm:%s248]
                %312 = vst [vmem:[%s256 + $0xd8] sm:%s248] %v311
                %v313 = vld [vmem:[%s255 + $0x1c0] sm:%s248]
                %314 = vst [vmem:[%s256 + $0xe0] sm:%s248] %v313
                %v315 = vld [vmem:[%s255 + $0x1d0] sm:%s248]
                %316 = vst [vmem:[%s256 + $0xe8] sm:%s248] %v315
                %v317 = vld [vmem:[%s255 + $0x1e0] sm:%s248]
                %318 = vst [vmem:[%s256 + $0xf0] sm:%s248] %v317
                %v319 = vld [vmem:[%s255 + $0x1f0] sm:%s248]
                %320 = vst [vmem:[%s256 + $0xf8] sm:%s248] %v319
              $region49: #{closed_call.30} parent=43 // loop_footer
                %s254 = sadd.s32 1, %s250
              $region50: #{closed_call.30} parent=43 // loop_footer_branch
                %249 = sbr.rel target = $region46
              $region51: #{closed_call.30} parent=43 // loop_exit
                _
            $region44: #{closed_call.30} parent=35 // pred_fallthru
              _
          $region36: #{closed_call.30} parent=31 // pred_fallthru
            _
          %397 = vnop
        $region32: #{closed_call.30} parent=27 // pred_fallthru
          _
        // Predicated region
        $region67: #{closed_call.30} parent=27 // pred_check
          %p398 = pneg %p117
        $region68: #{closed_call.30} parent=27 // pred_check_branch
          %400 = sbr.rel (%p398) target = $region70
        $region69: #{closed_call.30} parent=27 // pred_region
          %s401 = sand.u32 %s107, 1
          %s402 = sand.u32 %s107, 1
          %s403 = smul.addr %s402, 256
          %s404 = scalar_lea.vmem [#allocation5], %s403
          %s405 = smul.u32 2, %s20
          %s406 = smul.addr %s405, 4
          %s407 = scalar_lea.vmem %s3, %s406
          // Predicated region
          $region71: #{closed_call.30} parent=69 // pred_check
            _
          $region72: #{closed_call.30} parent=69 // pred_check_branch
            %409 = sbr.rel (0) target = $region74
          $region73: #{closed_call.30} parent=69 // pred_region
            // Predicated region
            $region75: #{closed_call.30} parent=73 // pred_check
              _
            $region76: #{closed_call.30} parent=73 // pred_check_branch
              %411 = sbr.rel (0) target = $region78
            $region77: #{closed_call.30} parent=73 // pred_region
              // Predicated region
              $region90: #{closed_call.30} parent=77 // pred_check
                _
              $region91: #{closed_call.30} parent=77 // pred_check_branch
                %489 = sbr.rel (0) target = $region93
              $region92: #{closed_call.30} parent=77 // pred_region
                loop: start=0, step=1, limit=1
                $region94: #{closed_call.30} parent=92 // loop_pre_header
                  _
                $region95: #{closed_call.30} parent=92 // loop_header
                  %s491 = sphi 0, %s495
                  %p492 = scmp.ge.s32.totalorder %s491, 1
                  %s496 = sphi %s407, %s407
                  %s497 = sphi %s404, %s404
                $region96: #{closed_call.30} parent=92 // loop_header_branch
                  %494 = sbr.rel (%p492) target = $region100
                $region97: #{closed_call.30} parent=92 // loop_body
                  %v498 = vld [vmem:[%s496] sm:$0xff]
                  %499 = vst [vmem:[%s497] sm:$0xff] %v498
                  %v500 = vld [vmem:[%s496 + $0x10] sm:$0xff]
                  %501 = vst [vmem:[%s497 + $0x8] sm:$0xff] %v500
                  %v502 = vld [vmem:[%s496 + $0x20] sm:$0xff]
                  %503 = vst [vmem:[%s497 + $0x10] sm:$0xff] %v502
                  %v504 = vld [vmem:[%s496 + $0x30] sm:$0xff]
                  %505 = vst [vmem:[%s497 + $0x18] sm:$0xff] %v504
                  %v506 = vld [vmem:[%s496 + $0x40] sm:$0xff]
                  %507 = vst [vmem:[%s497 + $0x20] sm:$0xff] %v506
                  %v508 = vld [vmem:[%s496 + $0x50] sm:$0xff]
                  %509 = vst [vmem:[%s497 + $0x28] sm:$0xff] %v508
                  %v510 = vld [vmem:[%s496 + $0x60] sm:$0xff]
                  %511 = vst [vmem:[%s497 + $0x30] sm:$0xff] %v510
                  %v512 = vld [vmem:[%s496 + $0x70] sm:$0xff]
                  %513 = vst [vmem:[%s497 + $0x38] sm:$0xff] %v512
                  %v514 = vld [vmem:[%s496 + $0x80] sm:$0xff]
                  %515 = vst [vmem:[%s497 + $0x40] sm:$0xff] %v514
                  %v516 = vld [vmem:[%s496 + $0x90] sm:$0xff]
                  %517 = vst [vmem:[%s497 + $0x48] sm:$0xff] %v516
                  %v518 = vld [vmem:[%s496 + $0xa0] sm:$0xff]
                  %519 = vst [vmem:[%s497 + $0x50] sm:$0xff] %v518
                  %v520 = vld [vmem:[%s496 + $0xb0] sm:$0xff]
                  %521 = vst [vmem:[%s497 + $0x58] sm:$0xff] %v520
                  %v522 = vld [vmem:[%s496 + $0xc0] sm:$0xff]
                  %523 = vst [vmem:[%s497 + $0x60] sm:$0xff] %v522
                  %v524 = vld [vmem:[%s496 + $0xd0] sm:$0xff]
                  %525 = vst [vmem:[%s497 + $0x68] sm:$0xff] %v524
                  %v526 = vld [vmem:[%s496 + $0xe0] sm:$0xff]
                  %527 = vst [vmem:[%s497 + $0x70] sm:$0xff] %v526
                  %v528 = vld [vmem:[%s496 + $0xf0] sm:$0xff]
                  %529 = vst [vmem:[%s497 + $0x78] sm:$0xff] %v528
                  %v530 = vld [vmem:[%s496 + $0x100] sm:$0xff]
                  %531 = vst [vmem:[%s497 + $0x80] sm:$0xff] %v530
                  %v532 = vld [vmem:[%s496 + $0x110] sm:$0xff]
                  %533 = vst [vmem:[%s497 + $0x88] sm:$0xff] %v532
                  %v534 = vld [vmem:[%s496 + $0x120] sm:$0xff]
                  %535 = vst [vmem:[%s497 + $0x90] sm:$0xff] %v534
                  %v536 = vld [vmem:[%s496 + $0x130] sm:$0xff]
                  %537 = vst [vmem:[%s497 + $0x98] sm:$0xff] %v536
                  %v538 = vld [vmem:[%s496 + $0x140] sm:$0xff]
                  %539 = vst [vmem:[%s497 + $0xa0] sm:$0xff] %v538
                  %v540 = vld [vmem:[%s496 + $0x150] sm:$0xff]
                  %541 = vst [vmem:[%s497 + $0xa8] sm:$0xff] %v540
                  %v542 = vld [vmem:[%s496 + $0x160] sm:$0xff]
                  %543 = vst [vmem:[%s497 + $0xb0] sm:$0xff] %v542
                  %v544 = vld [vmem:[%s496 + $0x170] sm:$0xff]
                  %545 = vst [vmem:[%s497 + $0xb8] sm:$0xff] %v544
                  %v546 = vld [vmem:[%s496 + $0x180] sm:$0xff]
                  %547 = vst [vmem:[%s497 + $0xc0] sm:$0xff] %v546
                  %v548 = vld [vmem:[%s496 + $0x190] sm:$0xff]
                  %549 = vst [vmem:[%s497 + $0xc8] sm:$0xff] %v548
                  %v550 = vld [vmem:[%s496 + $0x1a0] sm:$0xff]
                  %551 = vst [vmem:[%s497 + $0xd0] sm:$0xff] %v550
                  %v552 = vld [vmem:[%s496 + $0x1b0] sm:$0xff]
                  %553 = vst [vmem:[%s497 + $0xd8] sm:$0xff] %v552
                  %v554 = vld [vmem:[%s496 + $0x1c0] sm:$0xff]
                  %555 = vst [vmem:[%s497 + $0xe0] sm:$0xff] %v554
                  %v556 = vld [vmem:[%s496 + $0x1d0] sm:$0xff]
                  %557 = vst [vmem:[%s497 + $0xe8] sm:$0xff] %v556
                  %v558 = vld [vmem:[%s496 + $0x1e0] sm:$0xff]
                  %559 = vst [vmem:[%s497 + $0xf0] sm:$0xff] %v558
                  %v560 = vld [vmem:[%s496 + $0x1f0] sm:$0xff]
                  %561 = vst [vmem:[%s497 + $0xf8] sm:$0xff] %v560
                $region98: #{closed_call.30} parent=92 // loop_footer
                  %s495 = sadd.s32 1, %s491
                $region99: #{closed_call.30} parent=92 // loop_footer_branch
                  %490 = sbr.rel target = $region95
                $region100: #{closed_call.30} parent=92 // loop_exit
                  _
              $region93: #{closed_call.30} parent=77 // pred_fallthru
                _
              // Predicated region
              $region101: #{closed_call.30} parent=77 // pred_check
                _
              $region102: #{closed_call.30} parent=77 // pred_check_branch
                %563 = sbr.rel target = $region104
              $region103: #{closed_call.30} parent=77 // pred_region
                _
              $region104: #{closed_call.30} parent=77 // pred_fallthru
                _
            $region78: #{closed_call.30} parent=73 // pred_fallthru
              _
            // Predicated region
            $region79: #{closed_call.30} parent=73 // pred_check
              _
            $region80: #{closed_call.30} parent=73 // pred_check_branch
              %413 = sbr.rel target = $region82
            $region81: #{closed_call.30} parent=73 // pred_region
              %s415 = ssub.s32 256, 1
              loop: start=0, step=1, limit=1
              $region83: #{closed_call.30} parent=81 // loop_pre_header
                _
              $region84: #{closed_call.30} parent=81 // loop_header
                %s417 = sphi 0, %s421
                %p418 = scmp.ge.s32.totalorder %s417, 1
                %s422 = sphi %s407, %s407
                %s423 = sphi %s404, %s404
              $region85: #{closed_call.30} parent=81 // loop_header_branch
                %420 = sbr.rel (%p418) target = $region89
              $region86: #{closed_call.30} parent=81 // loop_body
                %v424 = vld [vmem:[%s422] sm:%s415]
                %425 = vst [vmem:[%s423] sm:%s415] %v424
                %v426 = vld [vmem:[%s422 + $0x10] sm:%s415]
                %427 = vst [vmem:[%s423 + $0x8] sm:%s415] %v426
                %v428 = vld [vmem:[%s422 + $0x20] sm:%s415]
                %429 = vst [vmem:[%s423 + $0x10] sm:%s415] %v428
                %v430 = vld [vmem:[%s422 + $0x30] sm:%s415]
                %431 = vst [vmem:[%s423 + $0x18] sm:%s415] %v430
                %v432 = vld [vmem:[%s422 + $0x40] sm:%s415]
                %433 = vst [vmem:[%s423 + $0x20] sm:%s415] %v432
                %v434 = vld [vmem:[%s422 + $0x50] sm:%s415]
                %435 = vst [vmem:[%s423 + $0x28] sm:%s415] %v434
                %v436 = vld [vmem:[%s422 + $0x60] sm:%s415]
                %437 = vst [vmem:[%s423 + $0x30] sm:%s415] %v436
                %v438 = vld [vmem:[%s422 + $0x70] sm:%s415]
                %439 = vst [vmem:[%s423 + $0x38] sm:%s415] %v438
                %v440 = vld [vmem:[%s422 + $0x80] sm:%s415]
                %441 = vst [vmem:[%s423 + $0x40] sm:%s415] %v440
                %v442 = vld [vmem:[%s422 + $0x90] sm:%s415]
                %443 = vst [vmem:[%s423 + $0x48] sm:%s415] %v442
                %v444 = vld [vmem:[%s422 + $0xa0] sm:%s415]
                %445 = vst [vmem:[%s423 + $0x50] sm:%s415] %v444
                %v446 = vld [vmem:[%s422 + $0xb0] sm:%s415]
                %447 = vst [vmem:[%s423 + $0x58] sm:%s415] %v446
                %v448 = vld [vmem:[%s422 + $0xc0] sm:%s415]
                %449 = vst [vmem:[%s423 + $0x60] sm:%s415] %v448
                %v450 = vld [vmem:[%s422 + $0xd0] sm:%s415]
                %451 = vst [vmem:[%s423 + $0x68] sm:%s415] %v450
                %v452 = vld [vmem:[%s422 + $0xe0] sm:%s415]
                %453 = vst [vmem:[%s423 + $0x70] sm:%s415] %v452
                %v454 = vld [vmem:[%s422 + $0xf0] sm:%s415]
                %455 = vst [vmem:[%s423 + $0x78] sm:%s415] %v454
                %v456 = vld [vmem:[%s422 + $0x100] sm:%s415]
                %457 = vst [vmem:[%s423 + $0x80] sm:%s415] %v456
                %v458 = vld [vmem:[%s422 + $0x110] sm:%s415]
                %459 = vst [vmem:[%s423 + $0x88] sm:%s415] %v458
                %v460 = vld [vmem:[%s422 + $0x120] sm:%s415]
                %461 = vst [vmem:[%s423 + $0x90] sm:%s415] %v460
                %v462 = vld [vmem:[%s422 + $0x130] sm:%s415]
                %463 = vst [vmem:[%s423 + $0x98] sm:%s415] %v462
                %v464 = vld [vmem:[%s422 + $0x140] sm:%s415]
                %465 = vst [vmem:[%s423 + $0xa0] sm:%s415] %v464
                %v466 = vld [vmem:[%s422 + $0x150] sm:%s415]
                %467 = vst [vmem:[%s423 + $0xa8] sm:%s415] %v466
                %v468 = vld [vmem:[%s422 + $0x160] sm:%s415]
                %469 = vst [vmem:[%s423 + $0xb0] sm:%s415] %v468
                %v470 = vld [vmem:[%s422 + $0x170] sm:%s415]
                %471 = vst [vmem:[%s423 + $0xb8] sm:%s415] %v470
                %v472 = vld [vmem:[%s422 + $0x180] sm:%s415]
                %473 = vst [vmem:[%s423 + $0xc0] sm:%s415] %v472
                %v474 = vld [vmem:[%s422 + $0x190] sm:%s415]
                %475 = vst [vmem:[%s423 + $0xc8] sm:%s415] %v474
                %v476 = vld [vmem:[%s422 + $0x1a0] sm:%s415]
                %477 = vst [vmem:[%s423 + $0xd0] sm:%s415] %v476
                %v478 = vld [vmem:[%s422 + $0x1b0] sm:%s415]
                %479 = vst [vmem:[%s423 + $0xd8] sm:%s415] %v478
                %v480 = vld [vmem:[%s422 + $0x1c0] sm:%s415]
                %481 = vst [vmem:[%s423 + $0xe0] sm:%s415] %v480
                %v482 = vld [vmem:[%s422 + $0x1d0] sm:%s415]
                %483 = vst [vmem:[%s423 + $0xe8] sm:%s415] %v482
                %v484 = vld [vmem:[%s422 + $0x1e0] sm:%s415]
                %485 = vst [vmem:[%s423 + $0xf0] sm:%s415] %v484
                %v486 = vld [vmem:[%s422 + $0x1f0] sm:%s415]
                %487 = vst [vmem:[%s423 + $0xf8] sm:%s415] %v486
              $region87: #{closed_call.30} parent=81 // loop_footer
                %s421 = sadd.s32 1, %s417
              $region88: #{closed_call.30} parent=81 // loop_footer_branch
                %416 = sbr.rel target = $region84
              $region89: #{closed_call.30} parent=81 // loop_exit
                _
            $region82: #{closed_call.30} parent=73 // pred_fallthru
              _
          $region74: #{closed_call.30} parent=69 // pred_fallthru
            _
          %564 = vnop
        $region70: #{closed_call.30} parent=27 // pred_fallthru
          _
        // Predicated region
        $region105: #{closed_call.30} parent=27 // pred_check
          %p565 = pneg %p143
        $region106: #{closed_call.30} parent=27 // pred_check_branch
          %567 = sbr.rel (%p565) target = $region108
        $region107: #{closed_call.30} parent=27 // pred_region
          %s568 = smul.u32 32, %s20
          %p569 = scmp.lt.s32.totalorder %s568, 63
          %s570 = scalar_select %p569, %s568, 63
          %s571 = smul.addr %s570, 2
          %s572 = smul.addr %s571, 4
          %s573 = scalar_lea.vmem %s4, %s572
          %s574 = smul.u32 32, %s20
        $region108: #{closed_call.30} parent=27 // pred_fallthru
          _
      $region28: #{closed_call.30} parent=5 // pred_fallthru
        _
      %p575 = scmp.le.s32.totalorder 1, %s12
      %p576 = scmp.lt.s32.totalorder %s12, 3
      %p577 = pnand %p575, %p576
      %p578 = pneg %p577
      // Predicated region
      $region109: #{closed_call.30} parent=5 // pred_check
        _
      $region110: #{closed_call.30} parent=5 // pred_check_branch
        %580 = sbr.rel (%p577) target = $region112
      $region111: #{closed_call.30} parent=5 // pred_region
        %s581 = ssub.s32 %s12, 1
        %s582 = sand.u32 %s84, 1
        %s583 = sand.u32 %s84, 1
        %s584 = smul.addr %s583, 256
        %s585 = scalar_lea.vmem [#allocation4], %s584
        // Predicated region
        $region113: #{closed_call.30} parent=111 // pred_check
          %p586 = pneg %p97
        $region114: #{closed_call.30} parent=111 // pred_check_branch
          %588 = sbr.rel (%p586) target = $region116
        $region115: #{closed_call.30} parent=111 // pred_region
          _
        $region116: #{closed_call.30} parent=111 // pred_fallthru
          _
        %s589 = sand.u32 %s110, 1
        %s590 = sand.u32 %s110, 1
        %s591 = smul.addr %s590, 256
        %s592 = scalar_lea.vmem [#allocation5], %s591
        // Predicated region
        $region117: #{closed_call.30} parent=111 // pred_check
          %p593 = pneg %p123
        $region118: #{closed_call.30} parent=111 // pred_check_branch
          %595 = sbr.rel (%p593) target = $region120
        $region119: #{closed_call.30} parent=111 // pred_region
          _
        $region120: #{closed_call.30} parent=111 // pred_fallthru
          _
        %s596 = smul.u32 2, %s21
        %p597 = scmp.lt.s32.totalorder %s596, 1
        %s598 = scalar_select %p597, %s596, 1
        %s599 = smul.addr %s598, 2
        %s600 = smul.addr %s599, 8
        %s601 = scalar_lea.vmem %s0, %s600
        %p602 = pneg %p50
        %p603 = pneg %p47
        %p604 = pneg %p71
        %p605 = pneg %p68
        %s606 = sand.u32 %s84, 1
        %s607 = sand.u32 %s84, 1
        %s608 = smul.addr %s607, 256
        %s609 = scalar_lea.vmem [#allocation4], %s608
        %p610 = pneg %p97
        %p611 = pneg %p94
        %s612 = sand.u32 %s110, 1
        %s613 = sand.u32 %s110, 1
        %s614 = smul.addr %s613, 256
        %s615 = scalar_lea.vmem [#allocation5], %s614
        %p616 = pneg %p123
        %p617 = pneg %p120
        %s618 = smul.u32 32, %s22
        %p619 = scmp.lt.s32.totalorder %s618, 63
        %s620 = scalar_select %p619, %s618, 63
        %s621 = smul.addr %s620, 2
        %s622 = smul.addr %s621, 4
        %s623 = scalar_lea.vmem %s4, %s622
        %p624 = pneg %p149
        %p625 = pneg %p146
        %p626 = pneg %p170
        %p627 = pneg %p167
        %p628 = pneg %p196
        %p629 = pneg %p193
        %s630 = smul.u32 2, %s21
        %p631 = scmp.lt.s32.totalorder %s630, 1
        %s632 = scalar_select %p631, %s630, 1
        %s633 = smul.addr %s632, 2
        %s634 = smul.addr %s633, 8
        %s635 = scalar_lea.vmem %s6, %s634
        %s636 = smul.u32 2, %s21
        %p637 = scmp.lt.s32.totalorder %s636, 1
        %s638 = scalar_select %p637, %s636, 1
        %s639 = smul.addr %s638, 2
        %s640 = smul.addr %s639, 8
        %s641 = scalar_lea.vmem %s0, %s640
        %s642 = smul.u32 2, %s21
        %s643 = smul.u32 2, %s22
        %s644 = smul.u32 2, %s22
        %s645 = smul.u32 32, %s22
        %p646 = scmp.lt.s32.totalorder %s645, 63
        %s647 = scalar_select %p646, %s645, 63
        %s648 = smul.addr %s647, 2
        %s649 = smul.addr %s648, 4
        %s650 = scalar_lea.vmem %s4, %s649
        %s651 = smul.u32 32, %s22
        %s652 = smul.u32 2, %s21
        %p653 = scmp.lt.s32.totalorder %s652, 1
        %s654 = scalar_select %p653, %s652, 1
        %s655 = smul.addr %s654, 2
        %s656 = smul.addr %s655, 8
        %s657 = scalar_lea.vmem %s6, %s656
        %s658 = smul.u32 2, %s21
        %p659 = scmp.eq.s32.totalorder %s22, 0
        // Predicated region
        $region121: #{closed_call.30} parent=111 // pred_check
          %p660 = pneg %p659
        $region122: #{closed_call.30} parent=111 // pred_check_branch
          %662 = sbr.rel (%p660) target = $region124
        $region123: #{closed_call.30} parent=111 // pred_region
          %v663 = vld [vmem:[%s641] sm:$0xff]
          %v664 = vld [vmem:[%s641 + $0x8] sm:$0xff]
          %v665 = vld [vmem:[%s641 + $0x10] sm:$0xff]
          %v666 = vld [vmem:[%s641 + $0x18] sm:$0xff]
          %v667 = vmul.f32 %v663, %v663
          %v668 = vmul.f32 %v664, %v664
          %v669 = vmul.f32 %v665, %v665
          %v670 = vmul.f32 %v666, %v666
          %v671 = vadd.f32 %v667, %v668
          %672 = vadd.xlane.f32.xlu0 %v671
          %v673 = vpop.xlane.xlu0 %672
          %v674 = vadd.f32 %v669, %v670
          %675 = vadd.xlane.f32.xlu0 %v674
          %v676 = vpop.xlane.xlu0 %675
          %v677 = vrcp.pop 256.0
          %v678 = vmul.f32 256.0, %v677
          %v679 = vsub.f32 1.0, %v678
          %v680 = vmul.f32 %v677, %v679
          %v681 = vadd.f32 %v677, %v680
          %vm682 = vweird.f32 %v677
          %v683 = vsel %vm682, %v677, %v681
          %v684 = vmul.f32 %v673, %v683
          %v685 = vmul.f32 %v676, %v683
          %v686 = vadd.f32 %v684, 1e-06
          %v687 = vadd.f32 %v685, 1e-06
          %v688 = vrsqrt.pop %v686
          %v689 = vmul.f32 %v688, %v686
          %v690 = vmul.f32 %v689, %v688
          %v691 = vmul.f32 0.5, %v690
          %v692 = vsub.f32 1.5, %v691
          %v693 = vmul.f32 %v688, %v692
          %vm694 = vweird.f32 %v686
          %vm695 = vweird.f32 %v688
          %vm696 = vmor %vm694, %vm695
          %v697 = vsel %vm696, %v688, %v693
          %v698 = vrsqrt.pop %v687
          %v699 = vmul.f32 %v698, %v687
          %v700 = vmul.f32 %v699, %v698
          %v701 = vmul.f32 0.5, %v700
          %v702 = vsub.f32 1.5, %v701
          %v703 = vmul.f32 %v698, %v702
          %vm704 = vweird.f32 %v687
          %vm705 = vweird.f32 %v698
          %vm706 = vmor %vm704, %vm705
          %v707 = vsel %vm706, %v698, %v703
          %v708 = vmul.f32 %v663, %v697
          %v709 = vmul.f32 %v664, %v697
          %v710 = vmul.f32 %v665, %v707
          %v711 = vmul.f32 %v666, %v707
          %v712 = vld [vmem:[%s1] sm:$0x3]
          %v713 = vadd.f32 %v712, 1.0
          %v715 = vperm.slane %v713, 0
          %v716 = vperm.slane %v713, 1
          %v719 = vmul.f32 %v708, %v715
          %v720 = vmul.f32 %v709, %v716
          %v721 = vmul.f32 %v710, %v715
          %v722 = vmul.f32 %v711, %v716
          %v723 = vpack.c.bf16 %v720, %v719
          %v724 = vpack.c.bf16 %v722, %v721
          %725 = vst [vmem:[#allocation2] sm:$0xff] %v723
          %726 = vst [vmem:[#allocation2 + $0x8] sm:$0xff] %v724
          %727 = vst [vmem:[#allocation3] sm:$0xff] 0.0
          %728 = vst [vmem:[#allocation3 + $0x8] sm:$0xff] 0.0
          %729 = vst [vmem:[#allocation3 + $0x10] sm:$0xff] 0.0
          %730 = vst [vmem:[#allocation3 + $0x18] sm:$0xff] 0.0
        $region124: #{closed_call.30} parent=111 // pred_fallthru
          _
        %v731 = vld [vmem:[#allocation2] sm:$0xff]
        %v732 = vld [vmem:[#allocation2 + $0x8] sm:$0xff]
        %v733 = vld [vmem:[%s585] sm:$0xff]
        %v734 = vld [vmem:[%s585 + $0x8] sm:$0xff]
        %v735 = vld [vmem:[%s585 + $0x10] sm:$0xff]
        %v736 = vld [vmem:[%s585 + $0x18] sm:$0xff]
        %v737 = vld [vmem:[%s585 + $0x20] sm:$0xff]
        %v738 = vld [vmem:[%s585 + $0x28] sm:$0xff]
        %v739 = vld [vmem:[%s585 + $0x30] sm:$0xff]
        %v740 = vld [vmem:[%s585 + $0x38] sm:$0xff]
        %v741 = vld [vmem:[%s585 + $0x40] sm:$0xff]
        %v742 = vld [vmem:[%s585 + $0x48] sm:$0xff]
        %v743 = vld [vmem:[%s585 + $0x50] sm:$0xff]
        %v744 = vld [vmem:[%s585 + $0x58] sm:$0xff]
        %v745 = vld [vmem:[%s585 + $0x60] sm:$0xff]
        %v746 = vld [vmem:[%s585 + $0x68] sm:$0xff]
        %v747 = vld [vmem:[%s585 + $0x70] sm:$0xff]
        %v748 = vld [vmem:[%s585 + $0x78] sm:$0xff]
        %v749 = vld [vmem:[%s585 + $0x80] sm:$0xff]
        %v750 = vld [vmem:[%s585 + $0x88] sm:$0xff]
        %v751 = vld [vmem:[%s585 + $0x90] sm:$0xff]
        %v752 = vld [vmem:[%s585 + $0x98] sm:$0xff]
        %v753 = vld [vmem:[%s585 + $0xa0] sm:$0xff]
        %v754 = vld [vmem:[%s585 + $0xa8] sm:$0xff]
        %v755 = vld [vmem:[%s585 + $0xb0] sm:$0xff]
        %v756 = vld [vmem:[%s585 + $0xb8] sm:$0xff]
        %v757 = vld [vmem:[%s585 + $0xc0] sm:$0xff]
        %v758 = vld [vmem:[%s585 + $0xc8] sm:$0xff]
        %v759 = vld [vmem:[%s585 + $0xd0] sm:$0xff]
        %v760 = vld [vmem:[%s585 + $0xd8] sm:$0xff]
        %v761 = vld [vmem:[%s585 + $0xe0] sm:$0xff]
        %v762 = vld [vmem:[%s585 + $0xe8] sm:$0xff]
        %v763 = vld [vmem:[%s585 + $0xf0] sm:$0xff]
        %v764 = vld [vmem:[%s585 + $0xf8] sm:$0xff]
        %v767 = vunpack.c.l.b16 %v731
        %v768 = vunpack.c.h.b16 %v731
        %v769 = vunpack.c.l.b16 %v732
        %v770 = vunpack.c.h.b16 %v732
        %v771 = vpack.c.b16 %v769, %v767
        %v772 = vpack.c.b16 %v770, %v768
        %v807 = vunpack.c.l.b16 %v733
        %v808 = vunpack.c.h.b16 %v733
        %v809 = vunpack.c.l.b16 %v734
        %v810 = vunpack.c.h.b16 %v734
        %v811 = vunpack.c.l.b16 %v735
        %v812 = vunpack.c.h.b16 %v735
        %v813 = vunpack.c.l.b16 %v736
        %v814 = vunpack.c.h.b16 %v736
        %v815 = vunpack.c.l.b16 %v737
        %v816 = vunpack.c.h.b16 %v737
        %v817 = vunpack.c.l.b16 %v738
        %v818 = vunpack.c.h.b16 %v738
        %v819 = vunpack.c.l.b16 %v739
        %v820 = vunpack.c.h.b16 %v739
        %v821 = vunpack.c.l.b16 %v740
        %v822 = vunpack.c.h.b16 %v740
        %v823 = vunpack.c.l.b16 %v741
        %v824 = vunpack.c.h.b16 %v741
        %v825 = vunpack.c.l.b16 %v742
        %v826 = vunpack.c.h.b16 %v742
        %v827 = vunpack.c.l.b16 %v743
        %v828 = vunpack.c.h.b16 %v743
        %v829 = vunpack.c.l.b16 %v744
        %v830 = vunpack.c.h.b16 %v744
        %v831 = vunpack.c.l.b16 %v745
        %v832 = vunpack.c.h.b16 %v745
        %v833 = vunpack.c.l.b16 %v746
        %v834 = vunpack.c.h.b16 %v746
        %v835 = vunpack.c.l.b16 %v747
        %v836 = vunpack.c.h.b16 %v747
        %v837 = vunpack.c.l.b16 %v748
        %v838 = vunpack.c.h.b16 %v748
        %v839 = vunpack.c.l.b16 %v749
        %v840 = vunpack.c.h.b16 %v749
        %v841 = vunpack.c.l.b16 %v750
        %v842 = vunpack.c.h.b16 %v750
        %v843 = vunpack.c.l.b16 %v751
        %v844 = vunpack.c.h.b16 %v751
        %v845 = vunpack.c.l.b16 %v752
        %v846 = vunpack.c.h.b16 %v752
        %v847 = vunpack.c.l.b16 %v753
        %v848 = vunpack.c.h.b16 %v753
        %v849 = vunpack.c.l.b16 %v754
        %v850 = vunpack.c.h.b16 %v754
        %v851 = vunpack.c.l.b16 %v755
        %v852 = vunpack.c.h.b16 %v755
        %v853 = vunpack.c.l.b16 %v756
        %v854 = vunpack.c.h.b16 %v756
        %v855 = vunpack.c.l.b16 %v757
        %v856 = vunpack.c.h.b16 %v757
        %v857 = vunpack.c.l.b16 %v758
        %v858 = vunpack.c.h.b16 %v758
        %v859 = vunpack.c.l.b16 %v759
        %v860 = vunpack.c.h.b16 %v759
        %v861 = vunpack.c.l.b16 %v760
        %v862 = vunpack.c.h.b16 %v760
        %v863 = vunpack.c.l.b16 %v761
        %v864 = vunpack.c.h.b16 %v761
        %v865 = vunpack.c.l.b16 %v762
        %v866 = vunpack.c.h.b16 %v762
        %v867 = vunpack.c.l.b16 %v763
        %v868 = vunpack.c.h.b16 %v763
        %v869 = vunpack.c.l.b16 %v764
        %v870 = vunpack.c.h.b16 %v764
        %v871 = vpack.c.b16 %v809, %v807
        %v872 = vpack.c.b16 %v810, %v808
        %v873 = vpack.c.b16 %v813, %v811
        %v874 = vpack.c.b16 %v814, %v812
        %v875 = vpack.c.b16 %v817, %v815
        %v876 = vpack.c.b16 %v818, %v816
        %v877 = vpack.c.b16 %v821, %v819
        %v878 = vpack.c.b16 %v822, %v820
        %v879 = vpack.c.b16 %v825, %v823
        %v880 = vpack.c.b16 %v826, %v824
        %v881 = vpack.c.b16 %v829, %v827
        %v882 = vpack.c.b16 %v830, %v828
        %v883 = vpack.c.b16 %v833, %v831
        %v884 = vpack.c.b16 %v834, %v832
        %v885 = vpack.c.b16 %v837, %v835
        %v886 = vpack.c.b16 %v838, %v836
        %v887 = vpack.c.b16 %v841, %v839
        %v888 = vpack.c.b16 %v842, %v840
        %v889 = vpack.c.b16 %v845, %v843
        %v890 = vpack.c.b16 %v846, %v844
        %v891 = vpack.c.b16 %v849, %v847
        %v892 = vpack.c.b16 %v850, %v848
        %v893 = vpack.c.b16 %v853, %v851
        %v894 = vpack.c.b16 %v854, %v852
        %v895 = vpack.c.b16 %v857, %v855
        %v896 = vpack.c.b16 %v858, %v856
        %v897 = vpack.c.b16 %v861, %v859
        %v898 = vpack.c.b16 %v862, %v860
        %v899 = vpack.c.b16 %v865, %v863
        %v900 = vpack.c.b16 %v866, %v864
        %v901 = vpack.c.b16 %v869, %v867
        %v902 = vpack.c.b16 %v870, %v868
        %935 = vmatpush.bf16.msra.mxu0 %v885
        %936 = vmatpush.bf16.msra.mxu0 %v883
        %937 = vmatpush.bf16.msra.mxu0 %v881
        %938 = vmatpush.bf16.msra.mxu0 %v879
        %939 = vmatpush.bf16.msra.mxu0 %v877
        %940 = vmatpush.bf16.msra.mxu0 %v875
        %941 = vmatpush.bf16.msra.mxu0 %v873
        %942 = vmatpush.bf16.msra.mxu0 %v871
        %943 = vmatmul.bf16.gmra.mxu0 %v771
        %v944 = vpop.f32.mrf.mxu0
        %v945 = vadd.f32 0.0, %v944
        %v946 = vpop.f32.mrf.mxu0
        %v947 = vadd.f32 0.0, %v946
        %948 = vdwg.mxu0
        %949 = vmatpush.bf16.msra.mxu0 %v901
        %950 = vmatpush.bf16.msra.mxu0 %v899
        %951 = vmatpush.bf16.msra.mxu0 %v897
        %952 = vmatpush.bf16.msra.mxu0 %v895
        %953 = vmatpush.bf16.msra.mxu0 %v893
        %954 = vmatpush.bf16.msra.mxu0 %v891
        %955 = vmatpush.bf16.msra.mxu0 %v889
        %956 = vmatpush.bf16.msra.mxu0 %v887
        %957 = vmatmul.bf16.gmra.mxu0 %v772
        %v958 = vpop.f32.mrf.mxu0
        %v959 = vadd.f32 %v945, %v958
        %v960 = vpop.f32.mrf.mxu0
        %v961 = vadd.f32 %v947, %v960
        %962 = vdwg.mxu0
        %963 = vmatpush.bf16.msra.mxu0 %v886
        %964 = vmatpush.bf16.msra.mxu0 %v884
        %965 = vmatpush.bf16.msra.mxu0 %v882
        %966 = vmatpush.bf16.msra.mxu0 %v880
        %967 = vmatpush.bf16.msra.mxu0 %v878
        %968 = vmatpush.bf16.msra.mxu0 %v876
        %969 = vmatpush.bf16.msra.mxu0 %v874
        %970 = vmatpush.bf16.msra.mxu0 %v872
        %971 = vmatmul.bf16.gmra.mxu0 %v771
        %v972 = vpop.f32.mrf.mxu0
        %v973 = vadd.f32 0.0, %v972
        %v974 = vpop.f32.mrf.mxu0
        %v975 = vadd.f32 0.0, %v974
        %976 = vdwg.mxu0
        %977 = vmatpush.bf16.msra.mxu0 %v902
        %978 = vmatpush.bf16.msra.mxu0 %v900
        %979 = vmatpush.bf16.msra.mxu0 %v898
        %980 = vmatpush.bf16.msra.mxu0 %v896
        %981 = vmatpush.bf16.msra.mxu0 %v894
        %982 = vmatpush.bf16.msra.mxu0 %v892
        %983 = vmatpush.bf16.msra.mxu0 %v890
        %984 = vmatpush.bf16.msra.mxu0 %v888
        %985 = vmatmul.bf16.gmra.mxu0 %v772
        %v986 = vpop.f32.mrf.mxu0
        %v987 = vadd.f32 %v973, %v986
        %v988 = vpop.f32.mrf.mxu0
        %v989 = vadd.f32 %v975, %v988
        %990 = vdwg.mxu0
        %v991 = vld [vmem:[%s592] sm:$0xff]
        %v992 = vld [vmem:[%s592 + $0x8] sm:$0xff]
        %v993 = vld [vmem:[%s592 + $0x10] sm:$0xff]
        %v994 = vld [vmem:[%s592 + $0x18] sm:$0xff]
        %v995 = vld [vmem:[%s592 + $0x20] sm:$0xff]
        %v996 = vld [vmem:[%s592 + $0x28] sm:$0xff]
        %v997 = vld [vmem:[%s592 + $0x30] sm:$0xff]
        %v998 = vld [vmem:[%s592 + $0x38] sm:$0xff]
        %v999 = vld [vmem:[%s592 + $0x40] sm:$0xff]
        %v1000 = vld [vmem:[%s592 + $0x48] sm:$0xff]
        %v1001 = vld [vmem:[%s592 + $0x50] sm:$0xff]
        %v1002 = vld [vmem:[%s592 + $0x58] sm:$0xff]
        %v1003 = vld [vmem:[%s592 + $0x60] sm:$0xff]
        %v1004 = vld [vmem:[%s592 + $0x68] sm:$0xff]
        %v1005 = vld [vmem:[%s592 + $0x70] sm:$0xff]
        %v1006 = vld [vmem:[%s592 + $0x78] sm:$0xff]
        %v1007 = vld [vmem:[%s592 + $0x80] sm:$0xff]
        %v1008 = vld [vmem:[%s592 + $0x88] sm:$0xff]
        %v1009 = vld [vmem:[%s592 + $0x90] sm:$0xff]
        %v1010 = vld [vmem:[%s592 + $0x98] sm:$0xff]
        %v1011 = vld [vmem:[%s592 + $0xa0] sm:$0xff]
        %v1012 = vld [vmem:[%s592 + $0xa8] sm:$0xff]
        %v1013 = vld [vmem:[%s592 + $0xb0] sm:$0xff]
        %v1014 = vld [vmem:[%s592 + $0xb8] sm:$0xff]
        %v1015 = vld [vmem:[%s592 + $0xc0] sm:$0xff]
        %v1016 = vld [vmem:[%s592 + $0xc8] sm:$0xff]
        %v1017 = vld [vmem:[%s592 + $0xd0] sm:$0xff]
        %v1018 = vld [vmem:[%s592 + $0xd8] sm:$0xff]
        %v1019 = vld [vmem:[%s592 + $0xe0] sm:$0xff]
        %v1020 = vld [vmem:[%s592 + $0xe8] sm:$0xff]
        %v1021 = vld [vmem:[%s592 + $0xf0] sm:$0xff]
        %v1022 = vld [vmem:[%s592 + $0xf8] sm:$0xff]
        %v1055 = vunpack.c.l.b16 %v991
        %v1056 = vunpack.c.h.b16 %v991
        %v1057 = vunpack.c.l.b16 %v992
        %v1058 = vunpack.c.h.b16 %v992
        %v1059 = vunpack.c.l.b16 %v993
        %v1060 = vunpack.c.h.b16 %v993
        %v1061 = vunpack.c.l.b16 %v994
        %v1062 = vunpack.c.h.b16 %v994
        %v1063 = vunpack.c.l.b16 %v995
        %v1064 = vunpack.c.h.b16 %v995
        %v1065 = vunpack.c.l.b16 %v996
        %v1066 = vunpack.c.h.b16 %v996
        %v1067 = vunpack.c.l.b16 %v997
        %v1068 = vunpack.c.h.b16 %v997
        %v1069 = vunpack.c.l.b16 %v998
        %v1070 = vunpack.c.h.b16 %v998
        %v1071 = vunpack.c.l.b16 %v999
        %v1072 = vunpack.c.h.b16 %v999
        %v1073 = vunpack.c.l.b16 %v1000
        %v1074 = vunpack.c.h.b16 %v1000
        %v1075 = vunpack.c.l.b16 %v1001
        %v1076 = vunpack.c.h.b16 %v1001
        %v1077 = vunpack.c.l.b16 %v1002
        %v1078 = vunpack.c.h.b16 %v1002
        %v1079 = vunpack.c.l.b16 %v1003
        %v1080 = vunpack.c.h.b16 %v1003
        %v1081 = vunpack.c.l.b16 %v1004
        %v1082 = vunpack.c.h.b16 %v1004
        %v1083 = vunpack.c.l.b16 %v1005
        %v1084 = vunpack.c.h.b16 %v1005
        %v1085 = vunpack.c.l.b16 %v1006
        %v1086 = vunpack.c.h.b16 %v1006
        %v1087 = vunpack.c.l.b16 %v1007
        %v1088 = vunpack.c.h.b16 %v1007
        %v1089 = vunpack.c.l.b16 %v1008
        %v1090 = vunpack.c.h.b16 %v1008
        %v1091 = vunpack.c.l.b16 %v1009
        %v1092 = vunpack.c.h.b16 %v1009
        %v1093 = vunpack.c.l.b16 %v1010
        %v1094 = vunpack.c.h.b16 %v1010
        %v1095 = vunpack.c.l.b16 %v1011
        %v1096 = vunpack.c.h.b16 %v1011
        %v1097 = vunpack.c.l.b16 %v1012
        %v1098 = vunpack.c.h.b16 %v1012
        %v1099 = vunpack.c.l.b16 %v1013
        %v1100 = vunpack.c.h.b16 %v1013
        %v1101 = vunpack.c.l.b16 %v1014
        %v1102 = vunpack.c.h.b16 %v1014
        %v1103 = vunpack.c.l.b16 %v1015
        %v1104 = vunpack.c.h.b16 %v1015
        %v1105 = vunpack.c.l.b16 %v1016
        %v1106 = vunpack.c.h.b16 %v1016
        %v1107 = vunpack.c.l.b16 %v1017
        %v1108 = vunpack.c.h.b16 %v1017
        %v1109 = vunpack.c.l.b16 %v1018
        %v1110 = vunpack.c.h.b16 %v1018
        %v1111 = vunpack.c.l.b16 %v1019
        %v1112 = vunpack.c.h.b16 %v1019
        %v1113 = vunpack.c.l.b16 %v1020
        %v1114 = vunpack.c.h.b16 %v1020
        %v1115 = vunpack.c.l.b16 %v1021
        %v1116 = vunpack.c.h.b16 %v1021
        %v1117 = vunpack.c.l.b16 %v1022
        %v1118 = vunpack.c.h.b16 %v1022
        %v1119 = vpack.c.b16 %v1057, %v1055
        %v1120 = vpack.c.b16 %v1058, %v1056
        %v1121 = vpack.c.b16 %v1061, %v1059
        %v1122 = vpack.c.b16 %v1062, %v1060
        %v1123 = vpack.c.b16 %v1065, %v1063
        %v1124 = vpack.c.b16 %v1066, %v1064
        %v1125 = vpack.c.b16 %v1069, %v1067
        %v1126 = vpack.c.b16 %v1070, %v1068
        %v1127 = vpack.c.b16 %v1073, %v1071
        %v1128 = vpack.c.b16 %v1074, %v1072
        %v1129 = vpack.c.b16 %v1077, %v1075
        %v1130 = vpack.c.b16 %v1078, %v1076
        %v1131 = vpack.c.b16 %v1081, %v1079
        %v1132 = vpack.c.b16 %v1082, %v1080
        %v1133 = vpack.c.b16 %v1085, %v1083
        %v1134 = vpack.c.b16 %v1086, %v1084
        %v1135 = vpack.c.b16 %v1089, %v1087
        %v1136 = vpack.c.b16 %v1090, %v1088
        %v1137 = vpack.c.b16 %v1093, %v1091
        %v1138 = vpack.c.b16 %v1094, %v1092
        %v1139 = vpack.c.b16 %v1097, %v1095
        %v1140 = vpack.c.b16 %v1098, %v1096
        %v1141 = vpack.c.b16 %v1101, %v1099
        %v1142 = vpack.c.b16 %v1102, %v1100
        %v1143 = vpack.c.b16 %v1105, %v1103
        %v1144 = vpack.c.b16 %v1106, %v1104
        %v1145 = vpack.c.b16 %v1109, %v1107
        %v1146 = vpack.c.b16 %v1110, %v1108
        %v1147 = vpack.c.b16 %v1113, %v1111
        %v1148 = vpack.c.b16 %v1114, %v1112
        %v1149 = vpack.c.b16 %v1117, %v1115
        %v1150 = vpack.c.b16 %v1118, %v1116
        %1183 = vmatpush.bf16.msra.mxu0 %v1133
        %1184 = vmatpush.bf16.msra.mxu0 %v1131
        %1185 = vmatpush.bf16.msra.mxu0 %v1129
        %1186 = vmatpush.bf16.msra.mxu0 %v1127
        %1187 = vmatpush.bf16.msra.mxu0 %v1125
        %1188 = vmatpush.bf16.msra.mxu0 %v1123
        %1189 = vmatpush.bf16.msra.mxu0 %v1121
        %1190 = vmatpush.bf16.msra.mxu0 %v1119
        %1191 = vmatmul.bf16.gmra.mxu0 %v771
        %v1192 = vpop.f32.mrf.mxu0
        %v1193 = vadd.f32 0.0, %v1192
        %v1194 = vpop.f32.mrf.mxu0
        %v1195 = vadd.f32 0.0, %v1194
        %1196 = vdwg.mxu0
        %1197 = vmatpush.bf16.msra.mxu0 %v1149
        %1198 = vmatpush.bf16.msra.mxu0 %v1147
        %1199 = vmatpush.bf16.msra.mxu0 %v1145
        %1200 = vmatpush.bf16.msra.mxu0 %v1143
        %1201 = vmatpush.bf16.msra.mxu0 %v1141
        %1202 = vmatpush.bf16.msra.mxu0 %v1139
        %1203 = vmatpush.bf16.msra.mxu0 %v1137
        %1204 = vmatpush.bf16.msra.mxu0 %v1135
        %1205 = vmatmul.bf16.gmra.mxu0 %v772
        %v1206 = vpop.f32.mrf.mxu0
        %v1207 = vadd.f32 %v1193, %v1206
        %v1208 = vpop.f32.mrf.mxu0
        %v1209 = vadd.f32 %v1195, %v1208
        %1210 = vdwg.mxu0
        %1211 = vmatpush.bf16.msra.mxu0 %v1134
        %1212 = vmatpush.bf16.msra.mxu0 %v1132
        %1213 = vmatpush.bf16.msra.mxu0 %v1130
        %1214 = vmatpush.bf16.msra.mxu0 %v1128
        %1215 = vmatpush.bf16.msra.mxu0 %v1126
        %1216 = vmatpush.bf16.msra.mxu0 %v1124
        %1217 = vmatpush.bf16.msra.mxu0 %v1122
        %1218 = vmatpush.bf16.msra.mxu0 %v1120
        %1219 = vmatmul.bf16.gmra.mxu0 %v771
        %v1220 = vpop.f32.mrf.mxu0
        %v1221 = vadd.f32 0.0, %v1220
        %v1222 = vpop.f32.mrf.mxu0
        %v1223 = vadd.f32 0.0, %v1222
        %1224 = vdwg.mxu0
        %1225 = vmatpush.bf16.msra.mxu0 %v1150
        %1226 = vmatpush.bf16.msra.mxu0 %v1148
        %1227 = vmatpush.bf16.msra.mxu0 %v1146
        %1228 = vmatpush.bf16.msra.mxu0 %v1144
        %1229 = vmatpush.bf16.msra.mxu0 %v1142
        %1230 = vmatpush.bf16.msra.mxu0 %v1140
        %1231 = vmatpush.bf16.msra.mxu0 %v1138
        %1232 = vmatpush.bf16.msra.mxu0 %v1136
        %1233 = vmatmul.bf16.gmra.mxu0 %v772
        %v1234 = vpop.f32.mrf.mxu0
        %v1235 = vadd.f32 %v1221, %v1234
        %v1236 = vpop.f32.mrf.mxu0
        %v1237 = vadd.f32 %v1223, %v1236
        %1238 = vdwg.mxu0
        %v1239 = vmul.f32 %v959, 0.5
        %v1240 = vmul.f32 %v987, 0.5
        %v1241 = vmul.f32 %v961, 0.5
        %v1242 = vmul.f32 %v989, 0.5
        %v1243 = vmul.f32 %v959, 0.70710677
        %v1244 = vmul.f32 %v987, 0.70710677
        %v1245 = vmul.f32 %v961, 0.70710677
        %v1246 = vmul.f32 %v989, 0.70710677
        %vm1247 = vcmp.ge.f32.partialorder %v1243, 0.0
        %vm1248 = vcmp.ge.f32.partialorder %v1244, 0.0
        %vm1249 = vcmp.ge.f32.partialorder %v1245, 0.0
        %vm1250 = vcmp.ge.f32.partialorder %v1246, 0.0
        %v1251 = vsel %vm1247, 1.0, -1.0
        %v1252 = vsel %vm1248, 1.0, -1.0
        %v1253 = vsel %vm1249, 1.0, -1.0
        %v1254 = vsel %vm1250, 1.0, -1.0
        %v1255 = vand.u32 2147483647, %v1243
        %v1256 = vand.u32 2147483647, %v1244
        %v1257 = vand.u32 2147483647, %v1245
        %v1258 = vand.u32 2147483647, %v1246
        %v1259 = vmul.f32 %v1255, 0.3275911
        %v1260 = vmul.f32 %v1256, 0.3275911
        %v1261 = vmul.f32 %v1257, 0.3275911
        %v1262 = vmul.f32 %v1258, 0.3275911
        %v1263 = vadd.f32 %v1259, 1.0
        %v1264 = vadd.f32 %v1260, 1.0
        %v1265 = vadd.f32 %v1261, 1.0
        %v1266 = vadd.f32 %v1262, 1.0
        %v1267 = vrcp.pop %v1263
        %v1268 = vmul.f32 %v1263, %v1267
        %v1269 = vsub.f32 1.0, %v1268
        %v1270 = vmul.f32 %v1267, %v1269
        %v1271 = vadd.f32 %v1267, %v1270
        %vm1272 = vweird.f32 %v1263
        %vm1273 = vweird.f32 %v1267
        %vm1274 = vmor %vm1272, %vm1273
        %v1275 = vsel %vm1274, %v1267, %v1271
        %v1276 = vand.u32 2147483647, %v1263
        %vm1277 = vcmp.eq.f32.partialorder %v1276, 8.507059e+37
        %v1278 = vand.u32 %v1263, 2147483648
        %v1279 = vor.u32 1.1754944e-38, %v1278
        %v1280 = vsel %vm1277, %v1279, %v1275
        %v1281 = vmul.f32 1.0, %v1280
        %v1282 = vrcp.pop %v1264
        %v1283 = vmul.f32 %v1264, %v1282
        %v1284 = vsub.f32 1.0, %v1283
        %v1285 = vmul.f32 %v1282, %v1284
        %v1286 = vadd.f32 %v1282, %v1285
        %vm1287 = vweird.f32 %v1264
        %vm1288 = vweird.f32 %v1282
        %vm1289 = vmor %vm1287, %vm1288
        %v1290 = vsel %vm1289, %v1282, %v1286
        %v1291 = vand.u32 2147483647, %v1264
        %vm1292 = vcmp.eq.f32.partialorder %v1291, 8.507059e+37
        %v1293 = vand.u32 %v1264, 2147483648
        %v1294 = vor.u32 1.1754944e-38, %v1293
        %v1295 = vsel %vm1292, %v1294, %v1290
        %v1296 = vmul.f32 1.0, %v1295
        %v1297 = vrcp.pop %v1265
        %v1298 = vmul.f32 %v1265, %v1297
        %v1299 = vsub.f32 1.0, %v1298
        %v1300 = vmul.f32 %v1297, %v1299
        %v1301 = vadd.f32 %v1297, %v1300
        %vm1302 = vweird.f32 %v1265
        %vm1303 = vweird.f32 %v1297
        %vm1304 = vmor %vm1302, %vm1303
        %v1305 = vsel %vm1304, %v1297, %v1301
        %v1306 = vand.u32 2147483647, %v1265
        %vm1307 = vcmp.eq.f32.partialorder %v1306, 8.507059e+37
        %v1308 = vand.u32 %v1265, 2147483648
        %v1309 = vor.u32 1.1754944e-38, %v1308
        %v1310 = vsel %vm1307, %v1309, %v1305
        %v1311 = vmul.f32 1.0, %v1310
        %v1312 = vrcp.pop %v1266
        %v1313 = vmul.f32 %v1266, %v1312
        %v1314 = vsub.f32 1.0, %v1313
        %v1315 = vmul.f32 %v1312, %v1314
        %v1316 = vadd.f32 %v1312, %v1315
        %vm1317 = vweird.f32 %v1266
        %vm1318 = vweird.f32 %v1312
        %vm1319 = vmor %vm1317, %vm1318
        %v1320 = vsel %vm1319, %v1312, %v1316
        %v1321 = vand.u32 2147483647, %v1266
        %vm1322 = vcmp.eq.f32.partialorder %v1321, 8.507059e+37
        %v1323 = vand.u32 %v1266, 2147483648
        %v1324 = vor.u32 1.1754944e-38, %v1323
        %v1325 = vsel %vm1322, %v1324, %v1320
        %v1326 = vmul.f32 1.0, %v1325
        %v1327 = vmul.f32 %v1281, 1.0614054
        %v1328 = vmul.f32 %v1296, 1.0614054
        %v1329 = vmul.f32 %v1311, 1.0614054
        %v1330 = vmul.f32 %v1326, 1.0614054
        %v1331 = vadd.f32 %v1327, -1.4531521
        %v1332 = vadd.f32 %v1328, -1.4531521
        %v1333 = vadd.f32 %v1329, -1.4531521
        %v1334 = vadd.f32 %v1330, -1.4531521
        %v1335 = vmul.f32 %v1331, %v1281
        %v1336 = vmul.f32 %v1332, %v1296
        %v1337 = vmul.f32 %v1333, %v1311
        %v1338 = vmul.f32 %v1334, %v1326
        %v1339 = vadd.f32 %v1335, 1.4214138
        %v1340 = vadd.f32 %v1336, 1.4214138
        %v1341 = vadd.f32 %v1337, 1.4214138
        %v1342 = vadd.f32 %v1338, 1.4214138
        %v1343 = vmul.f32 %v1339, %v1281
        %v1344 = vmul.f32 %v1340, %v1296
        %v1345 = vmul.f32 %v1341, %v1311
        %v1346 = vmul.f32 %v1342, %v1326
        %v1347 = vadd.f32 %v1343, -0.28449672
        %v1348 = vadd.f32 %v1344, -0.28449672
        %v1349 = vadd.f32 %v1345, -0.28449672
        %v1350 = vadd.f32 %v1346, -0.28449672
        %v1351 = vmul.f32 %v1347, %v1281
        %v1352 = vmul.f32 %v1348, %v1296
        %v1353 = vmul.f32 %v1349, %v1311
        %v1354 = vmul.f32 %v1350, %v1326
        %v1355 = vadd.f32 %v1351, 0.2548296
        %v1356 = vadd.f32 %v1352, 0.2548296
        %v1357 = vadd.f32 %v1353, 0.2548296
        %v1358 = vadd.f32 %v1354, 0.2548296
        %v1359 = vmul.f32 %v1355, %v1281
        %v1360 = vmul.f32 %v1356, %v1296
        %v1361 = vmul.f32 %v1357, %v1311
        %v1362 = vmul.f32 %v1358, %v1326
        %v1363 = vsub.f32 0.0, %v1255
        %v1364 = vsub.f32 0.0, %v1256
        %v1365 = vsub.f32 0.0, %v1257
        %v1366 = vsub.f32 0.0, %v1258
        %v1367 = vmul.f32 %v1363, %v1255
        %v1368 = vmul.f32 %v1364, %v1256
        %v1369 = vmul.f32 %v1365, %v1257
        %v1370 = vmul.f32 %v1366, %v1258
        %v1371 = vmul.f32 %v1367, 1.442695
        %v1372 = vpow.pop %v1371
        %v1373 = vmul.f32 %v1368, 1.442695
        %v1374 = vpow.pop %v1373
        %v1375 = vmul.f32 %v1369, 1.442695
        %v1376 = vpow.pop %v1375
        %v1377 = vmul.f32 %v1370, 1.442695
        %v1378 = vpow.pop %v1377
        %v1379 = vmul.f32 %v1359, %v1372
        %v1380 = vmul.f32 %v1360, %v1374
        %v1381 = vmul.f32 %v1361, %v1376
        %v1382 = vmul.f32 %v1362, %v1378
        %v1383 = vsub.f32 1.0, %v1379
        %v1384 = vsub.f32 1.0, %v1380
        %v1385 = vsub.f32 1.0, %v1381
        %v1386 = vsub.f32 1.0, %v1382
        %v1387 = vmul.f32 %v1251, %v1383
        %v1388 = vmul.f32 %v1252, %v1384
        %v1389 = vmul.f32 %v1253, %v1385
        %v1390 = vmul.f32 %v1254, %v1386
        %v1391 = vadd.f32 %v1387, 1.0
        %v1392 = vadd.f32 %v1388, 1.0
        %v1393 = vadd.f32 %v1389, 1.0
        %v1394 = vadd.f32 %v1390, 1.0
        %v1395 = vmul.f32 %v1239, %v1391
        %v1396 = vmul.f32 %v1240, %v1392
        %v1397 = vmul.f32 %v1241, %v1393
        %v1398 = vmul.f32 %v1242, %v1394
        %v1399 = vmul.f32 %v1395, %v1207
        %v1400 = vmul.f32 %v1396, %v1235
        %v1401 = vmul.f32 %v1397, %v1209
        %v1402 = vmul.f32 %v1398, %v1237
        %v1403 = vpack.c.bf16 %v1401, %v1399
        %v1404 = vpack.c.bf16 %v1402, %v1400
        %v1405 = vld [vmem:[#allocation3] sm:$0xff]
        %v1406 = vld [vmem:[#allocation3 + $0x8] sm:$0xff]
        %v1407 = vld [vmem:[#allocation3 + $0x10] sm:$0xff]
        %v1408 = vld [vmem:[#allocation3 + $0x18] sm:$0xff]
        %v1409 = vld [vmem:[%s650] sm:$0xff]
        %v1410 = vld [vmem:[%s650 + $0x8] sm:$0xff]
        %v1411 = vld [vmem:[%s650 + $0x10] sm:$0xff]
        %v1412 = vld [vmem:[%s650 + $0x18] sm:$0xff]
        %v1413 = vld [vmem:[%s650 + $0x20] sm:$0xff]
        %v1414 = vld [vmem:[%s650 + $0x28] sm:$0xff]
        %v1415 = vld [vmem:[%s650 + $0x30] sm:$0xff]
        %v1416 = vld [vmem:[%s650 + $0x38] sm:$0xff]
        %v1417 = vld [vmem:[%s650 + $0x40] sm:$0xff]
        %v1418 = vld [vmem:[%s650 + $0x48] sm:$0xff]
        %v1419 = vld [vmem:[%s650 + $0x50] sm:$0xff]
        %v1420 = vld [vmem:[%s650 + $0x58] sm:$0xff]
        %v1421 = vld [vmem:[%s650 + $0x60] sm:$0xff]
        %v1422 = vld [vmem:[%s650 + $0x68] sm:$0xff]
        %v1423 = vld [vmem:[%s650 + $0x70] sm:$0xff]
        %v1424 = vld [vmem:[%s650 + $0x78] sm:$0xff]
        %v1425 = vld [vmem:[%s650 + $0x80] sm:$0xff]
        %v1426 = vld [vmem:[%s650 + $0x88] sm:$0xff]
        %v1427 = vld [vmem:[%s650 + $0x90] sm:$0xff]
        %v1428 = vld [vmem:[%s650 + $0x98] sm:$0xff]
        %v1429 = vld [vmem:[%s650 + $0xa0] sm:$0xff]
        %v1430 = vld [vmem:[%s650 + $0xa8] sm:$0xff]
        %v1431 = vld [vmem:[%s650 + $0xb0] sm:$0xff]
        %v1432 = vld [vmem:[%s650 + $0xb8] sm:$0xff]
        %v1433 = vld [vmem:[%s650 + $0xc0] sm:$0xff]
        %v1434 = vld [vmem:[%s650 + $0xc8] sm:$0xff]
        %v1435 = vld [vmem:[%s650 + $0xd0] sm:$0xff]
        %v1436 = vld [vmem:[%s650 + $0xd8] sm:$0xff]
        %v1437 = vld [vmem:[%s650 + $0xe0] sm:$0xff]
        %v1438 = vld [vmem:[%s650 + $0xe8] sm:$0xff]
        %v1439 = vld [vmem:[%s650 + $0xf0] sm:$0xff]
        %v1440 = vld [vmem:[%s650 + $0xf8] sm:$0xff]
        %v1473 = vunpack.c.l.b16 %v1409
        %v1474 = vunpack.c.h.b16 %v1409
        %v1475 = vunpack.c.l.b16 %v1410
        %v1476 = vunpack.c.h.b16 %v1410
        %v1477 = vunpack.c.l.b16 %v1411
        %v1478 = vunpack.c.h.b16 %v1411
        %v1479 = vunpack.c.l.b16 %v1412
        %v1480 = vunpack.c.h.b16 %v1412
        %v1481 = vunpack.c.l.b16 %v1413
        %v1482 = vunpack.c.h.b16 %v1413
        %v1483 = vunpack.c.l.b16 %v1414
        %v1484 = vunpack.c.h.b16 %v1414
        %v1485 = vunpack.c.l.b16 %v1415
        %v1486 = vunpack.c.h.b16 %v1415
        %v1487 = vunpack.c.l.b16 %v1416
        %v1488 = vunpack.c.h.b16 %v1416
        %v1489 = vunpack.c.l.b16 %v1417
        %v1490 = vunpack.c.h.b16 %v1417
        %v1491 = vunpack.c.l.b16 %v1418
        %v1492 = vunpack.c.h.b16 %v1418
        %v1493 = vunpack.c.l.b16 %v1419
        %v1494 = vunpack.c.h.b16 %v1419
        %v1495 = vunpack.c.l.b16 %v1420
        %v1496 = vunpack.c.h.b16 %v1420
        %v1497 = vunpack.c.l.b16 %v1421
        %v1498 = vunpack.c.h.b16 %v1421
        %v1499 = vunpack.c.l.b16 %v1422
        %v1500 = vunpack.c.h.b16 %v1422
        %v1501 = vunpack.c.l.b16 %v1423
        %v1502 = vunpack.c.h.b16 %v1423
        %v1503 = vunpack.c.l.b16 %v1424
        %v1504 = vunpack.c.h.b16 %v1424
        %v1505 = vunpack.c.l.b16 %v1425
        %v1506 = vunpack.c.h.b16 %v1425
        %v1507 = vunpack.c.l.b16 %v1426
        %v1508 = vunpack.c.h.b16 %v1426
        %v1509 = vunpack.c.l.b16 %v1427
        %v1510 = vunpack.c.h.b16 %v1427
        %v1511 = vunpack.c.l.b16 %v1428
        %v1512 = vunpack.c.h.b16 %v1428
        %v1513 = vunpack.c.l.b16 %v1429
        %v1514 = vunpack.c.h.b16 %v1429
        %v1515 = vunpack.c.l.b16 %v1430
        %v1516 = vunpack.c.h.b16 %v1430
        %v1517 = vunpack.c.l.b16 %v1431
        %v1518 = vunpack.c.h.b16 %v1431
        %v1519 = vunpack.c.l.b16 %v1432
        %v1520 = vunpack.c.h.b16 %v1432
        %v1521 = vunpack.c.l.b16 %v1433
        %v1522 = vunpack.c.h.b16 %v1433
        %v1523 = vunpack.c.l.b16 %v1434
        %v1524 = vunpack.c.h.b16 %v1434
        %v1525 = vunpack.c.l.b16 %v1435
        %v1526 = vunpack.c.h.b16 %v1435
        %v1527 = vunpack.c.l.b16 %v1436
        %v1528 = vunpack.c.h.b16 %v1436
        %v1529 = vunpack.c.l.b16 %v1437
        %v1530 = vunpack.c.h.b16 %v1437
        %v1531 = vunpack.c.l.b16 %v1438
        %v1532 = vunpack.c.h.b16 %v1438
        %v1533 = vunpack.c.l.b16 %v1439
        %v1534 = vunpack.c.h.b16 %v1439
        %v1535 = vunpack.c.l.b16 %v1440
        %v1536 = vunpack.c.h.b16 %v1440
        %v1537 = vpack.c.b16 %v1475, %v1473
        %v1538 = vpack.c.b16 %v1476, %v1474
        %v1539 = vpack.c.b16 %v1479, %v1477
        %v1540 = vpack.c.b16 %v1480, %v1478
        %v1541 = vpack.c.b16 %v1483, %v1481
        %v1542 = vpack.c.b16 %v1484, %v1482
        %v1543 = vpack.c.b16 %v1487, %v1485
        %v1544 = vpack.c.b16 %v1488, %v1486
        %v1545 = vpack.c.b16 %v1491, %v1489
        %v1546 = vpack.c.b16 %v1492, %v1490
        %v1547 = vpack.c.b16 %v1495, %v1493
        %v1548 = vpack.c.b16 %v1496, %v1494
        %v1549 = vpack.c.b16 %v1499, %v1497
        %v1550 = vpack.c.b16 %v1500, %v1498
        %v1551 = vpack.c.b16 %v1503, %v1501
        %v1552 = vpack.c.b16 %v1504, %v1502
        %v1553 = vpack.c.b16 %v1507, %v1505
        %v1554 = vpack.c.b16 %v1508, %v1506
        %v1555 = vpack.c.b16 %v1511, %v1509
        %v1556 = vpack.c.b16 %v1512, %v1510
        %v1557 = vpack.c.b16 %v1515, %v1513
        %v1558 = vpack.c.b16 %v1516, %v1514
        %v1559 = vpack.c.b16 %v1519, %v1517
        %v1560 = vpack.c.b16 %v1520, %v1518
        %v1561 = vpack.c.b16 %v1523, %v1521
        %v1562 = vpack.c.b16 %v1524, %v1522
        %v1563 = vpack.c.b16 %v1527, %v1525
        %v1564 = vpack.c.b16 %v1528, %v1526
        %v1565 = vpack.c.b16 %v1531, %v1529
        %v1566 = vpack.c.b16 %v1532, %v1530
        %v1567 = vpack.c.b16 %v1535, %v1533
        %v1568 = vpack.c.b16 %v1536, %v1534
        %1601 = vmatpush.bf16.msra.mxu0 %v1551
        %1602 = vmatpush.bf16.msra.mxu0 %v1549
        %1603 = vmatpush.bf16.msra.mxu0 %v1547
        %1604 = vmatpush.bf16.msra.mxu0 %v1545
        %1605 = vmatpush.bf16.msra.mxu0 %v1543
        %1606 = vmatpush.bf16.msra.mxu0 %v1541
        %1607 = vmatpush.bf16.msra.mxu0 %v1539
        %1608 = vmatpush.bf16.msra.mxu0 %v1537
        %1609 = vmatmul.bf16.gmra.mxu0 %v1403
        %v1610 = vpop.f32.mrf.mxu0
        %v1611 = vadd.f32 0.0, %v1610
        %v1612 = vpop.f32.mrf.mxu0
        %v1613 = vadd.f32 0.0, %v1612
        %1614 = vdwg.mxu0
        %1615 = vmatpush.bf16.msra.mxu0 %v1567
        %1616 = vmatpush.bf16.msra.mxu0 %v1565
        %1617 = vmatpush.bf16.msra.mxu0 %v1563
        %1618 = vmatpush.bf16.msra.mxu0 %v1561
        %1619 = vmatpush.bf16.msra.mxu0 %v1559
        %1620 = vmatpush.bf16.msra.mxu0 %v1557
        %1621 = vmatpush.bf16.msra.mxu0 %v1555
        %1622 = vmatpush.bf16.msra.mxu0 %v1553
        %1623 = vmatmul.bf16.gmra.mxu0 %v1404
        %v1624 = vpop.f32.mrf.mxu0
        %v1625 = vadd.f32 %v1611, %v1624
        %v1626 = vpop.f32.mrf.mxu0
        %v1627 = vadd.f32 %v1613, %v1626
        %1628 = vdwg.mxu0
        %1629 = vmatpush.bf16.msra.mxu0 %v1552
        %1630 = vmatpush.bf16.msra.mxu0 %v1550
        %1631 = vmatpush.bf16.msra.mxu0 %v1548
        %1632 = vmatpush.bf16.msra.mxu0 %v1546
        %1633 = vmatpush.bf16.msra.mxu0 %v1544
        %1634 = vmatpush.bf16.msra.mxu0 %v1542
        %1635 = vmatpush.bf16.msra.mxu0 %v1540
        %1636 = vmatpush.bf16.msra.mxu0 %v1538
        %1637 = vmatmul.bf16.gmra.mxu0 %v1403
        %v1638 = vpop.f32.mrf.mxu0
        %v1639 = vadd.f32 0.0, %v1638
        %v1640 = vpop.f32.mrf.mxu0
        %v1641 = vadd.f32 0.0, %v1640
        %1642 = vdwg.mxu0
        %1643 = vmatpush.bf16.msra.mxu0 %v1568
        %1644 = vmatpush.bf16.msra.mxu0 %v1566
        %1645 = vmatpush.bf16.msra.mxu0 %v1564
        %1646 = vmatpush.bf16.msra.mxu0 %v1562
        %1647 = vmatpush.bf16.msra.mxu0 %v1560
        %1648 = vmatpush.bf16.msra.mxu0 %v1558
        %1649 = vmatpush.bf16.msra.mxu0 %v1556
        %1650 = vmatpush.bf16.msra.mxu0 %v1554
        %1651 = vmatmul.bf16.gmra.mxu0 %v1404
        %v1652 = vpop.f32.mrf.mxu0
        %v1653 = vadd.f32 %v1639, %v1652
        %v1654 = vpop.f32.mrf.mxu0
        %v1655 = vadd.f32 %v1641, %v1654
        %1656 = vdwg.mxu0
        %v1657 = vadd.f32 %v1405, %v1625
        %v1658 = vadd.f32 %v1406, %v1653
        %v1659 = vadd.f32 %v1407, %v1627
        %v1660 = vadd.f32 %v1408, %v1655
        %1661 = vst [vmem:[#allocation3] sm:$0xff] %v1657
        %1662 = vst [vmem:[#allocation3 + $0x8] sm:$0xff] %v1658
        %1663 = vst [vmem:[#allocation3 + $0x10] sm:$0xff] %v1659
        %1664 = vst [vmem:[#allocation3 + $0x18] sm:$0xff] %v1660
        %p1665 = scmp.eq.s32.totalorder %s22, 1
        // Predicated region
        $region125: #{closed_call.30} parent=111 // pred_check
          %p1666 = pneg %p1665
        $region126: #{closed_call.30} parent=111 // pred_check_branch
          %1668 = sbr.rel (%p1666) target = $region128
        $region127: #{closed_call.30} parent=111 // pred_region
          %v1669 = vld [vmem:[#allocation3] sm:$0xff]
          %v1670 = vld [vmem:[#allocation3 + $0x8] sm:$0xff]
          %v1671 = vld [vmem:[#allocation3 + $0x10] sm:$0xff]
          %v1672 = vld [vmem:[#allocation3 + $0x18] sm:$0xff]
          %v1673 = vmul.f32 %v1669, %v1669
          %v1674 = vmul.f32 %v1670, %v1670
          %v1675 = vmul.f32 %v1671, %v1671
          %v1676 = vmul.f32 %v1672, %v1672
          %v1677 = vadd.f32 %v1673, %v1674
          %1678 = vadd.xlane.f32.xlu0 %v1677
          %v1679 = vpop.xlane.xlu0 %1678
          %v1680 = vadd.f32 %v1675, %v1676
          %1681 = vadd.xlane.f32.xlu0 %v1680
          %v1682 = vpop.xlane.xlu0 %1681
          %v1683 = vrcp.pop 256.0
          %v1684 = vmul.f32 256.0, %v1683
          %v1685 = vsub.f32 1.0, %v1684
          %v1686 = vmul.f32 %v1683, %v1685
          %v1687 = vadd.f32 %v1683, %v1686
          %vm1688 = vweird.f32 %v1683
          %v1689 = vsel %vm1688, %v1683, %v1687
          %v1690 = vmul.f32 %v1679, %v1689
          %v1691 = vmul.f32 %v1682, %v1689
          %v1692 = vadd.f32 %v1690, 1e-06
          %v1693 = vadd.f32 %v1691, 1e-06
          %v1694 = vrsqrt.pop %v1692
          %v1695 = vmul.f32 %v1694, %v1692
          %v1696 = vmul.f32 %v1695, %v1694
          %v1697 = vmul.f32 0.5, %v1696
          %v1698 = vsub.f32 1.5, %v1697
          %v1699 = vmul.f32 %v1694, %v1698
          %vm1700 = vweird.f32 %v1692
          %vm1701 = vweird.f32 %v1694
          %vm1702 = vmor %vm1700, %vm1701
          %v1703 = vsel %vm1702, %v1694, %v1699
          %v1704 = vrsqrt.pop %v1693
          %v1705 = vmul.f32 %v1704, %v1693
          %v1706 = vmul.f32 %v1705, %v1704
          %v1707 = vmul.f32 0.5, %v1706
          %v1708 = vsub.f32 1.5, %v1707
          %v1709 = vmul.f32 %v1704, %v1708
          %vm1710 = vweird.f32 %v1693
          %vm1711 = vweird.f32 %v1704
          %vm1712 = vmor %vm1710, %vm1711
          %v1713 = vsel %vm1712, %v1704, %v1709
          %v1714 = vmul.f32 %v1669, %v1703
          %v1715 = vmul.f32 %v1670, %v1703
          %v1716 = vmul.f32 %v1671, %v1713
          %v1717 = vmul.f32 %v1672, %v1713
          %v1718 = vld [vmem:[%s5] sm:$0x3]
          %v1719 = vadd.f32 %v1718, 1.0
          %v1721 = vperm.slane %v1719, 0
          %v1722 = vperm.slane %v1719, 1
          %v1725 = vmul.f32 %v1714, %v1721
          %v1726 = vmul.f32 %v1715, %v1722
          %v1727 = vmul.f32 %v1716, %v1721
          %v1728 = vmul.f32 %v1717, %v1722
          %v1729 = vld [vmem:[%s641] sm:$0xff]
          %v1730 = vld [vmem:[%s641 + $0x8] sm:$0xff]
          %v1731 = vld [vmem:[%s641 + $0x10] sm:$0xff]
          %v1732 = vld [vmem:[%s641 + $0x18] sm:$0xff]
          %v1733 = vadd.f32 %v1729, %v1725
          %v1734 = vadd.f32 %v1730, %v1726
          %v1735 = vadd.f32 %v1731, %v1727
          %v1736 = vadd.f32 %v1732, %v1728
          %1737 = vst [vmem:[%s657] sm:$0xff] %v1733
          %1738 = vst [vmem:[%s657 + $0x8] sm:$0xff] %v1734
          %1739 = vst [vmem:[%s657 + $0x10] sm:$0xff] %v1735
          %1740 = vst [vmem:[%s657 + $0x18] sm:$0xff] %v1736
        $region128: #{closed_call.30} parent=111 // pred_fallthru
          _
        %s1741 = smul.u32 2, %s21
        %p1742 = scmp.lt.s32.totalorder %s1741, 1
        %s1743 = scalar_select %p1742, %s1741, 1
        %s1744 = smul.addr %s1743, 2
        %s1745 = smul.addr %s1744, 8
        %s1746 = scalar_lea.vmem %s6, %s1745
        // Predicated region
        $region129: #{closed_call.30} parent=111 // pred_check
          %p1747 = pneg %p193
        $region130: #{closed_call.30} parent=111 // pred_check_branch
          %1749 = sbr.rel (%p1747) target = $region132
        $region131: #{closed_call.30} parent=111 // pred_region
          %s1750 = smul.u32 2, %s21
        $region132: #{closed_call.30} parent=111 // pred_fallthru
          _
        // Predicated region
        $region133: #{closed_call.30} parent=111 // pred_check
          %p1751 = pneg %p193
        $region134: #{closed_call.30} parent=111 // pred_check_branch
          %1753 = sbr.rel (%p1751) target = $region136
        $region135: #{closed_call.30} parent=111 // pred_region
          %s1754 = smul.u32 2, %s21
          %p1755 = scmp.lt.s32.totalorder %s1754, 1
          %s1756 = scalar_select %p1755, %s1754, 1
          %s1757 = smul.addr %s1756, 2
          %s1758 = smul.addr %s1757, 8
          %s1759 = scalar_lea.vmem %s6, %s1758
        $region136: #{closed_call.30} parent=111 // pred_fallthru
          _
      $region112: #{closed_call.30} parent=5 // pred_fallthru
        _
      %p1760 = scmp.le.s32.totalorder 2, %s12
      // Predicated region
      $region137: #{closed_call.30} parent=5 // pred_check
        %p1761 = pneg %p1760
      $region138: #{closed_call.30} parent=5 // pred_check_branch
        %1763 = sbr.rel (%p1761) target = $region140
      $region139: #{closed_call.30} parent=5 // pred_region
        %s1764 = ssub.s32 %s12, 2
      $region140: #{closed_call.30} parent=5 // pred_fallthru
        _
    $region6: #{closed_call.30} parent=1 // loop_footer
      %s16 = sadd.s32 1, %s12
    $region7: #{closed_call.30} parent=1 // loop_footer_branch
      %11 = sbr.rel target = $region3
    $region8: #{closed_call.30} parent=1 // loop_exit
      _

</llo_original>
